<compile_context>
chip_gen: v6e
topology: v6e:2x2x1
jax: 0.10.0
libtpu: 0.0.40
codegen_flags: <defaults>
</compile_context>

<pallas_src>
import functools

import jax
import jax.numpy as jnp
from jax.experimental import pallas as pl
from jax.experimental.pallas import tpu as pltpu


# -----------------------------------------------------------------------------
# Pallas kernel: chained matmuls with fused f32 bias (+ optional ReLU) epilogues.
#   stage s:  y_s = act_s(x_s @ w_s + b_s),   x_0 = a,  x_{s+1} = bf16(y_s)
# Stages flagged for storage write their result into disjoint column ranges of a
# single merged output slab (one store stream / one output DMA per row tile).
# One grid axis over M row-tiles; K and every N are single full-size blocks.
# -----------------------------------------------------------------------------
def _mm_chain_kernel(*refs, relus, store_cols):
    n_stages = len(relus)
    a_ref = refs[0]
    o_ref = refs[1 + 2 * n_stages]
    x = a_ref[...]                                   # bf16 row tile (tm, K)
    for s in range(n_stages):
        w_ref = refs[1 + 2 * s]
        b_ref = refs[2 + 2 * s]
        y = jnp.dot(x, w_ref[...], preferred_element_type=jnp.float32)
        y = y + b_ref[...]                           # f32 epilogue (v5e-safe)
        if relus[s]:
            y = jnp.maximum(y, 0.0)
        if store_cols[s] is not None:
            lo, hi = store_cols[s]
            if lo == 0 and hi == o_ref.shape[-1]:
                o_ref[...] = y.astype(o_ref.dtype)
            else:
                o_ref[:, lo:hi] = y.astype(o_ref.dtype)
        if s + 1 < n_stages:
            x = y.astype(a_ref.dtype)                # bf16 for the next MXU stage
    # TODO(synk): lane-dense store (reshape (tm,C)->(tm//W,W*C) before the store)
    # would turn these sub-128-lane masked vst into full-lane stores; skipped here
    # because the in-kernel lane-regrouping shape_cast is not guaranteed to lower
    # on all generations.


def _round_up(x, m):
    return (x + m - 1) // m * m


@functools.lru_cache(maxsize=None)
def _tensorcores_per_chip():
    """v7x exposes 2 TensorCores per chip; v5e/v6e have one."""
    try:
        kind = (jax.devices()[0].device_kind or "").lower()
    except Exception:
        return 1
    return 2 if "v7" in kind else 1


def _pick_tiling(m, n_cores):
    """Row-tile size tm and padded M.

    Single-TensorCore chips (v5e/v6e): one dense block up to 1024 rows — a grid
    split buys nothing and costs ~0.35us/step.  v7x (2 TCs): >=2 'parallel' row
    tiles once there is enough work (M >= 512) to share.  Very large M: 1024-row
    tiles to amortize per-step overhead and stay near the HBM roofline.
    """
    if n_cores > 1 and m >= 512:
        tm = min(1024, _round_up(pl.cdiv(m, n_cores), 256))
    elif m <= 1024:
        mp = _round_up(m, 8)
        return mp, mp
    else:
        tm = 1024
    mp = _round_up(m, tm)
    return tm, mp


def pallas_matmul_chain(a, stages, *, out_dtype, n_cores, compute_dtype=jnp.bfloat16):
    """Chained GEMMs sharing one kernel launch.

    a: (M, K), already in `compute_dtype` (bf16).
    stages: list of (w:(K_s, N_s), b:(N_s,), relu:bool, store:bool); stage 0
    consumes `a`, stage s>0 consumes the (bf16-cast) output of stage s-1.
    Returns a single (M, sum_of_stored_N) array of dtype `out_dtype`; stored
    stages occupy consecutive column ranges in stage order.
    """
    m, k = a.shape
    tm, mp = _pick_tiling(m, n_cores)

    a_c = a.astype(compute_dtype)                    # no-op when already bf16
    if mp != m:
        a_c = jnp.pad(a_c, ((0, mp - m), (0, 0)))

    relus = tuple(bool(r) for (_, _, r, _) in stages)
    ws = [w.astype(compute_dtype) for (w, _, _, _) in stages]
    bs = [b.reshape(1, -1).astype(jnp.float32) for (_, b, _, _) in stages]

    store_cols, off = [], 0
    for (w, _, _, store) in stages:
        if store:
            store_cols.append((off, off + w.shape[1]))
            off += w.shape[1]
        else:
            store_cols.append(None)
    n_out = off
    assert n_out > 0, "at least one stage must be stored"

    in_specs = [pl.BlockSpec((tm, k), lambda i: (i, 0))]
    operands = [a_c]
    for w, b in zip(ws, bs):
        # Full-array blocks: (8,128) divisibility is waived when block == array dim.
        in_specs.append(pl.BlockSpec(w.shape, lambda i: (0, 0)))
        in_specs.append(pl.BlockSpec(b.shape, lambda i: (0, 0)))
        operands.extend([w, b])

    out_spec = pl.BlockSpec((tm, n_out), lambda i: (i, 0))
    out_shape = jax.ShapeDtypeStruct((mp, n_out), out_dtype)

    kernel = functools.partial(_mm_chain_kernel, relus=relus,
                               store_cols=tuple(store_cols))

    # vmem_limit_bytes only when tiles are production-scale (double-buffered A +
    # resident weights + double-buffered output); irrelevant at these shapes.
    vmem_est = (2 * tm * k * 2 + sum(int(w.size) * 2 for w in ws)
                + 2 * tm * n_out * jnp.dtype(out_dtype).itemsize)
    cp_kwargs = {}
    if vmem_est > 16 * 1024 * 1024:
        cp_kwargs["vmem_limit_bytes"] = min(2 * vmem_est, 100 * 1024 * 1024)

    out = pl.pallas_call(
        kernel,
        out_shape=out_shape,
        grid_spec=pl.GridSpec(
            grid=(mp // tm,),
            in_specs=in_specs,
            out_specs=out_spec,
        ),
        compiler_params=pltpu.CompilerParams(
            dimension_semantics=("parallel",), **cp_kwargs),
    )(*operands)

    if mp != m:
        out = out[:m]
    return out


# -----------------------------------------------------------------------------
# Conv via im2col (glue, fused by XLA under jit) + Pallas chained matmul.
# -----------------------------------------------------------------------------
def _im2col(x, ksize, stride, pad):
    # x: (N, H, W, C) NHWC -> (N*Ho*Wo, k*k*C) with (dy, dx, Cin) column order,
    # matching w.reshape(k*k*Cin, Cout).  x is already bf16 so only one bf16 copy
    # of the column matrix is materialized.
    n, h, w, c = x.shape
    xp = jnp.pad(x, ((0, 0), (pad, pad), (pad, pad), (0, 0)))
    ho = (h + 2 * pad - ksize) // stride + 1
    wo = (w + 2 * pad - ksize) // stride + 1
    cols = []
    for dy in range(ksize):
        for dx in range(ksize):
            cols.append(xp[:, dy:dy + stride * ho:stride,
                           dx:dx + stride * wo:stride, :])
    patches = jnp.concatenate(cols, axis=-1)            # (N, Ho, Wo, k*k*C)
    return patches.reshape(n * ho * wo, ksize * ksize * c), (n, ho, wo)
    # TODO(synk): for realistic resolutions, fold the 9 taps into the kernel as
    # shifted (tm,C)x(C,Cout) matmuls over a VMEM-resident padded row band instead
    # of materializing (M, 9*C) in HBM (kills the 9x read/write amplification).


def _w2d(w):
    return w.reshape(-1, w.shape[-1])


# -----------------------------------------------------------------------------
# Model definition (deterministic synthetic parameters)
# -----------------------------------------------------------------------------
def init_params(key):
    def normal(key, shape, scale=0.05):
        return scale * jax.random.normal(key, shape, jnp.float32)

    ks = jax.random.split(key, 10)
    return {
        # backbone
        "bb_w1": normal(ks[0], (3, 3, 3, 16)),  "bb_b1": jnp.zeros((16,)),
        "bb_w2": normal(ks[1], (3, 3, 16, 32)), "bb_b2": jnp.zeros((32,)),
        # neck (FPN, 32 channels)
        "lat_w1": normal(ks[2], (1, 1, 16, 32)), "lat_b1": jnp.zeros((32,)),
        "lat_w2": normal(ks[3], (1, 1, 32, 32)), "lat_b2": jnp.zeros((32,)),
        "out_w1": normal(ks[4], (3, 3, 32, 32)), "out_b1": jnp.zeros((32,)),
        # out_w2/out_b2 kept for parameter parity; dead w.r.t. returned preds
        # (the decoder only consumes the finest FPN level).
        "out_w2": normal(ks[5], (3, 3, 32, 32)), "out_b2": jnp.zeros((32,)),
        # decoder heads
        "box_w": normal(ks[6], (32, 4)),  "box_b": jnp.zeros((4,)),
        "cls_w": normal(ks[7], (32, 8)),  "cls_b": jnp.zeros((8,)),
    }


def smoothtext_forward(params, images, mask):
    """Mirrors SmoothText.forward (training path). images: (N, H, W, 3) NHWC,
    mask: (N, H, W) bool (True on padded pixels)."""
    n_cores = _tensorcores_per_chip()
    imgs = images.astype(jnp.bfloat16)               # bf16 before im2col/padding

    # ---- backbone conv1 (3x3/s2, ReLU) with the FPN 1x1 lateral fused in its
    #      epilogue; both stored as one merged bf16 slab [f1 | l1] ----
    cols1, (n, h1, w1) = _im2col(imgs, 3, 2, 1)
    slab1 = pallas_matmul_chain(
        cols1,
        [(_w2d(params["bb_w1"]), params["bb_b1"], True, True),
         (_w2d(params["lat_w1"]), params["lat_b1"], False, True)],
        out_dtype=jnp.bfloat16, n_cores=n_cores)
    f1 = slab1[:, :16].reshape(n, h1, w1, 16)        # bf16 feature (input of conv2)
    l1 = slab1[:, 16:].reshape(n, h1, w1, 32)        # bf16 lateral

    # ---- backbone conv2 (3x3/s2, ReLU) with lateral-2 chained; only l2 is
    #      written back (f2 lives solely in VMEM inside the kernel) ----
    cols2, (_, h2, w2) = _im2col(f1, 3, 2, 1)
    l2 = pallas_matmul_chain(
        cols2,
        [(_w2d(params["bb_w2"]), params["bb_b2"], True, False),
         (_w2d(params["lat_w2"]), params["lat_b2"], False, True)],
        out_dtype=jnp.bfloat16, n_cores=n_cores).reshape(n, h2, w2, 32)

    # per-level masks (NestedTensor.decompose()[1]); computed, asserted, and
    # (as in the reference composite) not consumed by the neck/decoder.
    m1 = mask[:, ::2, ::2]
    m2 = m1[:, ::2, ::2]
    feas_mask = {"res1": m1, "res2": m2}
    assert feas_mask is not None

    # ---- neck: FPN top-down merge (glue) ----
    up2 = jnp.repeat(jnp.repeat(l2, 2, axis=1), 2, axis=2)       # nearest 2x
    p1 = l1 + up2                                                # bf16

    # ---- finest 3x3 out-conv precomposed with the decoder heads (both linear):
    #      heads = cols3 @ (W_out1 @ W_head) + (b_out1 @ W_head + b_head) ----
    head_w = jnp.concatenate([params["box_w"], params["cls_w"]], axis=1)   # (32,12)
    head_b = jnp.concatenate([params["box_b"], params["cls_b"]])           # (12,)
    w_comb = _w2d(params["out_w1"]).astype(jnp.float32) @ head_w           # (288,12)
    b_comb = params["out_b1"] @ head_w + head_b                            # (12,)
    cols3, _ = _im2col(p1, 3, 1, 1)
    heads = pallas_matmul_chain(
        cols3, [(w_comb, b_comb, False, True)],
        out_dtype=jnp.float32, n_cores=n_cores)                            # (M,12) f32

    # NOTE: the coarse-level out-conv (out_w2/out_b2) and the raw FPN feature maps
    # are dead with respect to the returned predictions (decoder only consumes the
    # finest level and its effect is precomposed above), so they are not computed.

    # ---- decoder outputs (per-position box(4) + recognition logits(8)) ----
    preds = {
        "pred_boxes": heads[:, :4].reshape(n, h1 * w1, 4),
        "pred_logits": heads[:, 4:].reshape(n, h1 * w1, 8),
    }
    if preds is None:
        return None
    # TODO(synk): eval branch of the reference returns an undefined `outputs`
    # (bug in the source module); only the training path is implemented.
    return preds


if __name__ == "__main__":
    key = jax.random.PRNGKey(0)
    k_img, k_param = jax.random.split(key)

    # batched images [B, 3, H, W] in the PyTorch convention -> converted to NHWC
    images_nchw = jax.random.normal(k_img, (2, 3, 32, 32), jnp.float32)
    images = jnp.transpose(images_nchw, (0, 2, 3, 1))            # NHWC layout
    mask = jnp.zeros((2, 32, 32), dtype=bool)                    # no padded pixels

    params = init_params(k_param)

    fwd = jax.jit(smoothtext_forward)
    out = fwd(params, images, mask)
    jax.block_until_ready(out)

    assert out["pred_boxes"].shape == (2, 16 * 16, 4)
    assert out["pred_logits"].shape == (2, 16 * 16, 8)
    print("KERNEL_OK")
</pallas_src>

<mosaic_0001>
module attributes {stable_mosaic.version = 11 : i64} {
  func.func @_mm_chain_kernel(%arg0: i32, %arg1: memref<512x27xbf16, #tpu.memory_space<vmem>>, %arg2: memref<27x16xbf16, #tpu.memory_space<vmem>>, %arg3: memref<1x16xf32, #tpu.memory_space<vmem>>, %arg4: memref<16x32xbf16, #tpu.memory_space<vmem>>, %arg5: memref<1x32xf32, #tpu.memory_space<vmem>>, %arg6: memref<512x48xbf16, #tpu.memory_space<vmem>>) attributes {dimension_semantics = [#tpu.dimension_semantics<parallel>], iteration_bounds = array<i64: 1>, scalar_prefetch = 0 : i64, scratch_operands = 0 : i64, tpu.core_type = #tpu.core_type<tc>, window_params = [{transform_indices = @transform_0, window_bounds = array<i64: 512, 27>}, {pipeline_mode = #tpu.pipeline_mode<synchronous>, transform_indices = @transform_1, window_bounds = array<i64: 27, 16>}, {pipeline_mode = #tpu.pipeline_mode<synchronous>, transform_indices = @transform_2, window_bounds = array<i64: 1, 16>}, {pipeline_mode = #tpu.pipeline_mode<synchronous>, transform_indices = @transform_3, window_bounds = array<i64: 16, 32>}, {pipeline_mode = #tpu.pipeline_mode<synchronous>, transform_indices = @transform_4, window_bounds = array<i64: 1, 32>}, {transform_indices = @transform_5, window_bounds = array<i64: 512, 48>}]} {
    %c0 = arith.constant 0 : index
    %c0_0 = arith.constant 0 : index
    %0 = vector.load %arg1[%c0, %c0_0] : memref<512x27xbf16, #tpu.memory_space<vmem>>, vector<512x27xbf16>
    %c0_1 = arith.constant 0 : index
    %c0_2 = arith.constant 0 : index
    %1 = vector.load %arg2[%c0_1, %c0_2] : memref<27x16xbf16, #tpu.memory_space<vmem>>, vector<27x16xbf16>
    %cst = arith.constant dense<0.000000e+00> : vector<512x16xf32>
    %2 = tpu.matmul %0, %1, %cst {dimension_numbers = #tpu.dot_dimension_numbers<[1], [0], [0], [1], [0, 0, 1, 1], [], []>} : vector<512x27xbf16>, vector<27x16xbf16>, vector<512x16xf32> -> vector<512x16xf32>
    %c0_3 = arith.constant 0 : index
    %c0_4 = arith.constant 0 : index
    %3 = vector.load %arg3[%c0_3, %c0_4] : memref<1x16xf32, #tpu.memory_space<vmem>>, vector<1x16xf32>
    %4 = vector.broadcast %3 : vector<1x16xf32> to vector<512x16xf32>
    %5 = arith.addf %2, %4 : vector<512x16xf32>
    %cst_5 = arith.constant 0.000000e+00 : f32
    %6 = vector.broadcast %cst_5 : f32 to vector<512x16xf32>
    %7 = arith.maximumf %5, %6 : vector<512x16xf32>
    %8 = arith.truncf %7 : vector<512x16xf32> to vector<512x16xbf16>
    %c0_6 = arith.constant 0 : index
    %c0_7 = arith.constant 0 : index
    %9 = vector.load %arg6[%c0_6, %c0_7] : memref<512x48xbf16, #tpu.memory_space<vmem>>, vector<512x16xbf16>
    tpu.vector_store %arg6[%c0_6, %c0_7], %8 {strides = array<i32>} : memref<512x48xbf16, #tpu.memory_space<vmem>>, vector<512x16xbf16>,
    %10 = arith.truncf %7 : vector<512x16xf32> to vector<512x16xbf16>
    %c0_8 = arith.constant 0 : index
    %c0_9 = arith.constant 0 : index
    %11 = vector.load %arg4[%c0_8, %c0_9] : memref<16x32xbf16, #tpu.memory_space<vmem>>, vector<16x32xbf16>
    %cst_10 = arith.constant dense<0.000000e+00> : vector<512x32xf32>
    %12 = tpu.matmul %10, %11, %cst_10 {dimension_numbers = #tpu.dot_dimension_numbers<[1], [0], [0], [1], [0, 0, 1, 1], [], []>} : vector<512x16xbf16>, vector<16x32xbf16>, vector<512x32xf32> -> vector<512x32xf32>
    %c0_11 = arith.constant 0 : index
    %c0_12 = arith.constant 0 : index
    %13 = vector.load %arg5[%c0_11, %c0_12] : memref<1x32xf32, #tpu.memory_space<vmem>>, vector<1x32xf32>
    %14 = vector.broadcast %13 : vector<1x32xf32> to vector<512x32xf32>
    %15 = arith.addf %12, %14 : vector<512x32xf32>
    %16 = arith.truncf %15 : vector<512x32xf32> to vector<512x32xbf16>
    %c0_13 = arith.constant 0 : index
    %c16 = arith.constant 16 : index
    %17 = vector.load %arg6[%c0_13, %c16] : memref<512x48xbf16, #tpu.memory_space<vmem>>, vector<512x32xbf16>
    tpu.vector_store %arg6[%c0_13, %c16], %16 {strides = array<i32>} : memref<512x48xbf16, #tpu.memory_space<vmem>>, vector<512x32xbf16>,
    return
  }
  func.func @transform_0(%arg0: i32) -> (i32, i32) {
    %c0_i32 = arith.constant 0 : i32
    %c0_i32_0 = arith.constant 0 : i32
    return %arg0, %c0_i32 : i32, i32
  }
  func.func @transform_1(%arg0: i32) -> (i32, i32) {
    %c0_i32 = arith.constant 0 : i32
    %c0_i32_0 = arith.constant 0 : i32
    %c0_i32_1 = arith.constant 0 : i32
    return %c0_i32, %c0_i32_0 : i32, i32
  }
  func.func @transform_2(%arg0: i32) -> (i32, i32) {
    %c0_i32 = arith.constant 0 : i32
    %c0_i32_0 = arith.constant 0 : i32
    %c0_i32_1 = arith.constant 0 : i32
    return %c0_i32, %c0_i32_0 : i32, i32
  }
  func.func @transform_3(%arg0: i32) -> (i32, i32) {
    %c0_i32 = arith.constant 0 : i32
    %c0_i32_0 = arith.constant 0 : i32
    %c0_i32_1 = arith.constant 0 : i32
    return %c0_i32, %c0_i32_0 : i32, i32
  }
  func.func @transform_4(%arg0: i32) -> (i32, i32) {
    %c0_i32 = arith.constant 0 : i32
    %c0_i32_0 = arith.constant 0 : i32
    %c0_i32_1 = arith.constant 0 : i32
    return %c0_i32, %c0_i32_0 : i32, i32
  }
  func.func @transform_5(%arg0: i32) -> (i32, i32) {
    %c0_i32 = arith.constant 0 : i32
    %c0_i32_0 = arith.constant 0 : i32
    return %arg0, %c0_i32 : i32, i32
  }
}

module attributes {stable_mosaic.version = 11 : i64} {
  func.func @_mm_chain_kernel(%arg0: i32, %arg1: memref<128x144xbf16, #tpu.memory_space<vmem>>, %arg2: memref<144x32xbf16, #tpu.memory_space<vmem>>, %arg3: memref<1x32xf32, #tpu.memory_space<vmem>>, %arg4: memref<32x32xbf16, #tpu.memory_space<vmem>>, %arg5: memref<1x32xf32, #tpu.memory_space<vmem>>, %arg6: memref<128x32xbf16, #tpu.memory_space<vmem>>) attributes {dimension_semantics = [#tpu.dimension_semantics<parallel>], iteration_bounds = array<i64: 1>, scalar_prefetch = 0 : i64, scratch_operands = 0 : i64, tpu.core_type = #tpu.core_type<tc>, window_params = [{transform_indices = @transform_0, window_bounds = array<i64: 128, 144>}, {pipeline_mode = #tpu.pipeline_mode<synchronous>, transform_indices = @transform_1, window_bounds = array<i64: 144, 32>}, {pipeline_mode = #tpu.pipeline_mode<synchronous>, transform_indices = @transform_2, window_bounds = array<i64: 1, 32>}, {pipeline_mode = #tpu.pipeline_mode<synchronous>, transform_indices = @transform_3, window_bounds = array<i64: 32, 32>}, {pipeline_mode = #tpu.pipeline_mode<synchronous>, transform_indices = @transform_4, window_bounds = array<i64: 1, 32>}, {transform_indices = @transform_5, window_bounds = array<i64: 128, 32>}]} {
    %c0 = arith.constant 0 : index
    %c0_0 = arith.constant 0 : index
    %0 = vector.load %arg1[%c0, %c0_0] : memref<128x144xbf16, #tpu.memory_space<vmem>>, vector<128x144xbf16>
    %c0_1 = arith.constant 0 : index
    %c0_2 = arith.constant 0 : index
    %1 = vector.load %arg2[%c0_1, %c0_2] : memref<144x32xbf16, #tpu.memory_space<vmem>>, vector<144x32xbf16>
    %cst = arith.constant dense<0.000000e+00> : vector<128x32xf32>
    %2 = tpu.matmul %0, %1, %cst {dimension_numbers = #tpu.dot_dimension_numbers<[1], [0], [0], [1], [0, 0, 1, 1], [], []>} : vector<128x144xbf16>, vector<144x32xbf16>, vector<128x32xf32> -> vector<128x32xf32>
    %c0_3 = arith.constant 0 : index
    %c0_4 = arith.constant 0 : index
    %3 = vector.load %arg3[%c0_3, %c0_4] : memref<1x32xf32, #tpu.memory_space<vmem>>, vector<1x32xf32>
    %4 = vector.broadcast %3 : vector<1x32xf32> to vector<128x32xf32>
    %5 = arith.addf %2, %4 : vector<128x32xf32>
    %cst_5 = arith.constant 0.000000e+00 : f32
    %6 = vector.broadcast %cst_5 : f32 to vector<128x32xf32>
    %7 = arith.maximumf %5, %6 : vector<128x32xf32>
    %8 = arith.truncf %7 : vector<128x32xf32> to vector<128x32xbf16>
    %c0_6 = arith.constant 0 : index
    %c0_7 = arith.constant 0 : index
    %9 = vector.load %arg4[%c0_6, %c0_7] : memref<32x32xbf16, #tpu.memory_space<vmem>>, vector<32x32xbf16>
    %cst_8 = arith.constant dense<0.000000e+00> : vector<128x32xf32>
    %10 = tpu.matmul %8, %9, %cst_8 {dimension_numbers = #tpu.dot_dimension_numbers<[1], [0], [0], [1], [0, 0, 1, 1], [], []>} : vector<128x32xbf16>, vector<32x32xbf16>, vector<128x32xf32> -> vector<128x32xf32>
    %c0_9 = arith.constant 0 : index
    %c0_10 = arith.constant 0 : index
    %11 = vector.load %arg5[%c0_9, %c0_10] : memref<1x32xf32, #tpu.memory_space<vmem>>, vector<1x32xf32>
    %12 = vector.broadcast %11 : vector<1x32xf32> to vector<128x32xf32>
    %13 = arith.addf %10, %12 : vector<128x32xf32>
    %14 = arith.truncf %13 : vector<128x32xf32> to vector<128x32xbf16>
    %c0_11 = arith.constant 0 : index
    %c0_12 = arith.constant 0 : index
    %15 = vector.load %arg6[%c0_11, %c0_12] : memref<128x32xbf16, #tpu.memory_space<vmem>>, vector<128x32xbf16>
    tpu.vector_store %arg6[%c0_11, %c0_12], %14 {strides = array<i32>} : memref<128x32xbf16, #tpu.memory_space<vmem>>, vector<128x32xbf16>,
    return
  }
  func.func @transform_0(%arg0: i32) -> (i32, i32) {
    %c0_i32 = arith.constant 0 : i32
    %c0_i32_0 = arith.constant 0 : i32
    return %arg0, %c0_i32 : i32, i32
  }
  func.func @transform_1(%arg0: i32) -> (i32, i32) {
    %c0_i32 = arith.constant 0 : i32
    %c0_i32_0 = arith.constant 0 : i32
    %c0_i32_1 = arith.constant 0 : i32
    return %c0_i32, %c0_i32_0 : i32, i32
  }
  func.func @transform_2(%arg0: i32) -> (i32, i32) {
    %c0_i32 = arith.constant 0 : i32
    %c0_i32_0 = arith.constant 0 : i32
    %c0_i32_1 = arith.constant 0 : i32
    return %c0_i32, %c0_i32_0 : i32, i32
  }
  func.func @transform_3(%arg0: i32) -> (i32, i32) {
    %c0_i32 = arith.constant 0 : i32
    %c0_i32_0 = arith.constant 0 : i32
    %c0_i32_1 = arith.constant 0 : i32
    return %c0_i32, %c0_i32_0 : i32, i32
  }
  func.func @transform_4(%arg0: i32) -> (i32, i32) {
    %c0_i32 = arith.constant 0 : i32
    %c0_i32_0 = arith.constant 0 : i32
    %c0_i32_1 = arith.constant 0 : i32
    return %c0_i32, %c0_i32_0 : i32, i32
  }
  func.func @transform_5(%arg0: i32) -> (i32, i32) {
    %c0_i32 = arith.constant 0 : i32
    %c0_i32_0 = arith.constant 0 : i32
    return %arg0, %c0_i32 : i32, i32
  }
}

module attributes {stable_mosaic.version = 11 : i64} {
  func.func @_mm_chain_kernel(%arg0: i32, %arg1: memref<512x288xbf16, #tpu.memory_space<vmem>>, %arg2: memref<288x12xbf16, #tpu.memory_space<vmem>>, %arg3: memref<1x12xf32, #tpu.memory_space<vmem>>, %arg4: memref<512x12xf32, #tpu.memory_space<vmem>>) attributes {dimension_semantics = [#tpu.dimension_semantics<parallel>], iteration_bounds = array<i64: 1>, scalar_prefetch = 0 : i64, scratch_operands = 0 : i64, tpu.core_type = #tpu.core_type<tc>, window_params = [{transform_indices = @transform_0, window_bounds = array<i64: 512, 288>}, {pipeline_mode = #tpu.pipeline_mode<synchronous>, transform_indices = @transform_1, window_bounds = array<i64: 288, 12>}, {pipeline_mode = #tpu.pipeline_mode<synchronous>, transform_indices = @transform_2, window_bounds = array<i64: 1, 12>}, {transform_indices = @transform_3, window_bounds = array<i64: 512, 12>}]} {
    %c0 = arith.constant 0 : index
    %c0_0 = arith.constant 0 : index
    %0 = vector.load %arg1[%c0, %c0_0] : memref<512x288xbf16, #tpu.memory_space<vmem>>, vector<512x288xbf16>
    %c0_1 = arith.constant 0 : index
    %c0_2 = arith.constant 0 : index
    %1 = vector.load %arg2[%c0_1, %c0_2] : memref<288x12xbf16, #tpu.memory_space<vmem>>, vector<288x12xbf16>
    %cst = arith.constant dense<0.000000e+00> : vector<512x12xf32>
    %2 = tpu.matmul %0, %1, %cst {dimension_numbers = #tpu.dot_dimension_numbers<[1], [0], [0], [1], [0, 0, 1, 1], [], []>} : vector<512x288xbf16>, vector<288x12xbf16>, vector<512x12xf32> -> vector<512x12xf32>
    %c0_3 = arith.constant 0 : index
    %c0_4 = arith.constant 0 : index
    %3 = vector.load %arg3[%c0_3, %c0_4] : memref<1x12xf32, #tpu.memory_space<vmem>>, vector<1x12xf32>
    %4 = vector.broadcast %3 : vector<1x12xf32> to vector<512x12xf32>
    %5 = arith.addf %2, %4 : vector<512x12xf32>
    %c0_5 = arith.constant 0 : index
    %c0_6 = arith.constant 0 : index
    %6 = vector.load %arg4[%c0_5, %c0_6] : memref<512x12xf32, #tpu.memory_space<vmem>>, vector<512x12xf32>
    tpu.vector_store %arg4[%c0_5, %c0_6], %5 {strides = array<i32>} : memref<512x12xf32, #tpu.memory_space<vmem>>, vector<512x12xf32>,
    return
  }
  func.func @transform_0(%arg0: i32) -> (i32, i32) {
    %c0_i32 = arith.constant 0 : i32
    %c0_i32_0 = arith.constant 0 : i32
    return %arg0, %c0_i32 : i32, i32
  }
  func.func @transform_1(%arg0: i32) -> (i32, i32) {
    %c0_i32 = arith.constant 0 : i32
    %c0_i32_0 = arith.constant 0 : i32
    %c0_i32_1 = arith.constant 0 : i32
    return %c0_i32, %c0_i32_0 : i32, i32
  }
  func.func @transform_2(%arg0: i32) -> (i32, i32) {
    %c0_i32 = arith.constant 0 : i32
    %c0_i32_0 = arith.constant 0 : i32
    %c0_i32_1 = arith.constant 0 : i32
    return %c0_i32, %c0_i32_0 : i32, i32
  }
  func.func @transform_3(%arg0: i32) -> (i32, i32) {
    %c0_i32 = arith.constant 0 : i32
    %c0_i32_0 = arith.constant 0 : i32
    return %arg0, %c0_i32 : i32, i32
  }
}

</mosaic_0001>

<llo_original>
// kernel: smoothtext_forward.3
$region0: #{smoothtext_forward.3}
  #allocation0 [shape = 'u32[]', space=smem, size = 0x4, offset = 0x4, fixed_abs, tag = 'smem constant byte address 0x4 - core index']
  #allocation1 [shape = 'u32[144,128]{1,0:T(1,128)}', space=vmem, size = 0x12000, scoped, tag = 'internal scratch']
  %s0 = inlined_call_operand.vmem [shape: bf16[512,27], index: 0, kind: input, shape index: {}]
  %s1 = inlined_call_operand.vmem [shape: bf16[27,16], index: 1, kind: input, shape index: {}]
  %s2 = inlined_call_operand.vmem [shape: f32[1,16], index: 2, kind: input, shape index: {}]
  %s3 = inlined_call_operand.vmem [shape: bf16[16,32], index: 3, kind: input, shape index: {}]
  %s4 = inlined_call_operand.vmem [shape: f32[1,32], index: 4, kind: input, shape index: {}]
  %s5 = inlined_call_operand.vmem [shape: bf16[512,48], index: 5, kind: output, shape index: {}]
  %s6 = sld [smem:[#allocation0]]
  $region30: #{smoothtext_forward.3} parent=0
    _
  %s8 = ssub.s32 1, %s6
  %s9 = scalar_select 0, %s8, %s6
  // Predicated region
  $region2: #{smoothtext_forward.3} parent=0 // pred_check
    _
  $region3: #{smoothtext_forward.3} parent=0 // pred_check_branch
    %11 = sbr.rel (0) target = $region5
  $region4: #{smoothtext_forward.3} parent=0 // pred_region
    _
  $region5: #{smoothtext_forward.3} parent=0 // pred_fallthru
    _
  // Predicated region
  $region6: #{smoothtext_forward.3} parent=0 // pred_check
    _
  $region7: #{smoothtext_forward.3} parent=0 // pred_check_branch
    %13 = sbr.rel (0) target = $region9
  $region8: #{smoothtext_forward.3} parent=0 // pred_region
    _
  $region9: #{smoothtext_forward.3} parent=0 // pred_fallthru
    _
  // Predicated region
  $region10: #{smoothtext_forward.3} parent=0 // pred_check
    _
  $region11: #{smoothtext_forward.3} parent=0 // pred_check_branch
    %15 = sbr.rel (0) target = $region13
  $region12: #{smoothtext_forward.3} parent=0 // pred_region
    _
  $region13: #{smoothtext_forward.3} parent=0 // pred_fallthru
    _
  // Predicated region
  $region14: #{smoothtext_forward.3} parent=0 // pred_check
    _
  $region15: #{smoothtext_forward.3} parent=0 // pred_check_branch
    %17 = sbr.rel (0) target = $region17
  $region16: #{smoothtext_forward.3} parent=0 // pred_region
    _
  $region17: #{smoothtext_forward.3} parent=0 // pred_fallthru
    _
  // Predicated region
  $region18: #{smoothtext_forward.3} parent=0 // pred_check
    _
  $region19: #{smoothtext_forward.3} parent=0 // pred_check_branch
    %19 = sbr.rel (0) target = $region21
  $region20: #{smoothtext_forward.3} parent=0 // pred_region
    _
  $region21: #{smoothtext_forward.3} parent=0 // pred_fallthru
    _
  %v21 = vld [vmem:[%s0] sm:$0xf]
  %v22 = vld [vmem:[%s0 + $0x4] sm:$0xf]
  %v23 = vld [vmem:[%s0 + $0x8] sm:$0xf]
  %v24 = vld [vmem:[%s0 + $0xc] sm:$0xf]
  %v25 = vld [vmem:[%s0 + $0x10] sm:$0xf]
  %v26 = vld [vmem:[%s0 + $0x14] sm:$0xf]
  %v27 = vld [vmem:[%s0 + $0x18] sm:$0xf]
  %v28 = vld [vmem:[%s0 + $0x1c] sm:$0xf]
  %v29 = vld [vmem:[%s0 + $0x20] sm:$0xf]
  %v30 = vld [vmem:[%s0 + $0x24] sm:$0xf]
  %v31 = vld [vmem:[%s0 + $0x28] sm:$0xf]
  %v32 = vld [vmem:[%s0 + $0x2c] sm:$0xf]
  %v33 = vld [vmem:[%s0 + $0x30] sm:$0xf]
  %v34 = vld [vmem:[%s0 + $0x34] sm:$0xf]
  %v35 = vld [vmem:[%s0 + $0x38] sm:$0xf]
  %v36 = vld [vmem:[%s0 + $0x3c] sm:$0xf]
  %v37 = vld [vmem:[%s0 + $0x40] sm:$0xf]
  %v38 = vld [vmem:[%s0 + $0x44] sm:$0xf]
  %v39 = vld [vmem:[%s0 + $0x48] sm:$0xf]
  %v40 = vld [vmem:[%s0 + $0x4c] sm:$0xf]
  %v41 = vld [vmem:[%s0 + $0x50] sm:$0xf]
  %v42 = vld [vmem:[%s0 + $0x54] sm:$0xf]
  %v43 = vld [vmem:[%s0 + $0x58] sm:$0xf]
  %v44 = vld [vmem:[%s0 + $0x5c] sm:$0xf]
  %v45 = vld [vmem:[%s0 + $0x60] sm:$0xf]
  %v46 = vld [vmem:[%s0 + $0x64] sm:$0xf]
  %v47 = vld [vmem:[%s0 + $0x68] sm:$0xf]
  %v48 = vld [vmem:[%s0 + $0x6c] sm:$0xf]
  %v49 = vld [vmem:[%s0 + $0x70] sm:$0xf]
  %v50 = vld [vmem:[%s0 + $0x74] sm:$0xf]
  %v51 = vld [vmem:[%s0 + $0x78] sm:$0xf]
  %v52 = vld [vmem:[%s0 + $0x7c] sm:$0xf]
  %v53 = vld [vmem:[%s0 + $0x80] sm:$0xf]
  %v54 = vld [vmem:[%s0 + $0x84] sm:$0xf]
  %v55 = vld [vmem:[%s0 + $0x88] sm:$0xf]
  %v56 = vld [vmem:[%s0 + $0x8c] sm:$0xf]
  %v57 = vld [vmem:[%s0 + $0x90] sm:$0xf]
  %v58 = vld [vmem:[%s0 + $0x94] sm:$0xf]
  %v59 = vld [vmem:[%s0 + $0x98] sm:$0xf]
  %v60 = vld [vmem:[%s0 + $0x9c] sm:$0xf]
  %v61 = vld [vmem:[%s0 + $0xa0] sm:$0xf]
  %v62 = vld [vmem:[%s0 + $0xa4] sm:$0xf]
  %v63 = vld [vmem:[%s0 + $0xa8] sm:$0xf]
  %v64 = vld [vmem:[%s0 + $0xac] sm:$0xf]
  %v65 = vld [vmem:[%s0 + $0xb0] sm:$0xf]
  %v66 = vld [vmem:[%s0 + $0xb4] sm:$0xf]
  %v67 = vld [vmem:[%s0 + $0xb8] sm:$0xf]
  %v68 = vld [vmem:[%s0 + $0xbc] sm:$0xf]
  %v69 = vld [vmem:[%s0 + $0xc0] sm:$0xf]
  %v70 = vld [vmem:[%s0 + $0xc4] sm:$0xf]
  %v71 = vld [vmem:[%s0 + $0xc8] sm:$0xf]
  %v72 = vld [vmem:[%s0 + $0xcc] sm:$0xf]
  %v73 = vld [vmem:[%s0 + $0xd0] sm:$0xf]
  %v74 = vld [vmem:[%s0 + $0xd4] sm:$0xf]
  %v75 = vld [vmem:[%s0 + $0xd8] sm:$0xf]
  %v76 = vld [vmem:[%s0 + $0xdc] sm:$0xf]
  %v77 = vld [vmem:[%s0 + $0xe0] sm:$0xf]
  %v78 = vld [vmem:[%s0 + $0xe4] sm:$0xf]
  %v79 = vld [vmem:[%s0 + $0xe8] sm:$0xf]
  %v80 = vld [vmem:[%s0 + $0xec] sm:$0xf]
  %v81 = vld [vmem:[%s0 + $0xf0] sm:$0xf]
  %v82 = vld [vmem:[%s0 + $0xf4] sm:$0xf]
  %v83 = vld [vmem:[%s0 + $0xf8] sm:$0xf]
  %v84 = vld [vmem:[%s0 + $0xfc] sm:$0xf]
  %v85 = vld [vmem:[%s1] sm:$0xf]
  %v86 = vld [vmem:[%s1 + $0x4] sm:$0xf]
  %v87 = vld [vmem:[%s1 + $0x8] sm:$0xf]
  %v88 = vld [vmem:[%s1 + $0xc] sm:$0x3]
  %v89 = vld [vmem:[%s2] sm:$0x1]
  %v91 = vlaneseq
  %v92 = vshrl.u32 %v91, 7
  %v93 = vsub.s32 0, %v92
  %v94 = vrot.slane %v89, %v93
  %v160 = vunpack.c.l.b16 %v21
  %v161 = vunpack.c.l.b16 %v22
  %v162 = vunpack.c.l.b16 %v23
  %v163 = vunpack.c.l.b16 %v24
  %v164 = vunpack.c.l.b16 %v25
  %v165 = vunpack.c.l.b16 %v26
  %v166 = vunpack.c.l.b16 %v27
  %v167 = vunpack.c.l.b16 %v28
  %v168 = vunpack.c.l.b16 %v29
  %v169 = vunpack.c.l.b16 %v30
  %v170 = vunpack.c.l.b16 %v31
  %v171 = vunpack.c.l.b16 %v32
  %v172 = vunpack.c.l.b16 %v33
  %v173 = vunpack.c.l.b16 %v34
  %v174 = vunpack.c.l.b16 %v35
  %v175 = vunpack.c.l.b16 %v36
  %v176 = vunpack.c.l.b16 %v37
  %v177 = vunpack.c.l.b16 %v38
  %v178 = vunpack.c.l.b16 %v39
  %v179 = vunpack.c.l.b16 %v40
  %v180 = vunpack.c.l.b16 %v41
  %v181 = vunpack.c.l.b16 %v42
  %v182 = vunpack.c.l.b16 %v43
  %v183 = vunpack.c.l.b16 %v44
  %v184 = vunpack.c.l.b16 %v45
  %v185 = vunpack.c.l.b16 %v46
  %v186 = vunpack.c.l.b16 %v47
  %v187 = vunpack.c.l.b16 %v48
  %v188 = vunpack.c.l.b16 %v49
  %v189 = vunpack.c.l.b16 %v50
  %v190 = vunpack.c.l.b16 %v51
  %v191 = vunpack.c.l.b16 %v52
  %v192 = vunpack.c.l.b16 %v53
  %v193 = vunpack.c.l.b16 %v54
  %v194 = vunpack.c.l.b16 %v55
  %v195 = vunpack.c.l.b16 %v56
  %v196 = vunpack.c.l.b16 %v57
  %v197 = vunpack.c.l.b16 %v58
  %v198 = vunpack.c.l.b16 %v59
  %v199 = vunpack.c.l.b16 %v60
  %v200 = vunpack.c.l.b16 %v61
  %v201 = vunpack.c.l.b16 %v62
  %v202 = vunpack.c.l.b16 %v63
  %v203 = vunpack.c.l.b16 %v64
  %v204 = vunpack.c.l.b16 %v65
  %v205 = vunpack.c.l.b16 %v66
  %v206 = vunpack.c.l.b16 %v67
  %v207 = vunpack.c.l.b16 %v68
  %v208 = vunpack.c.l.b16 %v69
  %v209 = vunpack.c.l.b16 %v70
  %v210 = vunpack.c.l.b16 %v71
  %v211 = vunpack.c.l.b16 %v72
  %v212 = vunpack.c.l.b16 %v73
  %v213 = vunpack.c.l.b16 %v74
  %v214 = vunpack.c.l.b16 %v75
  %v215 = vunpack.c.l.b16 %v76
  %v216 = vunpack.c.l.b16 %v77
  %v217 = vunpack.c.l.b16 %v78
  %v218 = vunpack.c.l.b16 %v79
  %v219 = vunpack.c.l.b16 %v80
  %v220 = vunpack.c.l.b16 %v81
  %v221 = vunpack.c.l.b16 %v82
  %v222 = vunpack.c.l.b16 %v83
  %v223 = vunpack.c.l.b16 %v84
  %v224 = vpack.c.b16 %v161, %v160
  %v225 = vpack.c.b16 %v163, %v162
  %v226 = vpack.c.b16 %v165, %v164
  %v227 = vpack.c.b16 %v167, %v166
  %v228 = vpack.c.b16 %v169, %v168
  %v229 = vpack.c.b16 %v171, %v170
  %v230 = vpack.c.b16 %v173, %v172
  %v231 = vpack.c.b16 %v175, %v174
  %v232 = vpack.c.b16 %v177, %v176
  %v233 = vpack.c.b16 %v179, %v178
  %v234 = vpack.c.b16 %v181, %v180
  %v235 = vpack.c.b16 %v183, %v182
  %v236 = vpack.c.b16 %v185, %v184
  %v237 = vpack.c.b16 %v187, %v186
  %v238 = vpack.c.b16 %v189, %v188
  %v239 = vpack.c.b16 %v191, %v190
  %v240 = vpack.c.b16 %v193, %v192
  %v241 = vpack.c.b16 %v195, %v194
  %v242 = vpack.c.b16 %v197, %v196
  %v243 = vpack.c.b16 %v199, %v198
  %v244 = vpack.c.b16 %v201, %v200
  %v245 = vpack.c.b16 %v203, %v202
  %v246 = vpack.c.b16 %v205, %v204
  %v247 = vpack.c.b16 %v207, %v206
  %v248 = vpack.c.b16 %v209, %v208
  %v249 = vpack.c.b16 %v211, %v210
  %v250 = vpack.c.b16 %v213, %v212
  %v251 = vpack.c.b16 %v215, %v214
  %v252 = vpack.c.b16 %v217, %v216
  %v253 = vpack.c.b16 %v219, %v218
  %v254 = vpack.c.b16 %v221, %v220
  %v255 = vpack.c.b16 %v223, %v222
  %v260 = vunpack.c.l.b16 %v85
  %v261 = vunpack.c.l.b16 %v86
  %v262 = vunpack.c.l.b16 %v87
  %v263 = vunpack.c.l.b16 %v88
  %v264 = vpack.c.b16 %v261, %v260
  %v265 = vpack.c.b16 %v263, %v262
  %vm267 = vcmask 220160
  %v269 = vsel %vm267, %v224, 0
  %v272 = vsel %vm267, %v225, 0
  %v275 = vsel %vm267, %v226, 0
  %v278 = vsel %vm267, %v227, 0
  %v281 = vsel %vm267, %v228, 0
  %v284 = vsel %vm267, %v229, 0
  %v287 = vsel %vm267, %v230, 0
  %v290 = vsel %vm267, %v231, 0
  %v293 = vsel %vm267, %v232, 0
  %v296 = vsel %vm267, %v233, 0
  %v299 = vsel %vm267, %v234, 0
  %v302 = vsel %vm267, %v235, 0
  %v305 = vsel %vm267, %v236, 0
  %v308 = vsel %vm267, %v237, 0
  %v311 = vsel %vm267, %v238, 0
  %v314 = vsel %vm267, %v239, 0
  %v317 = vsel %vm267, %v240, 0
  %v320 = vsel %vm267, %v241, 0
  %v323 = vsel %vm267, %v242, 0
  %v326 = vsel %vm267, %v243, 0
  %v329 = vsel %vm267, %v244, 0
  %v332 = vsel %vm267, %v245, 0
  %v335 = vsel %vm267, %v246, 0
  %v338 = vsel %vm267, %v247, 0
  %v341 = vsel %vm267, %v248, 0
  %v344 = vsel %vm267, %v249, 0
  %v347 = vsel %vm267, %v250, 0
  %v350 = vsel %vm267, %v251, 0
  %v353 = vsel %vm267, %v252, 0
  %v356 = vsel %vm267, %v253, 0
  %v359 = vsel %vm267, %v254, 0
  %v362 = vsel %vm267, %v255, 0
  %vm364 = vcmask 1044480
  %vm365 = vcmask 1045504
  %v366 = vsel %vm364, 4294967295, 65535
  %v367 = vsel %vm365, %v366, 0
  %v369 = vand.u32 %v265, %v367
  %371 = vmatprep.subr.bf16.mxu0 0
  %372 = vmatpush1.bf16.msra.mxu0 0
  %373 = vmatprep.subr.bf16.mxu0 0
  %374 = vmatpush1.bf16.msra.mxu0 0
  %375 = vmatprep.subr.bf16.mxu0 0
  %376 = vmatpush1.bf16.msra.mxu0 0
  %377 = vmatprep.subr.bf16.mxu0 0
  %378 = vmatpush1.bf16.msra.mxu0 0
  %379 = vmatprep.subr.bf16.mxu0 0
  %380 = vmatpush1.bf16.msra.mxu0 0
  %381 = vmatprep.subr.bf16.mxu0 0
  %382 = vmatpush1.bf16.msra.mxu0 0
  %383 = vmatprep.subr.bf16.mxu0 0
  %384 = vmatpush1.bf16.msra.mxu0 %v369
  %385 = vmatprep.subr.bf16.mxu0 0
  %386 = vmatpush1.bf16.msra.mxu0 %v264
  %387 = vmatprep.subr.bf16.mxu0 0
  %388 = vmatpush2.bf16.msra.mxu0 0
  %389 = vmatprep.subr.bf16.mxu0 0
  %390 = vmatpush2.bf16.msra.mxu0 0
  %391 = vmatprep.subr.bf16.mxu0 0
  %392 = vmatpush2.bf16.msra.mxu0 0
  %393 = vmatprep.subr.bf16.mxu0 0
  %394 = vmatpush2.bf16.msra.mxu0 0
  %395 = vmatprep.subr.bf16.mxu0 0
  %396 = vmatpush2.bf16.msra.mxu0 0
  %397 = vmatprep.subr.bf16.mxu0 0
  %398 = vmatpush2.bf16.msra.mxu0 0
  %399 = vmatprep.subr.bf16.mxu0 0
  %400 = vmatpush2.bf16.msra.mxu0 0
  %401 = vmatprep.subr.bf16.mxu0 0
  %402 = vmatpush2.bf16.msra.mxu0 0
  %403 = vmatprep.mubr.bf16.mxu0 0
  %404 = vmatmul.mubr.bf16.gmra.mxu0 %v269
  %v405 = vpop.f32.mrf.mxu0
  %v406 = vadd.f32 %v94, %v405
  %v407 = vpop.f32.mrf.mxu0
  %v408 = vpop.f32.mrf.mxu0
  %v409 = vadd.f32 %v94, %v408
  %v410 = vpop.f32.mrf.mxu0
  %411 = vmatprep.mubr.bf16.mxu0 0
  %412 = vmatmul.mubr.bf16.gmra.mxu0 %v272
  %v413 = vpop.f32.mrf.mxu0
  %v414 = vadd.f32 %v94, %v413
  %v415 = vpop.f32.mrf.mxu0
  %v416 = vpop.f32.mrf.mxu0
  %v417 = vadd.f32 %v94, %v416
  %v418 = vpop.f32.mrf.mxu0
  %419 = vmatprep.mubr.bf16.mxu0 0
  %420 = vmatmul.mubr.bf16.gmra.mxu0 %v275
  %v421 = vpop.f32.mrf.mxu0
  %v422 = vadd.f32 %v94, %v421
  %v423 = vpop.f32.mrf.mxu0
  %v424 = vpop.f32.mrf.mxu0
  %v425 = vadd.f32 %v94, %v424
  %v426 = vpop.f32.mrf.mxu0
  %427 = vmatprep.mubr.bf16.mxu0 0
  %428 = vmatmul.mubr.bf16.gmra.mxu0 %v278
  %v429 = vpop.f32.mrf.mxu0
  %v430 = vadd.f32 %v94, %v429
  %v431 = vpop.f32.mrf.mxu0
  %v432 = vpop.f32.mrf.mxu0
  %v433 = vadd.f32 %v94, %v432
  %v434 = vpop.f32.mrf.mxu0
  %435 = vmatprep.mubr.bf16.mxu0 0
  %436 = vmatmul.mubr.bf16.gmra.mxu0 %v281
  %v437 = vpop.f32.mrf.mxu0
  %v438 = vadd.f32 %v94, %v437
  %v439 = vpop.f32.mrf.mxu0
  %v440 = vpop.f32.mrf.mxu0
  %v441 = vadd.f32 %v94, %v440
  %v442 = vpop.f32.mrf.mxu0
  %443 = vmatprep.mubr.bf16.mxu0 0
  %444 = vmatmul.mubr.bf16.gmra.mxu0 %v284
  %v445 = vpop.f32.mrf.mxu0
  %v446 = vadd.f32 %v94, %v445
  %v447 = vpop.f32.mrf.mxu0
  %v448 = vpop.f32.mrf.mxu0
  %v449 = vadd.f32 %v94, %v448
  %v450 = vpop.f32.mrf.mxu0
  %451 = vmatprep.mubr.bf16.mxu0 0
  %452 = vmatmul.mubr.bf16.gmra.mxu0 %v287
  %v453 = vpop.f32.mrf.mxu0
  %v454 = vadd.f32 %v94, %v453
  %v455 = vpop.f32.mrf.mxu0
  %v456 = vpop.f32.mrf.mxu0
  %v457 = vadd.f32 %v94, %v456
  %v458 = vpop.f32.mrf.mxu0
  %459 = vmatprep.mubr.bf16.mxu0 0
  %460 = vmatmul.mubr.bf16.gmra.mxu0 %v290
  %v461 = vpop.f32.mrf.mxu0
  %v462 = vadd.f32 %v94, %v461
  %v463 = vpop.f32.mrf.mxu0
  %v464 = vpop.f32.mrf.mxu0
  %v465 = vadd.f32 %v94, %v464
  %v466 = vpop.f32.mrf.mxu0
  %467 = vmatprep.mubr.bf16.mxu0 0
  %468 = vmatmul.mubr.bf16.gmra.mxu0 %v293
  %v469 = vpop.f32.mrf.mxu0
  %v470 = vadd.f32 %v94, %v469
  %v471 = vpop.f32.mrf.mxu0
  %v472 = vpop.f32.mrf.mxu0
  %v473 = vadd.f32 %v94, %v472
  %v474 = vpop.f32.mrf.mxu0
  %475 = vmatprep.mubr.bf16.mxu0 0
  %476 = vmatmul.mubr.bf16.gmra.mxu0 %v296
  %v477 = vpop.f32.mrf.mxu0
  %v478 = vadd.f32 %v94, %v477
  %v479 = vpop.f32.mrf.mxu0
  %v480 = vpop.f32.mrf.mxu0
  %v481 = vadd.f32 %v94, %v480
  %v482 = vpop.f32.mrf.mxu0
  %483 = vmatprep.mubr.bf16.mxu0 0
  %484 = vmatmul.mubr.bf16.gmra.mxu0 %v299
  %v485 = vpop.f32.mrf.mxu0
  %v486 = vadd.f32 %v94, %v485
  %v487 = vpop.f32.mrf.mxu0
  %v488 = vpop.f32.mrf.mxu0
  %v489 = vadd.f32 %v94, %v488
  %v490 = vpop.f32.mrf.mxu0
  %491 = vmatprep.mubr.bf16.mxu0 0
  %492 = vmatmul.mubr.bf16.gmra.mxu0 %v302
  %v493 = vpop.f32.mrf.mxu0
  %v494 = vadd.f32 %v94, %v493
  %v495 = vpop.f32.mrf.mxu0
  %v496 = vpop.f32.mrf.mxu0
  %v497 = vadd.f32 %v94, %v496
  %v498 = vpop.f32.mrf.mxu0
  %499 = vmatprep.mubr.bf16.mxu0 0
  %500 = vmatmul.mubr.bf16.gmra.mxu0 %v305
  %v501 = vpop.f32.mrf.mxu0
  %v502 = vadd.f32 %v94, %v501
  %v503 = vpop.f32.mrf.mxu0
  %v504 = vpop.f32.mrf.mxu0
  %v505 = vadd.f32 %v94, %v504
  %v506 = vpop.f32.mrf.mxu0
  %507 = vmatprep.mubr.bf16.mxu0 0
  %508 = vmatmul.mubr.bf16.gmra.mxu0 %v308
  %v509 = vpop.f32.mrf.mxu0
  %v510 = vadd.f32 %v94, %v509
  %v511 = vpop.f32.mrf.mxu0
  %v512 = vpop.f32.mrf.mxu0
  %v513 = vadd.f32 %v94, %v512
  %v514 = vpop.f32.mrf.mxu0
  %515 = vmatprep.mubr.bf16.mxu0 0
  %516 = vmatmul.mubr.bf16.gmra.mxu0 %v311
  %v517 = vpop.f32.mrf.mxu0
  %v518 = vadd.f32 %v94, %v517
  %v519 = vpop.f32.mrf.mxu0
  %v520 = vpop.f32.mrf.mxu0
  %v521 = vadd.f32 %v94, %v520
  %v522 = vpop.f32.mrf.mxu0
  %523 = vmatprep.mubr.bf16.mxu0 0
  %524 = vmatmul.mubr.bf16.gmra.mxu0 %v314
  %v525 = vpop.f32.mrf.mxu0
  %v526 = vadd.f32 %v94, %v525
  %v527 = vpop.f32.mrf.mxu0
  %v528 = vpop.f32.mrf.mxu0
  %v529 = vadd.f32 %v94, %v528
  %v530 = vpop.f32.mrf.mxu0
  %531 = vmatprep.mubr.bf16.mxu0 0
  %532 = vmatmul.mubr.bf16.gmra.mxu0 %v317
  %v533 = vpop.f32.mrf.mxu0
  %v534 = vadd.f32 %v94, %v533
  %v535 = vpop.f32.mrf.mxu0
  %v536 = vpop.f32.mrf.mxu0
  %v537 = vadd.f32 %v94, %v536
  %v538 = vpop.f32.mrf.mxu0
  %539 = vmatprep.mubr.bf16.mxu0 0
  %540 = vmatmul.mubr.bf16.gmra.mxu0 %v320
  %v541 = vpop.f32.mrf.mxu0
  %v542 = vadd.f32 %v94, %v541
  %v543 = vpop.f32.mrf.mxu0
  %v544 = vpop.f32.mrf.mxu0
  %v545 = vadd.f32 %v94, %v544
  %v546 = vpop.f32.mrf.mxu0
  %547 = vmatprep.mubr.bf16.mxu0 0
  %548 = vmatmul.mubr.bf16.gmra.mxu0 %v323
  %v549 = vpop.f32.mrf.mxu0
  %v550 = vadd.f32 %v94, %v549
  %v551 = vpop.f32.mrf.mxu0
  %v552 = vpop.f32.mrf.mxu0
  %v553 = vadd.f32 %v94, %v552
  %v554 = vpop.f32.mrf.mxu0
  %555 = vmatprep.mubr.bf16.mxu0 0
  %556 = vmatmul.mubr.bf16.gmra.mxu0 %v326
  %v557 = vpop.f32.mrf.mxu0
  %v558 = vadd.f32 %v94, %v557
  %v559 = vpop.f32.mrf.mxu0
  %v560 = vpop.f32.mrf.mxu0
  %v561 = vadd.f32 %v94, %v560
  %v562 = vpop.f32.mrf.mxu0
  %563 = vmatprep.mubr.bf16.mxu0 0
  %564 = vmatmul.mubr.bf16.gmra.mxu0 %v329
  %v565 = vpop.f32.mrf.mxu0
  %v566 = vadd.f32 %v94, %v565
  %v567 = vpop.f32.mrf.mxu0
  %v568 = vpop.f32.mrf.mxu0
  %v569 = vadd.f32 %v94, %v568
  %v570 = vpop.f32.mrf.mxu0
  %571 = vmatprep.mubr.bf16.mxu0 0
  %572 = vmatmul.mubr.bf16.gmra.mxu0 %v332
  %v573 = vpop.f32.mrf.mxu0
  %v574 = vadd.f32 %v94, %v573
  %v575 = vpop.f32.mrf.mxu0
  %v576 = vpop.f32.mrf.mxu0
  %v577 = vadd.f32 %v94, %v576
  %v578 = vpop.f32.mrf.mxu0
  %579 = vmatprep.mubr.bf16.mxu0 0
  %580 = vmatmul.mubr.bf16.gmra.mxu0 %v335
  %v581 = vpop.f32.mrf.mxu0
  %v582 = vadd.f32 %v94, %v581
  %v583 = vpop.f32.mrf.mxu0
  %v584 = vpop.f32.mrf.mxu0
  %v585 = vadd.f32 %v94, %v584
  %v586 = vpop.f32.mrf.mxu0
  %587 = vmatprep.mubr.bf16.mxu0 0
  %588 = vmatmul.mubr.bf16.gmra.mxu0 %v338
  %v589 = vpop.f32.mrf.mxu0
  %v590 = vadd.f32 %v94, %v589
  %v591 = vpop.f32.mrf.mxu0
  %v592 = vpop.f32.mrf.mxu0
  %v593 = vadd.f32 %v94, %v592
  %v594 = vpop.f32.mrf.mxu0
  %595 = vmatprep.mubr.bf16.mxu0 0
  %596 = vmatmul.mubr.bf16.gmra.mxu0 %v341
  %v597 = vpop.f32.mrf.mxu0
  %v598 = vadd.f32 %v94, %v597
  %v599 = vpop.f32.mrf.mxu0
  %v600 = vpop.f32.mrf.mxu0
  %v601 = vadd.f32 %v94, %v600
  %v602 = vpop.f32.mrf.mxu0
  %603 = vmatprep.mubr.bf16.mxu0 0
  %604 = vmatmul.mubr.bf16.gmra.mxu0 %v344
  %v605 = vpop.f32.mrf.mxu0
  %v606 = vadd.f32 %v94, %v605
  %v607 = vpop.f32.mrf.mxu0
  %v608 = vpop.f32.mrf.mxu0
  %v609 = vadd.f32 %v94, %v608
  %v610 = vpop.f32.mrf.mxu0
  %611 = vmatprep.mubr.bf16.mxu0 0
  %612 = vmatmul.mubr.bf16.gmra.mxu0 %v347
  %v613 = vpop.f32.mrf.mxu0
  %v614 = vadd.f32 %v94, %v613
  %v615 = vpop.f32.mrf.mxu0
  %v616 = vpop.f32.mrf.mxu0
  %v617 = vadd.f32 %v94, %v616
  %v618 = vpop.f32.mrf.mxu0
  %619 = vmatprep.mubr.bf16.mxu0 0
  %620 = vmatmul.mubr.bf16.gmra.mxu0 %v350
  %v621 = vpop.f32.mrf.mxu0
  %v622 = vadd.f32 %v94, %v621
  %v623 = vpop.f32.mrf.mxu0
  %v624 = vpop.f32.mrf.mxu0
  %v625 = vadd.f32 %v94, %v624
  %v626 = vpop.f32.mrf.mxu0
  %627 = vmatprep.mubr.bf16.mxu0 0
  %628 = vmatmul.mubr.bf16.gmra.mxu0 %v353
  %v629 = vpop.f32.mrf.mxu0
  %v630 = vadd.f32 %v94, %v629
  %v631 = vpop.f32.mrf.mxu0
  %v632 = vpop.f32.mrf.mxu0
  %v633 = vadd.f32 %v94, %v632
  %v634 = vpop.f32.mrf.mxu0
  %635 = vmatprep.mubr.bf16.mxu0 0
  %636 = vmatmul.mubr.bf16.gmra.mxu0 %v356
  %v637 = vpop.f32.mrf.mxu0
  %v638 = vadd.f32 %v94, %v637
  %v639 = vpop.f32.mrf.mxu0
  %v640 = vpop.f32.mrf.mxu0
  %v641 = vadd.f32 %v94, %v640
  %v642 = vpop.f32.mrf.mxu0
  %643 = vmatprep.mubr.bf16.mxu0 0
  %644 = vmatmul.mubr.bf16.gmra.mxu0 %v359
  %v645 = vpop.f32.mrf.mxu0
  %v646 = vadd.f32 %v94, %v645
  %v647 = vpop.f32.mrf.mxu0
  %v648 = vpop.f32.mrf.mxu0
  %v649 = vadd.f32 %v94, %v648
  %v650 = vpop.f32.mrf.mxu0
  %651 = vmatprep.mubr.bf16.mxu0 0
  %652 = vmatmul.mubr.bf16.gmra.mxu0 %v362
  %v653 = vpop.f32.mrf.mxu0
  %v654 = vadd.f32 %v94, %v653
  %v655 = vpop.f32.mrf.mxu0
  %v656 = vpop.f32.mrf.mxu0
  %v657 = vadd.f32 %v94, %v656
  %v658 = vpop.f32.mrf.mxu0
  %659 = vdwg.mxu0
  %v660 = vmax.f32 %v406, 0.0
  %v661 = vmax.f32 %v409, 0.0
  %v662 = vmax.f32 %v414, 0.0
  %v663 = vmax.f32 %v417, 0.0
  %v664 = vmax.f32 %v422, 0.0
  %v665 = vmax.f32 %v425, 0.0
  %v666 = vmax.f32 %v430, 0.0
  %v667 = vmax.f32 %v433, 0.0
  %v668 = vmax.f32 %v438, 0.0
  %v669 = vmax.f32 %v441, 0.0
  %v670 = vmax.f32 %v446, 0.0
  %v671 = vmax.f32 %v449, 0.0
  %v672 = vmax.f32 %v454, 0.0
  %v673 = vmax.f32 %v457, 0.0
  %v674 = vmax.f32 %v462, 0.0
  %v675 = vmax.f32 %v465, 0.0
  %v676 = vmax.f32 %v470, 0.0
  %v677 = vmax.f32 %v473, 0.0
  %v678 = vmax.f32 %v478, 0.0
  %v679 = vmax.f32 %v481, 0.0
  %v680 = vmax.f32 %v486, 0.0
  %v681 = vmax.f32 %v489, 0.0
  %v682 = vmax.f32 %v494, 0.0
  %v683 = vmax.f32 %v497, 0.0
  %v684 = vmax.f32 %v502, 0.0
  %v685 = vmax.f32 %v505, 0.0
  %v686 = vmax.f32 %v510, 0.0
  %v687 = vmax.f32 %v513, 0.0
  %v688 = vmax.f32 %v518, 0.0
  %v689 = vmax.f32 %v521, 0.0
  %v690 = vmax.f32 %v526, 0.0
  %v691 = vmax.f32 %v529, 0.0
  %v692 = vmax.f32 %v534, 0.0
  %v693 = vmax.f32 %v537, 0.0
  %v694 = vmax.f32 %v542, 0.0
  %v695 = vmax.f32 %v545, 0.0
  %v696 = vmax.f32 %v550, 0.0
  %v697 = vmax.f32 %v553, 0.0
  %v698 = vmax.f32 %v558, 0.0
  %v699 = vmax.f32 %v561, 0.0
  %v700 = vmax.f32 %v566, 0.0
  %v701 = vmax.f32 %v569, 0.0
  %v702 = vmax.f32 %v574, 0.0
  %v703 = vmax.f32 %v577, 0.0
  %v704 = vmax.f32 %v582, 0.0
  %v705 = vmax.f32 %v585, 0.0
  %v706 = vmax.f32 %v590, 0.0
  %v707 = vmax.f32 %v593, 0.0
  %v708 = vmax.f32 %v598, 0.0
  %v709 = vmax.f32 %v601, 0.0
  %v710 = vmax.f32 %v606, 0.0
  %v711 = vmax.f32 %v609, 0.0
  %v712 = vmax.f32 %v614, 0.0
  %v713 = vmax.f32 %v617, 0.0
  %v714 = vmax.f32 %v622, 0.0
  %v715 = vmax.f32 %v625, 0.0
  %v716 = vmax.f32 %v630, 0.0
  %v717 = vmax.f32 %v633, 0.0
  %v718 = vmax.f32 %v638, 0.0
  %v719 = vmax.f32 %v641, 0.0
  %v720 = vmax.f32 %v646, 0.0
  %v721 = vmax.f32 %v649, 0.0
  %v722 = vmax.f32 %v654, 0.0
  %v723 = vmax.f32 %v657, 0.0
  %v724 = vpack.c.bf16 %v661, %v660
  %v725 = vpack.c.bf16 %v663, %v662
  %v726 = vpack.c.bf16 %v665, %v664
  %v727 = vpack.c.bf16 %v667, %v666
  %v728 = vpack.c.bf16 %v669, %v668
  %v729 = vpack.c.bf16 %v671, %v670
  %v730 = vpack.c.bf16 %v673, %v672
  %v731 = vpack.c.bf16 %v675, %v674
  %v732 = vpack.c.bf16 %v677, %v676
  %v733 = vpack.c.bf16 %v679, %v678
  %v734 = vpack.c.bf16 %v681, %v680
  %v735 = vpack.c.bf16 %v683, %v682
  %v736 = vpack.c.bf16 %v685, %v684
  %v737 = vpack.c.bf16 %v687, %v686
  %v738 = vpack.c.bf16 %v689, %v688
  %v739 = vpack.c.bf16 %v691, %v690
  %v740 = vpack.c.bf16 %v693, %v692
  %v741 = vpack.c.bf16 %v695, %v694
  %v742 = vpack.c.bf16 %v697, %v696
  %v743 = vpack.c.bf16 %v699, %v698
  %v744 = vpack.c.bf16 %v701, %v700
  %v745 = vpack.c.bf16 %v703, %v702
  %v746 = vpack.c.bf16 %v705, %v704
  %v747 = vpack.c.bf16 %v707, %v706
  %v748 = vpack.c.bf16 %v709, %v708
  %v749 = vpack.c.bf16 %v711, %v710
  %v750 = vpack.c.bf16 %v713, %v712
  %v751 = vpack.c.bf16 %v715, %v714
  %v752 = vpack.c.bf16 %v717, %v716
  %v753 = vpack.c.bf16 %v719, %v718
  %v754 = vpack.c.bf16 %v721, %v720
  %v755 = vpack.c.bf16 %v723, %v722
  %v788 = vunpack.c.l.b16 %v724
  %v789 = vunpack.c.h.b16 %v724
  %v790 = vunpack.c.l.b16 %v725
  %v791 = vunpack.c.h.b16 %v725
  %v792 = vunpack.c.l.b16 %v726
  %v793 = vunpack.c.h.b16 %v726
  %v794 = vunpack.c.l.b16 %v727
  %v795 = vunpack.c.h.b16 %v727
  %v796 = vunpack.c.l.b16 %v728
  %v797 = vunpack.c.h.b16 %v728
  %v798 = vunpack.c.l.b16 %v729
  %v799 = vunpack.c.h.b16 %v729
  %v800 = vunpack.c.l.b16 %v730
  %v801 = vunpack.c.h.b16 %v730
  %v802 = vunpack.c.l.b16 %v731
  %v803 = vunpack.c.h.b16 %v731
  %v804 = vunpack.c.l.b16 %v732
  %v805 = vunpack.c.h.b16 %v732
  %v806 = vunpack.c.l.b16 %v733
  %v807 = vunpack.c.h.b16 %v733
  %v808 = vunpack.c.l.b16 %v734
  %v809 = vunpack.c.h.b16 %v734
  %v810 = vunpack.c.l.b16 %v735
  %v811 = vunpack.c.h.b16 %v735
  %v812 = vunpack.c.l.b16 %v736
  %v813 = vunpack.c.h.b16 %v736
  %v814 = vunpack.c.l.b16 %v737
  %v815 = vunpack.c.h.b16 %v737
  %v816 = vunpack.c.l.b16 %v738
  %v817 = vunpack.c.h.b16 %v738
  %v818 = vunpack.c.l.b16 %v739
  %v819 = vunpack.c.h.b16 %v739
  %v820 = vunpack.c.l.b16 %v740
  %v821 = vunpack.c.h.b16 %v740
  %v822 = vunpack.c.l.b16 %v741
  %v823 = vunpack.c.h.b16 %v741
  %v824 = vunpack.c.l.b16 %v742
  %v825 = vunpack.c.h.b16 %v742
  %v826 = vunpack.c.l.b16 %v743
  %v827 = vunpack.c.h.b16 %v743
  %v828 = vunpack.c.l.b16 %v744
  %v829 = vunpack.c.h.b16 %v744
  %v830 = vunpack.c.l.b16 %v745
  %v831 = vunpack.c.h.b16 %v745
  %v832 = vunpack.c.l.b16 %v746
  %v833 = vunpack.c.h.b16 %v746
  %v834 = vunpack.c.l.b16 %v747
  %v835 = vunpack.c.h.b16 %v747
  %v836 = vunpack.c.l.b16 %v748
  %v837 = vunpack.c.h.b16 %v748
  %v838 = vunpack.c.l.b16 %v749
  %v839 = vunpack.c.h.b16 %v749
  %v840 = vunpack.c.l.b16 %v750
  %v841 = vunpack.c.h.b16 %v750
  %v842 = vunpack.c.l.b16 %v751
  %v843 = vunpack.c.h.b16 %v751
  %v844 = vunpack.c.l.b16 %v752
  %v845 = vunpack.c.h.b16 %v752
  %v846 = vunpack.c.l.b16 %v753
  %v847 = vunpack.c.h.b16 %v753
  %v848 = vunpack.c.l.b16 %v754
  %v849 = vunpack.c.h.b16 %v754
  %v850 = vunpack.c.l.b16 %v755
  %v851 = vunpack.c.h.b16 %v755
  %v852 = vpack.c.b16 %v788, %v788
  %v853 = vpack.c.b16 %v789, %v789
  %v854 = vpack.c.b16 %v790, %v790
  %v855 = vpack.c.b16 %v791, %v791
  %v856 = vpack.c.b16 %v792, %v792
  %v857 = vpack.c.b16 %v793, %v793
  %v858 = vpack.c.b16 %v794, %v794
  %v859 = vpack.c.b16 %v795, %v795
  %v860 = vpack.c.b16 %v796, %v796
  %v861 = vpack.c.b16 %v797, %v797
  %v862 = vpack.c.b16 %v798, %v798
  %v863 = vpack.c.b16 %v799, %v799
  %v864 = vpack.c.b16 %v800, %v800
  %v865 = vpack.c.b16 %v801, %v801
  %v866 = vpack.c.b16 %v802, %v802
  %v867 = vpack.c.b16 %v803, %v803
  %v868 = vpack.c.b16 %v804, %v804
  %v869 = vpack.c.b16 %v805, %v805
  %v870 = vpack.c.b16 %v806, %v806
  %v871 = vpack.c.b16 %v807, %v807
  %v872 = vpack.c.b16 %v808, %v808
  %v873 = vpack.c.b16 %v809, %v809
  %v874 = vpack.c.b16 %v810, %v810
  %v875 = vpack.c.b16 %v811, %v811
  %v876 = vpack.c.b16 %v812, %v812
  %v877 = vpack.c.b16 %v813, %v813
  %v878 = vpack.c.b16 %v814, %v814
  %v879 = vpack.c.b16 %v815, %v815
  %v880 = vpack.c.b16 %v816, %v816
  %v881 = vpack.c.b16 %v817, %v817
  %v882 = vpack.c.b16 %v818, %v818
  %v883 = vpack.c.b16 %v819, %v819
  %v884 = vpack.c.b16 %v820, %v820
  %v885 = vpack.c.b16 %v821, %v821
  %v886 = vpack.c.b16 %v822, %v822
  %v887 = vpack.c.b16 %v823, %v823
  %v888 = vpack.c.b16 %v824, %v824
  %v889 = vpack.c.b16 %v825, %v825
  %v890 = vpack.c.b16 %v826, %v826
  %v891 = vpack.c.b16 %v827, %v827
  %v892 = vpack.c.b16 %v828, %v828
  %v893 = vpack.c.b16 %v829, %v829
  %v894 = vpack.c.b16 %v830, %v830
  %v895 = vpack.c.b16 %v831, %v831
  %v896 = vpack.c.b16 %v832, %v832
  %v897 = vpack.c.b16 %v833, %v833
  %v898 = vpack.c.b16 %v834, %v834
  %v899 = vpack.c.b16 %v835, %v835
  %v900 = vpack.c.b16 %v836, %v836
  %v901 = vpack.c.b16 %v837, %v837
  %v902 = vpack.c.b16 %v838, %v838
  %v903 = vpack.c.b16 %v839, %v839
  %v904 = vpack.c.b16 %v840, %v840
  %v905 = vpack.c.b16 %v841, %v841
  %v906 = vpack.c.b16 %v842, %v842
  %v907 = vpack.c.b16 %v843, %v843
  %v908 = vpack.c.b16 %v844, %v844
  %v909 = vpack.c.b16 %v845, %v845
  %v910 = vpack.c.b16 %v846, %v846
  %v911 = vpack.c.b16 %v847, %v847
  %v912 = vpack.c.b16 %v848, %v848
  %v913 = vpack.c.b16 %v849, %v849
  %v914 = vpack.c.b16 %v850, %v850
  %v915 = vpack.c.b16 %v851, %v851
  %vm980 = vcmask 125952
  %981 = vst.msk [vmem:[%s5] sm:$0xf] %vm980, %v852
  %982 = vst.msk [vmem:[%s5 + $0x4] sm:$0xf] %vm980, %v853
  %983 = vst.msk [vmem:[%s5 + $0x8] sm:$0xf] %vm980, %v854
  %984 = vst.msk [vmem:[%s5 + $0xc] sm:$0xf] %vm980, %v855
  %985 = vst.msk [vmem:[%s5 + $0x10] sm:$0xf] %vm980, %v856
  %986 = vst.msk [vmem:[%s5 + $0x14] sm:$0xf] %vm980, %v857
  %987 = vst.msk [vmem:[%s5 + $0x18] sm:$0xf] %vm980, %v858
  %988 = vst.msk [vmem:[%s5 + $0x1c] sm:$0xf] %vm980, %v859
  %989 = vst.msk [vmem:[%s5 + $0x20] sm:$0xf] %vm980, %v860
  %990 = vst.msk [vmem:[%s5 + $0x24] sm:$0xf] %vm980, %v861
  %991 = vst.msk [vmem:[%s5 + $0x28] sm:$0xf] %vm980, %v862
  %992 = vst.msk [vmem:[%s5 + $0x2c] sm:$0xf] %vm980, %v863
  %993 = vst.msk [vmem:[%s5 + $0x30] sm:$0xf] %vm980, %v864
  %994 = vst.msk [vmem:[%s5 + $0x34] sm:$0xf] %vm980, %v865
  %995 = vst.msk [vmem:[%s5 + $0x38] sm:$0xf] %vm980, %v866
  %996 = vst.msk [vmem:[%s5 + $0x3c] sm:$0xf] %vm980, %v867
  %997 = vst.msk [vmem:[%s5 + $0x40] sm:$0xf] %vm980, %v868
  %998 = vst.msk [vmem:[%s5 + $0x44] sm:$0xf] %vm980, %v869
  %999 = vst.msk [vmem:[%s5 + $0x48] sm:$0xf] %vm980, %v870
  %1000 = vst.msk [vmem:[%s5 + $0x4c] sm:$0xf] %vm980, %v871
  %1001 = vst.msk [vmem:[%s5 + $0x50] sm:$0xf] %vm980, %v872
  %1002 = vst.msk [vmem:[%s5 + $0x54] sm:$0xf] %vm980, %v873
  %1003 = vst.msk [vmem:[%s5 + $0x58] sm:$0xf] %vm980, %v874
  %1004 = vst.msk [vmem:[%s5 + $0x5c] sm:$0xf] %vm980, %v875
  %1005 = vst.msk [vmem:[%s5 + $0x60] sm:$0xf] %vm980, %v876
  %1006 = vst.msk [vmem:[%s5 + $0x64] sm:$0xf] %vm980, %v877
  %1007 = vst.msk [vmem:[%s5 + $0x68] sm:$0xf] %vm980, %v878
  %1008 = vst.msk [vmem:[%s5 + $0x6c] sm:$0xf] %vm980, %v879
  %1009 = vst.msk [vmem:[%s5 + $0x70] sm:$0xf] %vm980, %v880
  %1010 = vst.msk [vmem:[%s5 + $0x74] sm:$0xf] %vm980, %v881
  %1011 = vst.msk [vmem:[%s5 + $0x78] sm:$0xf] %vm980, %v882
  %1012 = vst.msk [vmem:[%s5 + $0x7c] sm:$0xf] %vm980, %v883
  %1013 = vst.msk [vmem:[%s5 + $0x80] sm:$0xf] %vm980, %v884
  %1014 = vst.msk [vmem:[%s5 + $0x84] sm:$0xf] %vm980, %v885
  %1015 = vst.msk [vmem:[%s5 + $0x88] sm:$0xf] %vm980, %v886
  %1016 = vst.msk [vmem:[%s5 + $0x8c] sm:$0xf] %vm980, %v887
  %1017 = vst.msk [vmem:[%s5 + $0x90] sm:$0xf] %vm980, %v888
  %1018 = vst.msk [vmem:[%s5 + $0x94] sm:$0xf] %vm980, %v889
  %1019 = vst.msk [vmem:[%s5 + $0x98] sm:$0xf] %vm980, %v890
  %1020 = vst.msk [vmem:[%s5 + $0x9c] sm:$0xf] %vm980, %v891
  %1021 = vst.msk [vmem:[%s5 + $0xa0] sm:$0xf] %vm980, %v892
  %1022 = vst.msk [vmem:[%s5 + $0xa4] sm:$0xf] %vm980, %v893
  %1023 = vst.msk [vmem:[%s5 + $0xa8] sm:$0xf] %vm980, %v894
  %1024 = vst.msk [vmem:[%s5 + $0xac] sm:$0xf] %vm980, %v895
  %1025 = vst.msk [vmem:[%s5 + $0xb0] sm:$0xf] %vm980, %v896
  %1026 = vst.msk [vmem:[%s5 + $0xb4] sm:$0xf] %vm980, %v897
  %1027 = vst.msk [vmem:[%s5 + $0xb8] sm:$0xf] %vm980, %v898
  %1028 = vst.msk [vmem:[%s5 + $0xbc] sm:$0xf] %vm980, %v899
  %1029 = vst.msk [vmem:[%s5 + $0xc0] sm:$0xf] %vm980, %v900
  %1030 = vst.msk [vmem:[%s5 + $0xc4] sm:$0xf] %vm980, %v901
  %1031 = vst.msk [vmem:[%s5 + $0xc8] sm:$0xf] %vm980, %v902
  %1032 = vst.msk [vmem:[%s5 + $0xcc] sm:$0xf] %vm980, %v903
  %1033 = vst.msk [vmem:[%s5 + $0xd0] sm:$0xf] %vm980, %v904
  %1034 = vst.msk [vmem:[%s5 + $0xd4] sm:$0xf] %vm980, %v905
  %1035 = vst.msk [vmem:[%s5 + $0xd8] sm:$0xf] %vm980, %v906
  %1036 = vst.msk [vmem:[%s5 + $0xdc] sm:$0xf] %vm980, %v907
  %1037 = vst.msk [vmem:[%s5 + $0xe0] sm:$0xf] %vm980, %v908
  %1038 = vst.msk [vmem:[%s5 + $0xe4] sm:$0xf] %vm980, %v909
  %1039 = vst.msk [vmem:[%s5 + $0xe8] sm:$0xf] %vm980, %v910
  %1040 = vst.msk [vmem:[%s5 + $0xec] sm:$0xf] %vm980, %v911
  %1041 = vst.msk [vmem:[%s5 + $0xf0] sm:$0xf] %vm980, %v912
  %1042 = vst.msk [vmem:[%s5 + $0xf4] sm:$0xf] %vm980, %v913
  %1043 = vst.msk [vmem:[%s5 + $0xf8] sm:$0xf] %vm980, %v914
  %1044 = vst.msk [vmem:[%s5 + $0xfc] sm:$0xf] %vm980, %v915
  %v1045 = vld [vmem:[%s3] sm:$0xf]
  %v1046 = vld [vmem:[%s3 + $0x4] sm:$0xf]
  %v1047 = vld [vmem:[%s4] sm:$0x1]
  %v1049 = vlaneseq
  %v1050 = vshrl.u32 %v1049, 7
  %v1051 = vsub.s32 0, %v1050
  %v1052 = vrot.slane %v1047, %v1051
  %v1056 = vunpack.c.l.b16 %v1045
  %v1057 = vunpack.c.l.b16 %v1046
  %v1058 = vpack.c.b16 %v1057, %v1056
  %vm1060 = vcmask 130048
  %v1062 = vsel %vm1060, %v724, 0
  %v1065 = vsel %vm1060, %v725, 0
  %v1068 = vsel %vm1060, %v726, 0
  %v1071 = vsel %vm1060, %v727, 0
  %v1074 = vsel %vm1060, %v728, 0
  %v1077 = vsel %vm1060, %v729, 0
  %v1080 = vsel %vm1060, %v730, 0
  %v1083 = vsel %vm1060, %v731, 0
  %v1086 = vsel %vm1060, %v732, 0
  %v1089 = vsel %vm1060, %v733, 0
  %v1092 = vsel %vm1060, %v734, 0
  %v1095 = vsel %vm1060, %v735, 0
  %v1098 = vsel %vm1060, %v736, 0
  %v1101 = vsel %vm1060, %v737, 0
  %v1104 = vsel %vm1060, %v738, 0
  %v1107 = vsel %vm1060, %v739, 0
  %v1110 = vsel %vm1060, %v740, 0
  %v1113 = vsel %vm1060, %v741, 0
  %v1116 = vsel %vm1060, %v742, 0
  %v1119 = vsel %vm1060, %v743, 0
  %v1122 = vsel %vm1060, %v744, 0
  %v1125 = vsel %vm1060, %v745, 0
  %v1128 = vsel %vm1060, %v746, 0
  %v1131 = vsel %vm1060, %v747, 0
  %v1134 = vsel %vm1060, %v748, 0
  %v1137 = vsel %vm1060, %v749, 0
  %v1140 = vsel %vm1060, %v750, 0
  %v1143 = vsel %vm1060, %v751, 0
  %v1146 = vsel %vm1060, %v752, 0
  %v1149 = vsel %vm1060, %v753, 0
  %v1152 = vsel %vm1060, %v754, 0
  %v1155 = vsel %vm1060, %v755, 0
  %1157 = vmatprep.subr.bf16.mxu0 0
  %1158 = vmatpush1.bf16.msra.mxu0 0
  %1159 = vmatprep.subr.bf16.mxu0 0
  %1160 = vmatpush1.bf16.msra.mxu0 0
  %1161 = vmatprep.subr.bf16.mxu0 0
  %1162 = vmatpush1.bf16.msra.mxu0 0
  %1163 = vmatprep.subr.bf16.mxu0 0
  %1164 = vmatpush1.bf16.msra.mxu0 0
  %1165 = vmatprep.subr.bf16.mxu0 0
  %1166 = vmatpush1.bf16.msra.mxu0 0
  %1167 = vmatprep.subr.bf16.mxu0 0
  %1168 = vmatpush1.bf16.msra.mxu0 0
  %1169 = vmatprep.subr.bf16.mxu0 0
  %1170 = vmatpush1.bf16.msra.mxu0 0
  %1171 = vmatprep.subr.bf16.mxu0 0
  %1172 = vmatpush1.bf16.msra.mxu0 %v1058
  %1173 = vmatprep.subr.bf16.mxu0 0
  %1174 = vmatpush2.bf16.msra.mxu0 0
  %1175 = vmatprep.subr.bf16.mxu0 0
  %1176 = vmatpush2.bf16.msra.mxu0 0
  %1177 = vmatprep.subr.bf16.mxu0 0
  %1178 = vmatpush2.bf16.msra.mxu0 0
  %1179 = vmatprep.subr.bf16.mxu0 0
  %1180 = vmatpush2.bf16.msra.mxu0 0
  %1181 = vmatprep.subr.bf16.mxu0 0
  %1182 = vmatpush2.bf16.msra.mxu0 0
  %1183 = vmatprep.subr.bf16.mxu0 0
  %1184 = vmatpush2.bf16.msra.mxu0 0
  %1185 = vmatprep.subr.bf16.mxu0 0
  %1186 = vmatpush2.bf16.msra.mxu0 0
  %1187 = vmatprep.subr.bf16.mxu0 0
  %1188 = vmatpush2.bf16.msra.mxu0 0
  %1189 = vmatprep.mubr.bf16.mxu0 0
  %1190 = vmatmul.mubr.bf16.gmra.mxu0 %v1062
  %v1191 = vpop.f32.mrf.mxu0
  %v1192 = vadd.f32 %v1052, %v1191
  %v1193 = vpop.f32.mrf.mxu0
  %v1194 = vpop.f32.mrf.mxu0
  %v1195 = vadd.f32 %v1052, %v1194
  %v1196 = vpop.f32.mrf.mxu0
  %1197 = vmatprep.mubr.bf16.mxu0 0
  %1198 = vmatmul.mubr.bf16.gmra.mxu0 %v1065
  %v1199 = vpop.f32.mrf.mxu0
  %v1200 = vadd.f32 %v1052, %v1199
  %v1201 = vpop.f32.mrf.mxu0
  %v1202 = vpop.f32.mrf.mxu0
  %v1203 = vadd.f32 %v1052, %v1202
  %v1204 = vpop.f32.mrf.mxu0
  %1205 = vmatprep.mubr.bf16.mxu0 0
  %1206 = vmatmul.mubr.bf16.gmra.mxu0 %v1068
  %v1207 = vpop.f32.mrf.mxu0
  %v1208 = vadd.f32 %v1052, %v1207
  %v1209 = vpop.f32.mrf.mxu0
  %v1210 = vpop.f32.mrf.mxu0
  %v1211 = vadd.f32 %v1052, %v1210
  %v1212 = vpop.f32.mrf.mxu0
  %1213 = vmatprep.mubr.bf16.mxu0 0
  %1214 = vmatmul.mubr.bf16.gmra.mxu0 %v1071
  %v1215 = vpop.f32.mrf.mxu0
  %v1216 = vadd.f32 %v1052, %v1215
  %v1217 = vpop.f32.mrf.mxu0
  %v1218 = vpop.f32.mrf.mxu0
  %v1219 = vadd.f32 %v1052, %v1218
  %v1220 = vpop.f32.mrf.mxu0
  %1221 = vmatprep.mubr.bf16.mxu0 0
  %1222 = vmatmul.mubr.bf16.gmra.mxu0 %v1074
  %v1223 = vpop.f32.mrf.mxu0
  %v1224 = vadd.f32 %v1052, %v1223
  %v1225 = vpop.f32.mrf.mxu0
  %v1226 = vpop.f32.mrf.mxu0
  %v1227 = vadd.f32 %v1052, %v1226
  %v1228 = vpop.f32.mrf.mxu0
  %1229 = vmatprep.mubr.bf16.mxu0 0
  %1230 = vmatmul.mubr.bf16.gmra.mxu0 %v1077
  %v1231 = vpop.f32.mrf.mxu0
  %v1232 = vadd.f32 %v1052, %v1231
  %v1233 = vpop.f32.mrf.mxu0
  %v1234 = vpop.f32.mrf.mxu0
  %v1235 = vadd.f32 %v1052, %v1234
  %v1236 = vpop.f32.mrf.mxu0
  %1237 = vmatprep.mubr.bf16.mxu0 0
  %1238 = vmatmul.mubr.bf16.gmra.mxu0 %v1080
  %v1239 = vpop.f32.mrf.mxu0
  %v1240 = vadd.f32 %v1052, %v1239
  %v1241 = vpop.f32.mrf.mxu0
  %v1242 = vpop.f32.mrf.mxu0
  %v1243 = vadd.f32 %v1052, %v1242
  %v1244 = vpop.f32.mrf.mxu0
  %1245 = vmatprep.mubr.bf16.mxu0 0
  %1246 = vmatmul.mubr.bf16.gmra.mxu0 %v1083
  %v1247 = vpop.f32.mrf.mxu0
  %v1248 = vadd.f32 %v1052, %v1247
  %v1249 = vpop.f32.mrf.mxu0
  %v1250 = vpop.f32.mrf.mxu0
  %v1251 = vadd.f32 %v1052, %v1250
  %v1252 = vpop.f32.mrf.mxu0
  %1253 = vmatprep.mubr.bf16.mxu0 0
  %1254 = vmatmul.mubr.bf16.gmra.mxu0 %v1086
  %v1255 = vpop.f32.mrf.mxu0
  %v1256 = vadd.f32 %v1052, %v1255
  %v1257 = vpop.f32.mrf.mxu0
  %v1258 = vpop.f32.mrf.mxu0
  %v1259 = vadd.f32 %v1052, %v1258
  %v1260 = vpop.f32.mrf.mxu0
  %1261 = vmatprep.mubr.bf16.mxu0 0
  %1262 = vmatmul.mubr.bf16.gmra.mxu0 %v1089
  %v1263 = vpop.f32.mrf.mxu0
  %v1264 = vadd.f32 %v1052, %v1263
  %v1265 = vpop.f32.mrf.mxu0
  %v1266 = vpop.f32.mrf.mxu0
  %v1267 = vadd.f32 %v1052, %v1266
  %v1268 = vpop.f32.mrf.mxu0
  %1269 = vmatprep.mubr.bf16.mxu0 0
  %1270 = vmatmul.mubr.bf16.gmra.mxu0 %v1092
  %v1271 = vpop.f32.mrf.mxu0
  %v1272 = vadd.f32 %v1052, %v1271
  %v1273 = vpop.f32.mrf.mxu0
  %v1274 = vpop.f32.mrf.mxu0
  %v1275 = vadd.f32 %v1052, %v1274
  %v1276 = vpop.f32.mrf.mxu0
  %1277 = vmatprep.mubr.bf16.mxu0 0
  %1278 = vmatmul.mubr.bf16.gmra.mxu0 %v1095
  %v1279 = vpop.f32.mrf.mxu0
  %v1280 = vadd.f32 %v1052, %v1279
  %v1281 = vpop.f32.mrf.mxu0
  %v1282 = vpop.f32.mrf.mxu0
  %v1283 = vadd.f32 %v1052, %v1282
  %v1284 = vpop.f32.mrf.mxu0
  %1285 = vmatprep.mubr.bf16.mxu0 0
  %1286 = vmatmul.mubr.bf16.gmra.mxu0 %v1098
  %v1287 = vpop.f32.mrf.mxu0
  %v1288 = vadd.f32 %v1052, %v1287
  %v1289 = vpop.f32.mrf.mxu0
  %v1290 = vpop.f32.mrf.mxu0
  %v1291 = vadd.f32 %v1052, %v1290
  %v1292 = vpop.f32.mrf.mxu0
  %1293 = vmatprep.mubr.bf16.mxu0 0
  %1294 = vmatmul.mubr.bf16.gmra.mxu0 %v1101
  %v1295 = vpop.f32.mrf.mxu0
  %v1296 = vadd.f32 %v1052, %v1295
  %v1297 = vpop.f32.mrf.mxu0
  %v1298 = vpop.f32.mrf.mxu0
  %v1299 = vadd.f32 %v1052, %v1298
  %v1300 = vpop.f32.mrf.mxu0
  %1301 = vmatprep.mubr.bf16.mxu0 0
  %1302 = vmatmul.mubr.bf16.gmra.mxu0 %v1104
  %v1303 = vpop.f32.mrf.mxu0
  %v1304 = vadd.f32 %v1052, %v1303
  %v1305 = vpop.f32.mrf.mxu0
  %v1306 = vpop.f32.mrf.mxu0
  %v1307 = vadd.f32 %v1052, %v1306
  %v1308 = vpop.f32.mrf.mxu0
  %1309 = vmatprep.mubr.bf16.mxu0 0
  %1310 = vmatmul.mubr.bf16.gmra.mxu0 %v1107
  %v1311 = vpop.f32.mrf.mxu0
  %v1312 = vadd.f32 %v1052, %v1311
  %v1313 = vpop.f32.mrf.mxu0
  %v1314 = vpop.f32.mrf.mxu0
  %v1315 = vadd.f32 %v1052, %v1314
  %v1316 = vpop.f32.mrf.mxu0
  %1317 = vmatprep.mubr.bf16.mxu0 0
  %1318 = vmatmul.mubr.bf16.gmra.mxu0 %v1110
  %v1319 = vpop.f32.mrf.mxu0
  %v1320 = vadd.f32 %v1052, %v1319
  %v1321 = vpop.f32.mrf.mxu0
  %v1322 = vpop.f32.mrf.mxu0
  %v1323 = vadd.f32 %v1052, %v1322
  %v1324 = vpop.f32.mrf.mxu0
  %1325 = vmatprep.mubr.bf16.mxu0 0
  %1326 = vmatmul.mubr.bf16.gmra.mxu0 %v1113
  %v1327 = vpop.f32.mrf.mxu0
  %v1328 = vadd.f32 %v1052, %v1327
  %v1329 = vpop.f32.mrf.mxu0
  %v1330 = vpop.f32.mrf.mxu0
  %v1331 = vadd.f32 %v1052, %v1330
  %v1332 = vpop.f32.mrf.mxu0
  %1333 = vmatprep.mubr.bf16.mxu0 0
  %1334 = vmatmul.mubr.bf16.gmra.mxu0 %v1116
  %v1335 = vpop.f32.mrf.mxu0
  %v1336 = vadd.f32 %v1052, %v1335
  %v1337 = vpop.f32.mrf.mxu0
  %v1338 = vpop.f32.mrf.mxu0
  %v1339 = vadd.f32 %v1052, %v1338
  %v1340 = vpop.f32.mrf.mxu0
  %1341 = vmatprep.mubr.bf16.mxu0 0
  %1342 = vmatmul.mubr.bf16.gmra.mxu0 %v1119
  %v1343 = vpop.f32.mrf.mxu0
  %v1344 = vadd.f32 %v1052, %v1343
  %v1345 = vpop.f32.mrf.mxu0
  %v1346 = vpop.f32.mrf.mxu0
  %v1347 = vadd.f32 %v1052, %v1346
  %v1348 = vpop.f32.mrf.mxu0
  %1349 = vmatprep.mubr.bf16.mxu0 0
  %1350 = vmatmul.mubr.bf16.gmra.mxu0 %v1122
  %v1351 = vpop.f32.mrf.mxu0
  %v1352 = vadd.f32 %v1052, %v1351
  %v1353 = vpop.f32.mrf.mxu0
  %v1354 = vpop.f32.mrf.mxu0
  %v1355 = vadd.f32 %v1052, %v1354
  %v1356 = vpop.f32.mrf.mxu0
  %1357 = vmatprep.mubr.bf16.mxu0 0
  %1358 = vmatmul.mubr.bf16.gmra.mxu0 %v1125
  %v1359 = vpop.f32.mrf.mxu0
  %v1360 = vadd.f32 %v1052, %v1359
  %v1361 = vpop.f32.mrf.mxu0
  %v1362 = vpop.f32.mrf.mxu0
  %v1363 = vadd.f32 %v1052, %v1362
  %v1364 = vpop.f32.mrf.mxu0
  %1365 = vmatprep.mubr.bf16.mxu0 0
  %1366 = vmatmul.mubr.bf16.gmra.mxu0 %v1128
  %v1367 = vpop.f32.mrf.mxu0
  %v1368 = vadd.f32 %v1052, %v1367
  %v1369 = vpop.f32.mrf.mxu0
  %v1370 = vpop.f32.mrf.mxu0
  %v1371 = vadd.f32 %v1052, %v1370
  %v1372 = vpop.f32.mrf.mxu0
  %1373 = vmatprep.mubr.bf16.mxu0 0
  %1374 = vmatmul.mubr.bf16.gmra.mxu0 %v1131
  %v1375 = vpop.f32.mrf.mxu0
  %v1376 = vadd.f32 %v1052, %v1375
  %v1377 = vpop.f32.mrf.mxu0
  %v1378 = vpop.f32.mrf.mxu0
  %v1379 = vadd.f32 %v1052, %v1378
  %v1380 = vpop.f32.mrf.mxu0
  %1381 = vmatprep.mubr.bf16.mxu0 0
  %1382 = vmatmul.mubr.bf16.gmra.mxu0 %v1134
  %v1383 = vpop.f32.mrf.mxu0
  %v1384 = vadd.f32 %v1052, %v1383
  %v1385 = vpop.f32.mrf.mxu0
  %v1386 = vpop.f32.mrf.mxu0
  %v1387 = vadd.f32 %v1052, %v1386
  %v1388 = vpop.f32.mrf.mxu0
  %1389 = vmatprep.mubr.bf16.mxu0 0
  %1390 = vmatmul.mubr.bf16.gmra.mxu0 %v1137
  %v1391 = vpop.f32.mrf.mxu0
  %v1392 = vadd.f32 %v1052, %v1391
  %v1393 = vpop.f32.mrf.mxu0
  %v1394 = vpop.f32.mrf.mxu0
  %v1395 = vadd.f32 %v1052, %v1394
  %v1396 = vpop.f32.mrf.mxu0
  %1397 = vmatprep.mubr.bf16.mxu0 0
  %1398 = vmatmul.mubr.bf16.gmra.mxu0 %v1140
  %v1399 = vpop.f32.mrf.mxu0
  %v1400 = vadd.f32 %v1052, %v1399
  %v1401 = vpop.f32.mrf.mxu0
  %v1402 = vpop.f32.mrf.mxu0
  %v1403 = vadd.f32 %v1052, %v1402
  %v1404 = vpop.f32.mrf.mxu0
  %1405 = vmatprep.mubr.bf16.mxu0 0
  %1406 = vmatmul.mubr.bf16.gmra.mxu0 %v1143
  %v1407 = vpop.f32.mrf.mxu0
  %v1408 = vadd.f32 %v1052, %v1407
  %v1409 = vpop.f32.mrf.mxu0
  %v1410 = vpop.f32.mrf.mxu0
  %v1411 = vadd.f32 %v1052, %v1410
  %v1412 = vpop.f32.mrf.mxu0
  %1413 = vmatprep.mubr.bf16.mxu0 0
  %1414 = vmatmul.mubr.bf16.gmra.mxu0 %v1146
  %v1415 = vpop.f32.mrf.mxu0
  %v1416 = vadd.f32 %v1052, %v1415
  %v1417 = vpop.f32.mrf.mxu0
  %v1418 = vpop.f32.mrf.mxu0
  %v1419 = vadd.f32 %v1052, %v1418
  %v1420 = vpop.f32.mrf.mxu0
  %1421 = vmatprep.mubr.bf16.mxu0 0
  %1422 = vmatmul.mubr.bf16.gmra.mxu0 %v1149
  %v1423 = vpop.f32.mrf.mxu0
  %v1424 = vadd.f32 %v1052, %v1423
  %v1425 = vpop.f32.mrf.mxu0
  %v1426 = vpop.f32.mrf.mxu0
  %v1427 = vadd.f32 %v1052, %v1426
  %v1428 = vpop.f32.mrf.mxu0
  %1429 = vmatprep.mubr.bf16.mxu0 0
  %1430 = vmatmul.mubr.bf16.gmra.mxu0 %v1152
  %v1431 = vpop.f32.mrf.mxu0
  %v1432 = vadd.f32 %v1052, %v1431
  %v1433 = vpop.f32.mrf.mxu0
  %v1434 = vpop.f32.mrf.mxu0
  %v1435 = vadd.f32 %v1052, %v1434
  %v1436 = vpop.f32.mrf.mxu0
  %1437 = vmatprep.mubr.bf16.mxu0 0
  %1438 = vmatmul.mubr.bf16.gmra.mxu0 %v1155
  %v1439 = vpop.f32.mrf.mxu0
  %v1440 = vadd.f32 %v1052, %v1439
  %v1441 = vpop.f32.mrf.mxu0
  %v1442 = vpop.f32.mrf.mxu0
  %v1443 = vadd.f32 %v1052, %v1442
  %v1444 = vpop.f32.mrf.mxu0
  %1445 = vdwg.mxu0
  %v1446 = vpack.c.bf16 %v1195, %v1192
  %v1447 = vpack.c.bf16 %v1203, %v1200
  %v1448 = vpack.c.bf16 %v1211, %v1208
  %v1449 = vpack.c.bf16 %v1219, %v1216
  %v1450 = vpack.c.bf16 %v1227, %v1224
  %v1451 = vpack.c.bf16 %v1235, %v1232
  %v1452 = vpack.c.bf16 %v1243, %v1240
  %v1453 = vpack.c.bf16 %v1251, %v1248
  %v1454 = vpack.c.bf16 %v1259, %v1256
  %v1455 = vpack.c.bf16 %v1267, %v1264
  %v1456 = vpack.c.bf16 %v1275, %v1272
  %v1457 = vpack.c.bf16 %v1283, %v1280
  %v1458 = vpack.c.bf16 %v1291, %v1288
  %v1459 = vpack.c.bf16 %v1299, %v1296
  %v1460 = vpack.c.bf16 %v1307, %v1304
  %v1461 = vpack.c.bf16 %v1315, %v1312
  %v1462 = vpack.c.bf16 %v1323, %v1320
  %v1463 = vpack.c.bf16 %v1331, %v1328
  %v1464 = vpack.c.bf16 %v1339, %v1336
  %v1465 = vpack.c.bf16 %v1347, %v1344
  %v1466 = vpack.c.bf16 %v1355, %v1352
  %v1467 = vpack.c.bf16 %v1363, %v1360
  %v1468 = vpack.c.bf16 %v1371, %v1368
  %v1469 = vpack.c.bf16 %v1379, %v1376
  %v1470 = vpack.c.bf16 %v1387, %v1384
  %v1471 = vpack.c.bf16 %v1395, %v1392
  %v1472 = vpack.c.bf16 %v1403, %v1400
  %v1473 = vpack.c.bf16 %v1411, %v1408
  %v1474 = vpack.c.bf16 %v1419, %v1416
  %v1475 = vpack.c.bf16 %v1427, %v1424
  %v1476 = vpack.c.bf16 %v1435, %v1432
  %v1477 = vpack.c.bf16 %v1443, %v1440
  %v1510 = vunpack.c.l.b16 %v1446
  %v1511 = vunpack.c.h.b16 %v1446
  %v1512 = vunpack.c.l.b16 %v1447
  %v1513 = vunpack.c.h.b16 %v1447
  %v1514 = vunpack.c.l.b16 %v1448
  %v1515 = vunpack.c.h.b16 %v1448
  %v1516 = vunpack.c.l.b16 %v1449
  %v1517 = vunpack.c.h.b16 %v1449
  %v1518 = vunpack.c.l.b16 %v1450
  %v1519 = vunpack.c.h.b16 %v1450
  %v1520 = vunpack.c.l.b16 %v1451
  %v1521 = vunpack.c.h.b16 %v1451
  %v1522 = vunpack.c.l.b16 %v1452
  %v1523 = vunpack.c.h.b16 %v1452
  %v1524 = vunpack.c.l.b16 %v1453
  %v1525 = vunpack.c.h.b16 %v1453
  %v1526 = vunpack.c.l.b16 %v1454
  %v1527 = vunpack.c.h.b16 %v1454
  %v1528 = vunpack.c.l.b16 %v1455
  %v1529 = vunpack.c.h.b16 %v1455
  %v1530 = vunpack.c.l.b16 %v1456
  %v1531 = vunpack.c.h.b16 %v1456
  %v1532 = vunpack.c.l.b16 %v1457
  %v1533 = vunpack.c.h.b16 %v1457
  %v1534 = vunpack.c.l.b16 %v1458
  %v1535 = vunpack.c.h.b16 %v1458
  %v1536 = vunpack.c.l.b16 %v1459
  %v1537 = vunpack.c.h.b16 %v1459
  %v1538 = vunpack.c.l.b16 %v1460
  %v1539 = vunpack.c.h.b16 %v1460
  %v1540 = vunpack.c.l.b16 %v1461
  %v1541 = vunpack.c.h.b16 %v1461
  %v1542 = vunpack.c.l.b16 %v1462
  %v1543 = vunpack.c.h.b16 %v1462
  %v1544 = vunpack.c.l.b16 %v1463
  %v1545 = vunpack.c.h.b16 %v1463
  %v1546 = vunpack.c.l.b16 %v1464
  %v1547 = vunpack.c.h.b16 %v1464
  %v1548 = vunpack.c.l.b16 %v1465
  %v1549 = vunpack.c.h.b16 %v1465
  %v1550 = vunpack.c.l.b16 %v1466
  %v1551 = vunpack.c.h.b16 %v1466
  %v1552 = vunpack.c.l.b16 %v1467
  %v1553 = vunpack.c.h.b16 %v1467
  %v1554 = vunpack.c.l.b16 %v1468
  %v1555 = vunpack.c.h.b16 %v1468
  %v1556 = vunpack.c.l.b16 %v1469
  %v1557 = vunpack.c.h.b16 %v1469
  %v1558 = vunpack.c.l.b16 %v1470
  %v1559 = vunpack.c.h.b16 %v1470
  %v1560 = vunpack.c.l.b16 %v1471
  %v1561 = vunpack.c.h.b16 %v1471
  %v1562 = vunpack.c.l.b16 %v1472
  %v1563 = vunpack.c.h.b16 %v1472
  %v1564 = vunpack.c.l.b16 %v1473
  %v1565 = vunpack.c.h.b16 %v1473
  %v1566 = vunpack.c.l.b16 %v1474
  %v1567 = vunpack.c.h.b16 %v1474
  %v1568 = vunpack.c.l.b16 %v1475
  %v1569 = vunpack.c.h.b16 %v1475
  %v1570 = vunpack.c.l.b16 %v1476
  %v1571 = vunpack.c.h.b16 %v1476
  %v1572 = vunpack.c.l.b16 %v1477
  %v1573 = vunpack.c.h.b16 %v1477
  %v1574 = vpack.c.b16 %v1510, %v1510
  %v1575 = vpack.c.b16 %v1511, %v1511
  %v1576 = vpack.c.b16 %v1512, %v1512
  %v1577 = vpack.c.b16 %v1513, %v1513
  %v1578 = vpack.c.b16 %v1514, %v1514
  %v1579 = vpack.c.b16 %v1515, %v1515
  %v1580 = vpack.c.b16 %v1516, %v1516
  %v1581 = vpack.c.b16 %v1517, %v1517
  %v1582 = vpack.c.b16 %v1518, %v1518
  %v1583 = vpack.c.b16 %v1519, %v1519
  %v1584 = vpack.c.b16 %v1520, %v1520
  %v1585 = vpack.c.b16 %v1521, %v1521
  %v1586 = vpack.c.b16 %v1522, %v1522
  %v1587 = vpack.c.b16 %v1523, %v1523
  %v1588 = vpack.c.b16 %v1524, %v1524
  %v1589 = vpack.c.b16 %v1525, %v1525
  %v1590 = vpack.c.b16 %v1526, %v1526
  %v1591 = vpack.c.b16 %v1527, %v1527
  %v1592 = vpack.c.b16 %v1528, %v1528
  %v1593 = vpack.c.b16 %v1529, %v1529
  %v1594 = vpack.c.b16 %v1530, %v1530
  %v1595 = vpack.c.b16 %v1531, %v1531
  %v1596 = vpack.c.b16 %v1532, %v1532
  %v1597 = vpack.c.b16 %v1533, %v1533
  %v1598 = vpack.c.b16 %v1534, %v1534
  %v1599 = vpack.c.b16 %v1535, %v1535
  %v1600 = vpack.c.b16 %v1536, %v1536
  %v1601 = vpack.c.b16 %v1537, %v1537
  %v1602 = vpack.c.b16 %v1538, %v1538
  %v1603 = vpack.c.b16 %v1539, %v1539
  %v1604 = vpack.c.b16 %v1540, %v1540
  %v1605 = vpack.c.b16 %v1541, %v1541
  %v1606 = vpack.c.b16 %v1542, %v1542
  %v1607 = vpack.c.b16 %v1543, %v1543
  %v1608 = vpack.c.b16 %v1544, %v1544
  %v1609 = vpack.c.b16 %v1545, %v1545
  %v1610 = vpack.c.b16 %v1546, %v1546
  %v1611 = vpack.c.b16 %v1547, %v1547
  %v1612 = vpack.c.b16 %v1548, %v1548
  %v1613 = vpack.c.b16 %v1549, %v1549
  %v1614 = vpack.c.b16 %v1550, %v1550
  %v1615 = vpack.c.b16 %v1551, %v1551
  %v1616 = vpack.c.b16 %v1552, %v1552
  %v1617 = vpack.c.b16 %v1553, %v1553
  %v1618 = vpack.c.b16 %v1554, %v1554
  %v1619 = vpack.c.b16 %v1555, %v1555
  %v1620 = vpack.c.b16 %v1556, %v1556
  %v1621 = vpack.c.b16 %v1557, %v1557
  %v1622 = vpack.c.b16 %v1558, %v1558
  %v1623 = vpack.c.b16 %v1559, %v1559
  %v1624 = vpack.c.b16 %v1560, %v1560
  %v1625 = vpack.c.b16 %v1561, %v1561
  %v1626 = vpack.c.b16 %v1562, %v1562
  %v1627 = vpack.c.b16 %v1563, %v1563
  %v1628 = vpack.c.b16 %v1564, %v1564
  %v1629 = vpack.c.b16 %v1565, %v1565
  %v1630 = vpack.c.b16 %v1566, %v1566
  %v1631 = vpack.c.b16 %v1567, %v1567
  %v1632 = vpack.c.b16 %v1568, %v1568
  %v1633 = vpack.c.b16 %v1569, %v1569
  %v1634 = vpack.c.b16 %v1570, %v1570
  %v1635 = vpack.c.b16 %v1571, %v1571
  %v1636 = vpack.c.b16 %v1572, %v1572
  %v1637 = vpack.c.b16 %v1573, %v1573
  %1638 = vrot.lane.b32.xlu0 %v1574, 16
  %v1639 = vpop.permute.xlu0 %1638
  %1640 = vrot.lane.b32.xlu0 %v1575, 16
  %v1641 = vpop.permute.xlu0 %1640
  %1642 = vrot.lane.b32.xlu0 %v1576, 16
  %v1643 = vpop.permute.xlu0 %1642
  %1644 = vrot.lane.b32.xlu0 %v1577, 16
  %v1645 = vpop.permute.xlu0 %1644
  %1646 = vrot.lane.b32.xlu0 %v1578, 16
  %v1647 = vpop.permute.xlu0 %1646
  %1648 = vrot.lane.b32.xlu0 %v1579, 16
  %v1649 = vpop.permute.xlu0 %1648
  %1650 = vrot.lane.b32.xlu0 %v1580, 16
  %v1651 = vpop.permute.xlu0 %1650
  %1652 = vrot.lane.b32.xlu0 %v1581, 16
  %v1653 = vpop.permute.xlu0 %1652
  %1654 = vrot.lane.b32.xlu0 %v1582, 16
  %v1655 = vpop.permute.xlu0 %1654
  %1656 = vrot.lane.b32.xlu0 %v1583, 16
  %v1657 = vpop.permute.xlu0 %1656
  %1658 = vrot.lane.b32.xlu0 %v1584, 16
  %v1659 = vpop.permute.xlu0 %1658
  %1660 = vrot.lane.b32.xlu0 %v1585, 16
  %v1661 = vpop.permute.xlu0 %1660
  %1662 = vrot.lane.b32.xlu0 %v1586, 16
  %v1663 = vpop.permute.xlu0 %1662
  %1664 = vrot.lane.b32.xlu0 %v1587, 16
  %v1665 = vpop.permute.xlu0 %1664
  %1666 = vrot.lane.b32.xlu0 %v1588, 16
  %v1667 = vpop.permute.xlu0 %1666
  %1668 = vrot.lane.b32.xlu0 %v1589, 16
  %v1669 = vpop.permute.xlu0 %1668
  %1670 = vrot.lane.b32.xlu0 %v1590, 16
  %v1671 = vpop.permute.xlu0 %1670
  %1672 = vrot.lane.b32.xlu0 %v1591, 16
  %v1673 = vpop.permute.xlu0 %1672
  %1674 = vrot.lane.b32.xlu0 %v1592, 16
  %v1675 = vpop.permute.xlu0 %1674
  %1676 = vrot.lane.b32.xlu0 %v1593, 16
  %v1677 = vpop.permute.xlu0 %1676
  %1678 = vrot.lane.b32.xlu0 %v1594, 16
  %v1679 = vpop.permute.xlu0 %1678
  %1680 = vrot.lane.b32.xlu0 %v1595, 16
  %v1681 = vpop.permute.xlu0 %1680
  %1682 = vrot.lane.b32.xlu0 %v1596, 16
  %v1683 = vpop.permute.xlu0 %1682
  %1684 = vrot.lane.b32.xlu0 %v1597, 16
  %v1685 = vpop.permute.xlu0 %1684
  %1686 = vrot.lane.b32.xlu0 %v1598, 16
  %v1687 = vpop.permute.xlu0 %1686
  %1688 = vrot.lane.b32.xlu0 %v1599, 16
  %v1689 = vpop.permute.xlu0 %1688
  %1690 = vrot.lane.b32.xlu0 %v1600, 16
  %v1691 = vpop.permute.xlu0 %1690
  %1692 = vrot.lane.b32.xlu0 %v1601, 16
  %v1693 = vpop.permute.xlu0 %1692
  %1694 = vrot.lane.b32.xlu0 %v1602, 16
  %v1695 = vpop.permute.xlu0 %1694
  %1696 = vrot.lane.b32.xlu0 %v1603, 16
  %v1697 = vpop.permute.xlu0 %1696
  %1698 = vrot.lane.b32.xlu0 %v1604, 16
  %v1699 = vpop.permute.xlu0 %1698
  %1700 = vrot.lane.b32.xlu0 %v1605, 16
  %v1701 = vpop.permute.xlu0 %1700
  %1702 = vrot.lane.b32.xlu0 %v1606, 16
  %v1703 = vpop.permute.xlu0 %1702
  %1704 = vrot.lane.b32.xlu0 %v1607, 16
  %v1705 = vpop.permute.xlu0 %1704
  %1706 = vrot.lane.b32.xlu0 %v1608, 16
  %v1707 = vpop.permute.xlu0 %1706
  %1708 = vrot.lane.b32.xlu0 %v1609, 16
  %v1709 = vpop.permute.xlu0 %1708
  %1710 = vrot.lane.b32.xlu0 %v1610, 16
  %v1711 = vpop.permute.xlu0 %1710
  %1712 = vrot.lane.b32.xlu0 %v1611, 16
  %v1713 = vpop.permute.xlu0 %1712
  %1714 = vrot.lane.b32.xlu0 %v1612, 16
  %v1715 = vpop.permute.xlu0 %1714
  %1716 = vrot.lane.b32.xlu0 %v1613, 16
  %v1717 = vpop.permute.xlu0 %1716
  %1718 = vrot.lane.b32.xlu0 %v1614, 16
  %v1719 = vpop.permute.xlu0 %1718
  %1720 = vrot.lane.b32.xlu0 %v1615, 16
  %v1721 = vpop.permute.xlu0 %1720
  %1722 = vrot.lane.b32.xlu0 %v1616, 16
  %v1723 = vpop.permute.xlu0 %1722
  %1724 = vrot.lane.b32.xlu0 %v1617, 16
  %v1725 = vpop.permute.xlu0 %1724
  %1726 = vrot.lane.b32.xlu0 %v1618, 16
  %v1727 = vpop.permute.xlu0 %1726
  %1728 = vrot.lane.b32.xlu0 %v1619, 16
  %v1729 = vpop.permute.xlu0 %1728
  %1730 = vrot.lane.b32.xlu0 %v1620, 16
  %v1731 = vpop.permute.xlu0 %1730
  %1732 = vrot.lane.b32.xlu0 %v1621, 16
  %v1733 = vpop.permute.xlu0 %1732
  %1734 = vrot.lane.b32.xlu0 %v1622, 16
  %v1735 = vpop.permute.xlu0 %1734
  %1736 = vrot.lane.b32.xlu0 %v1623, 16
  %v1737 = vpop.permute.xlu0 %1736
  %1738 = vrot.lane.b32.xlu0 %v1624, 16
  %v1739 = vpop.permute.xlu0 %1738
  %1740 = vrot.lane.b32.xlu0 %v1625, 16
  %v1741 = vpop.permute.xlu0 %1740
  %1742 = vrot.lane.b32.xlu0 %v1626, 16
  %v1743 = vpop.permute.xlu0 %1742
  %1744 = vrot.lane.b32.xlu0 %v1627, 16
  %v1745 = vpop.permute.xlu0 %1744
  %1746 = vrot.lane.b32.xlu0 %v1628, 16
  %v1747 = vpop.permute.xlu0 %1746
  %1748 = vrot.lane.b32.xlu0 %v1629, 16
  %v1749 = vpop.permute.xlu0 %1748
  %1750 = vrot.lane.b32.xlu0 %v1630, 16
  %v1751 = vpop.permute.xlu0 %1750
  %1752 = vrot.lane.b32.xlu0 %v1631, 16
  %v1753 = vpop.permute.xlu0 %1752
  %1754 = vrot.lane.b32.xlu0 %v1632, 16
  %v1755 = vpop.permute.xlu0 %1754
  %1756 = vrot.lane.b32.xlu0 %v1633, 16
  %v1757 = vpop.permute.xlu0 %1756
  %1758 = vrot.lane.b32.xlu0 %v1634, 16
  %v1759 = vpop.permute.xlu0 %1758
  %1760 = vrot.lane.b32.xlu0 %v1635, 16
  %v1761 = vpop.permute.xlu0 %1760
  %1762 = vrot.lane.b32.xlu0 %v1636, 16
  %v1763 = vpop.permute.xlu0 %1762
  %1764 = vrot.lane.b32.xlu0 %v1637, 16
  %v1765 = vpop.permute.xlu0 %1764
  %vm1830 = vcmask 388224
  %1831 = vst.msk [vmem:[%s5] sm:$0xf] %vm1830, %v1639
  %1832 = vst.msk [vmem:[%s5 + $0x4] sm:$0xf] %vm1830, %v1641
  %1833 = vst.msk [vmem:[%s5 + $0x8] sm:$0xf] %vm1830, %v1643
  %1834 = vst.msk [vmem:[%s5 + $0xc] sm:$0xf] %vm1830, %v1645
  %1835 = vst.msk [vmem:[%s5 + $0x10] sm:$0xf] %vm1830, %v1647
  %1836 = vst.msk [vmem:[%s5 + $0x14] sm:$0xf] %vm1830, %v1649
  %1837 = vst.msk [vmem:[%s5 + $0x18] sm:$0xf] %vm1830, %v1651
  %1838 = vst.msk [vmem:[%s5 + $0x1c] sm:$0xf] %vm1830, %v1653
  %1839 = vst.msk [vmem:[%s5 + $0x20] sm:$0xf] %vm1830, %v1655
  %1840 = vst.msk [vmem:[%s5 + $0x24] sm:$0xf] %vm1830, %v1657
  %1841 = vst.msk [vmem:[%s5 + $0x28] sm:$0xf] %vm1830, %v1659
  %1842 = vst.msk [vmem:[%s5 + $0x2c] sm:$0xf] %vm1830, %v1661
  %1843 = vst.msk [vmem:[%s5 + $0x30] sm:$0xf] %vm1830, %v1663
  %1844 = vst.msk [vmem:[%s5 + $0x34] sm:$0xf] %vm1830, %v1665
  %1845 = vst.msk [vmem:[%s5 + $0x38] sm:$0xf] %vm1830, %v1667
  %1846 = vst.msk [vmem:[%s5 + $0x3c] sm:$0xf] %vm1830, %v1669
  %1847 = vst.msk [vmem:[%s5 + $0x40] sm:$0xf] %vm1830, %v1671
  %1848 = vst.msk [vmem:[%s5 + $0x44] sm:$0xf] %vm1830, %v1673
  %1849 = vst.msk [vmem:[%s5 + $0x48] sm:$0xf] %vm1830, %v1675
  %1850 = vst.msk [vmem:[%s5 + $0x4c] sm:$0xf] %vm1830, %v1677
  %1851 = vst.msk [vmem:[%s5 + $0x50] sm:$0xf] %vm1830, %v1679
  %1852 = vst.msk [vmem:[%s5 + $0x54] sm:$0xf] %vm1830, %v1681
  %1853 = vst.msk [vmem:[%s5 + $0x58] sm:$0xf] %vm1830, %v1683
  %1854 = vst.msk [vmem:[%s5 + $0x5c] sm:$0xf] %vm1830, %v1685
  %1855 = vst.msk [vmem:[%s5 + $0x60] sm:$0xf] %vm1830, %v1687
  %1856 = vst.msk [vmem:[%s5 + $0x64] sm:$0xf] %vm1830, %v1689
  %1857 = vst.msk [vmem:[%s5 + $0x68] sm:$0xf] %vm1830, %v1691
  %1858 = vst.msk [vmem:[%s5 + $0x6c] sm:$0xf] %vm1830, %v1693
  %1859 = vst.msk [vmem:[%s5 + $0x70] sm:$0xf] %vm1830, %v1695
  %1860 = vst.msk [vmem:[%s5 + $0x74] sm:$0xf] %vm1830, %v1697
  %1861 = vst.msk [vmem:[%s5 + $0x78] sm:$0xf] %vm1830, %v1699
  %1862 = vst.msk [vmem:[%s5 + $0x7c] sm:$0xf] %vm1830, %v1701
  %1863 = vst.msk [vmem:[%s5 + $0x80] sm:$0xf] %vm1830, %v1703
  %1864 = vst.msk [vmem:[%s5 + $0x84] sm:$0xf] %vm1830, %v1705
  %1865 = vst.msk [vmem:[%s5 + $0x88] sm:$0xf] %vm1830, %v1707
  %1866 = vst.msk [vmem:[%s5 + $0x8c] sm:$0xf] %vm1830, %v1709
  %1867 = vst.msk [vmem:[%s5 + $0x90] sm:$0xf] %vm1830, %v1711
  %1868 = vst.msk [vmem:[%s5 + $0x94] sm:$0xf] %vm1830, %v1713
  %1869 = vst.msk [vmem:[%s5 + $0x98] sm:$0xf] %vm1830, %v1715
  %1870 = vst.msk [vmem:[%s5 + $0x9c] sm:$0xf] %vm1830, %v1717
  %1871 = vst.msk [vmem:[%s5 + $0xa0] sm:$0xf] %vm1830, %v1719
  %1872 = vst.msk [vmem:[%s5 + $0xa4] sm:$0xf] %vm1830, %v1721
  %1873 = vst.msk [vmem:[%s5 + $0xa8] sm:$0xf] %vm1830, %v1723
  %1874 = vst.msk [vmem:[%s5 + $0xac] sm:$0xf] %vm1830, %v1725
  %1875 = vst.msk [vmem:[%s5 + $0xb0] sm:$0xf] %vm1830, %v1727
  %1876 = vst.msk [vmem:[%s5 + $0xb4] sm:$0xf] %vm1830, %v1729
  %1877 = vst.msk [vmem:[%s5 + $0xb8] sm:$0xf] %vm1830, %v1731
  %1878 = vst.msk [vmem:[%s5 + $0xbc] sm:$0xf] %vm1830, %v1733
  %1879 = vst.msk [vmem:[%s5 + $0xc0] sm:$0xf] %vm1830, %v1735
  %1880 = vst.msk [vmem:[%s5 + $0xc4] sm:$0xf] %vm1830, %v1737
  %1881 = vst.msk [vmem:[%s5 + $0xc8] sm:$0xf] %vm1830, %v1739
  %1882 = vst.msk [vmem:[%s5 + $0xcc] sm:$0xf] %vm1830, %v1741
  %1883 = vst.msk [vmem:[%s5 + $0xd0] sm:$0xf] %vm1830, %v1743
  %1884 = vst.msk [vmem:[%s5 + $0xd4] sm:$0xf] %vm1830, %v1745
  %1885 = vst.msk [vmem:[%s5 + $0xd8] sm:$0xf] %vm1830, %v1747
  %1886 = vst.msk [vmem:[%s5 + $0xdc] sm:$0xf] %vm1830, %v1749
  %1887 = vst.msk [vmem:[%s5 + $0xe0] sm:$0xf] %vm1830, %v1751
  %1888 = vst.msk [vmem:[%s5 + $0xe4] sm:$0xf] %vm1830, %v1753
  %1889 = vst.msk [vmem:[%s5 + $0xe8] sm:$0xf] %vm1830, %v1755
  %1890 = vst.msk [vmem:[%s5 + $0xec] sm:$0xf] %vm1830, %v1757
  %1891 = vst.msk [vmem:[%s5 + $0xf0] sm:$0xf] %vm1830, %v1759
  %1892 = vst.msk [vmem:[%s5 + $0xf4] sm:$0xf] %vm1830, %v1761
  %1893 = vst.msk [vmem:[%s5 + $0xf8] sm:$0xf] %vm1830, %v1763
  %1894 = vst.msk [vmem:[%s5 + $0xfc] sm:$0xf] %vm1830, %v1765
  // Predicated region
  $region22: #{smoothtext_forward.3} parent=0 // pred_check
    _
  $region23: #{smoothtext_forward.3} parent=0 // pred_check_branch
    %1896 = sbr.rel (0) target = $region25
  $region24: #{smoothtext_forward.3} parent=0 // pred_region
    _
  $region25: #{smoothtext_forward.3} parent=0 // pred_fallthru
    _
  // Predicated region
  $region26: #{smoothtext_forward.3} parent=0 // pred_check
    _
  $region27: #{smoothtext_forward.3} parent=0 // pred_check_branch
    %1898 = sbr.rel (0) target = $region29
  $region28: #{smoothtext_forward.3} parent=0 // pred_region
    _
  $region29: #{smoothtext_forward.3} parent=0 // pred_fallthru
    _

// kernel: smoothtext_forward.4
$region0: #{smoothtext_forward.4}
  #allocation0 [shape = 'u32[]', space=smem, size = 0x4, offset = 0x4, fixed_abs, tag = 'smem constant byte address 0x4 - core index']
  #allocation1 [shape = 'u32[144,128]{1,0:T(1,128)}', space=vmem, size = 0x12000, scoped, tag = 'internal scratch']
  %s0 = inlined_call_operand.vmem [shape: bf16[128,144], index: 0, kind: input, shape index: {}]
  %s1 = inlined_call_operand.vmem [shape: bf16[144,32], index: 1, kind: input, shape index: {}]
  %s2 = inlined_call_operand.vmem [shape: f32[1,32], index: 2, kind: input, shape index: {}]
  %s3 = inlined_call_operand.vmem [shape: bf16[32,32], index: 3, kind: input, shape index: {}]
  %s4 = inlined_call_operand.vmem [shape: f32[1,32], index: 4, kind: input, shape index: {}]
  %s5 = inlined_call_operand.vmem [shape: bf16[128,32], index: 5, kind: output, shape index: {}]
  %s6 = sld [smem:[#allocation0]]
  $region30: #{smoothtext_forward.4} parent=0
    _
  %s8 = ssub.s32 1, %s6
  %s9 = scalar_select 0, %s8, %s6
  // Predicated region
  $region2: #{smoothtext_forward.4} parent=0 // pred_check
    _
  $region3: #{smoothtext_forward.4} parent=0 // pred_check_branch
    %11 = sbr.rel (0) target = $region5
  $region4: #{smoothtext_forward.4} parent=0 // pred_region
    _
  $region5: #{smoothtext_forward.4} parent=0 // pred_fallthru
    _
  // Predicated region
  $region6: #{smoothtext_forward.4} parent=0 // pred_check
    _
  $region7: #{smoothtext_forward.4} parent=0 // pred_check_branch
    %13 = sbr.rel (0) target = $region9
  $region8: #{smoothtext_forward.4} parent=0 // pred_region
    _
  $region9: #{smoothtext_forward.4} parent=0 // pred_fallthru
    _
  // Predicated region
  $region10: #{smoothtext_forward.4} parent=0 // pred_check
    _
  $region11: #{smoothtext_forward.4} parent=0 // pred_check_branch
    %15 = sbr.rel (0) target = $region13
  $region12: #{smoothtext_forward.4} parent=0 // pred_region
    _
  $region13: #{smoothtext_forward.4} parent=0 // pred_fallthru
    _
  // Predicated region
  $region14: #{smoothtext_forward.4} parent=0 // pred_check
    _
  $region15: #{smoothtext_forward.4} parent=0 // pred_check_branch
    %17 = sbr.rel (0) target = $region17
  $region16: #{smoothtext_forward.4} parent=0 // pred_region
    _
  $region17: #{smoothtext_forward.4} parent=0 // pred_fallthru
    _
  // Predicated region
  $region18: #{smoothtext_forward.4} parent=0 // pred_check
    _
  $region19: #{smoothtext_forward.4} parent=0 // pred_check_branch
    %19 = sbr.rel (0) target = $region21
  $region20: #{smoothtext_forward.4} parent=0 // pred_region
    _
  $region21: #{smoothtext_forward.4} parent=0 // pred_fallthru
    _
  %v21 = vld [vmem:[%s0] sm:$0xff]
  %v22 = vld [vmem:[%s0 + $0x8] sm:$0xff]
  %v23 = vld [vmem:[%s0 + $0x10] sm:$0xff]
  %v24 = vld [vmem:[%s0 + $0x18] sm:$0xff]
  %v25 = vld [vmem:[%s0 + $0x20] sm:$0xff]
  %v26 = vld [vmem:[%s0 + $0x28] sm:$0xff]
  %v27 = vld [vmem:[%s0 + $0x30] sm:$0xff]
  %v28 = vld [vmem:[%s0 + $0x38] sm:$0xff]
  %v29 = vld [vmem:[%s0 + $0x40] sm:$0xff]
  %v30 = vld [vmem:[%s0 + $0x48] sm:$0xff]
  %v31 = vld [vmem:[%s0 + $0x50] sm:$0xff]
  %v32 = vld [vmem:[%s0 + $0x58] sm:$0xff]
  %v33 = vld [vmem:[%s0 + $0x60] sm:$0xff]
  %v34 = vld [vmem:[%s0 + $0x68] sm:$0xff]
  %v35 = vld [vmem:[%s0 + $0x70] sm:$0xff]
  %v36 = vld [vmem:[%s0 + $0x78] sm:$0xff]
  %v37 = vld [vmem:[%s1] sm:$0xf]
  %v38 = vld [vmem:[%s1 + $0x4] sm:$0xf]
  %v39 = vld [vmem:[%s1 + $0x8] sm:$0xf]
  %v40 = vld [vmem:[%s1 + $0xc] sm:$0xf]
  %v41 = vld [vmem:[%s1 + $0x10] sm:$0xf]
  %v42 = vld [vmem:[%s1 + $0x14] sm:$0xf]
  %v43 = vld [vmem:[%s1 + $0x18] sm:$0xf]
  %v44 = vld [vmem:[%s1 + $0x1c] sm:$0xf]
  %v45 = vld [vmem:[%s1 + $0x20] sm:$0xf]
  %v46 = vld [vmem:[%s1 + $0x24] sm:$0xf]
  %v47 = vld [vmem:[%s1 + $0x28] sm:$0xf]
  %v48 = vld [vmem:[%s1 + $0x2c] sm:$0xf]
  %v49 = vld [vmem:[%s1 + $0x30] sm:$0xf]
  %v50 = vld [vmem:[%s1 + $0x34] sm:$0xf]
  %v51 = vld [vmem:[%s1 + $0x38] sm:$0xf]
  %v52 = vld [vmem:[%s1 + $0x3c] sm:$0xf]
  %v53 = vld [vmem:[%s1 + $0x40] sm:$0xf]
  %v54 = vld [vmem:[%s1 + $0x44] sm:$0xf]
  %v55 = vld [vmem:[%s2] sm:$0x1]
  %v57 = vlaneseq
  %v58 = vshrl.u32 %v57, 7
  %v59 = vsub.s32 0, %v58
  %v60 = vrot.slane %v55, %v59
  %v78 = vunpack.c.l.b16 %v21
  %v79 = vunpack.c.h.b16 %v21
  %v80 = vunpack.c.l.b16 %v22
  %v81 = vunpack.c.h.b16 %v22
  %v82 = vunpack.c.l.b16 %v23
  %v83 = vunpack.c.h.b16 %v23
  %v84 = vunpack.c.l.b16 %v24
  %v85 = vunpack.c.h.b16 %v24
  %v86 = vunpack.c.l.b16 %v25
  %v87 = vunpack.c.h.b16 %v25
  %v88 = vunpack.c.l.b16 %v26
  %v89 = vunpack.c.h.b16 %v26
  %v90 = vunpack.c.l.b16 %v27
  %v91 = vunpack.c.h.b16 %v27
  %v92 = vunpack.c.l.b16 %v28
  %v93 = vunpack.c.h.b16 %v28
  %v94 = vunpack.c.l.b16 %v29
  %v95 = vunpack.c.h.b16 %v29
  %v96 = vunpack.c.l.b16 %v30
  %v97 = vunpack.c.h.b16 %v30
  %v98 = vunpack.c.l.b16 %v31
  %v99 = vunpack.c.h.b16 %v31
  %v100 = vunpack.c.l.b16 %v32
  %v101 = vunpack.c.h.b16 %v32
  %v102 = vunpack.c.l.b16 %v33
  %v103 = vunpack.c.h.b16 %v33
  %v104 = vunpack.c.l.b16 %v34
  %v105 = vunpack.c.h.b16 %v34
  %v106 = vunpack.c.l.b16 %v35
  %v107 = vunpack.c.h.b16 %v35
  %v108 = vunpack.c.l.b16 %v36
  %v109 = vunpack.c.h.b16 %v36
  %v110 = vpack.c.b16 %v80, %v78
  %v111 = vpack.c.b16 %v81, %v79
  %v112 = vpack.c.b16 %v84, %v82
  %v113 = vpack.c.b16 %v85, %v83
  %v114 = vpack.c.b16 %v88, %v86
  %v115 = vpack.c.b16 %v89, %v87
  %v116 = vpack.c.b16 %v92, %v90
  %v117 = vpack.c.b16 %v93, %v91
  %v118 = vpack.c.b16 %v96, %v94
  %v119 = vpack.c.b16 %v97, %v95
  %v120 = vpack.c.b16 %v100, %v98
  %v121 = vpack.c.b16 %v101, %v99
  %v122 = vpack.c.b16 %v104, %v102
  %v123 = vpack.c.b16 %v105, %v103
  %v124 = vpack.c.b16 %v108, %v106
  %v125 = vpack.c.b16 %v109, %v107
  %v152 = vunpack.c.l.b16 %v37
  %v153 = vunpack.c.l.b16 %v38
  %v154 = vunpack.c.l.b16 %v39
  %v155 = vunpack.c.l.b16 %v40
  %v156 = vunpack.c.l.b16 %v41
  %v157 = vunpack.c.l.b16 %v42
  %v158 = vunpack.c.l.b16 %v43
  %v159 = vunpack.c.l.b16 %v44
  %v160 = vunpack.c.l.b16 %v45
  %v161 = vunpack.c.l.b16 %v46
  %v162 = vunpack.c.l.b16 %v47
  %v163 = vunpack.c.l.b16 %v48
  %v164 = vunpack.c.l.b16 %v49
  %v165 = vunpack.c.l.b16 %v50
  %v166 = vunpack.c.l.b16 %v51
  %v167 = vunpack.c.l.b16 %v52
  %v168 = vunpack.c.l.b16 %v53
  %v169 = vunpack.c.l.b16 %v54
  %v170 = vpack.c.b16 %v153, %v152
  %v171 = vpack.c.b16 %v155, %v154
  %v172 = vpack.c.b16 %v157, %v156
  %v173 = vpack.c.b16 %v159, %v158
  %v174 = vpack.c.b16 %v161, %v160
  %v175 = vpack.c.b16 %v163, %v162
  %v176 = vpack.c.b16 %v165, %v164
  %v177 = vpack.c.b16 %v167, %v166
  %v178 = vpack.c.b16 %v169, %v168
  %vm188 = vcmask 130048
  %v190 = vsel %vm188, %v111, 0
  %v193 = vsel %vm188, %v113, 0
  %v196 = vsel %vm188, %v115, 0
  %v199 = vsel %vm188, %v117, 0
  %v202 = vsel %vm188, %v119, 0
  %v205 = vsel %vm188, %v121, 0
  %v208 = vsel %vm188, %v123, 0
  %v211 = vsel %vm188, %v125, 0
  %213 = vmatprep.subr.bf16.mxu0 0
  %214 = vmatpush1.bf16.msra.mxu0 %v177
  %215 = vmatprep.subr.bf16.mxu0 0
  %216 = vmatpush1.bf16.msra.mxu0 %v176
  %217 = vmatprep.subr.bf16.mxu0 0
  %218 = vmatpush1.bf16.msra.mxu0 %v175
  %219 = vmatprep.subr.bf16.mxu0 0
  %220 = vmatpush1.bf16.msra.mxu0 %v174
  %221 = vmatprep.subr.bf16.mxu0 0
  %222 = vmatpush1.bf16.msra.mxu0 %v173
  %223 = vmatprep.subr.bf16.mxu0 0
  %224 = vmatpush1.bf16.msra.mxu0 %v172
  %225 = vmatprep.subr.bf16.mxu0 0
  %226 = vmatpush1.bf16.msra.mxu0 %v171
  %227 = vmatprep.subr.bf16.mxu0 0
  %228 = vmatpush1.bf16.msra.mxu0 %v170
  %229 = vmatprep.subr.bf16.mxu0 0
  %230 = vmatpush2.bf16.msra.mxu0 0
  %231 = vmatprep.subr.bf16.mxu0 0
  %232 = vmatpush2.bf16.msra.mxu0 0
  %233 = vmatprep.subr.bf16.mxu0 0
  %234 = vmatpush2.bf16.msra.mxu0 0
  %235 = vmatprep.subr.bf16.mxu0 0
  %236 = vmatpush2.bf16.msra.mxu0 0
  %237 = vmatprep.subr.bf16.mxu0 0
  %238 = vmatpush2.bf16.msra.mxu0 0
  %239 = vmatprep.subr.bf16.mxu0 0
  %240 = vmatpush2.bf16.msra.mxu0 0
  %241 = vmatprep.subr.bf16.mxu0 0
  %242 = vmatpush2.bf16.msra.mxu0 0
  %243 = vmatprep.subr.bf16.mxu0 0
  %244 = vmatpush2.bf16.msra.mxu0 %v178
  %245 = vmatprep.mubr.bf16.mxu0 %v190
  %246 = vmatmul.mubr.bf16.gmra.mxu0 %v110
  %v247 = vpop.f32.mrf.mxu0
  %v248 = vadd.f32 %v60, %v247
  %v249 = vpop.f32.mrf.mxu0
  %v250 = vpop.f32.mrf.mxu0
  %v251 = vadd.f32 %v60, %v250
  %v252 = vpop.f32.mrf.mxu0
  %253 = vmatprep.mubr.bf16.mxu0 %v193
  %254 = vmatmul.mubr.bf16.gmra.mxu0 %v112
  %v255 = vpop.f32.mrf.mxu0
  %v256 = vadd.f32 %v60, %v255
  %v257 = vpop.f32.mrf.mxu0
  %v258 = vpop.f32.mrf.mxu0
  %v259 = vadd.f32 %v60, %v258
  %v260 = vpop.f32.mrf.mxu0
  %261 = vmatprep.mubr.bf16.mxu0 %v196
  %262 = vmatmul.mubr.bf16.gmra.mxu0 %v114
  %v263 = vpop.f32.mrf.mxu0
  %v264 = vadd.f32 %v60, %v263
  %v265 = vpop.f32.mrf.mxu0
  %v266 = vpop.f32.mrf.mxu0
  %v267 = vadd.f32 %v60, %v266
  %v268 = vpop.f32.mrf.mxu0
  %269 = vmatprep.mubr.bf16.mxu0 %v199
  %270 = vmatmul.mubr.bf16.gmra.mxu0 %v116
  %v271 = vpop.f32.mrf.mxu0
  %v272 = vadd.f32 %v60, %v271
  %v273 = vpop.f32.mrf.mxu0
  %v274 = vpop.f32.mrf.mxu0
  %v275 = vadd.f32 %v60, %v274
  %v276 = vpop.f32.mrf.mxu0
  %277 = vmatprep.mubr.bf16.mxu0 %v202
  %278 = vmatmul.mubr.bf16.gmra.mxu0 %v118
  %v279 = vpop.f32.mrf.mxu0
  %v280 = vadd.f32 %v60, %v279
  %v281 = vpop.f32.mrf.mxu0
  %v282 = vpop.f32.mrf.mxu0
  %v283 = vadd.f32 %v60, %v282
  %v284 = vpop.f32.mrf.mxu0
  %285 = vmatprep.mubr.bf16.mxu0 %v205
  %286 = vmatmul.mubr.bf16.gmra.mxu0 %v120
  %v287 = vpop.f32.mrf.mxu0
  %v288 = vadd.f32 %v60, %v287
  %v289 = vpop.f32.mrf.mxu0
  %v290 = vpop.f32.mrf.mxu0
  %v291 = vadd.f32 %v60, %v290
  %v292 = vpop.f32.mrf.mxu0
  %293 = vmatprep.mubr.bf16.mxu0 %v208
  %294 = vmatmul.mubr.bf16.gmra.mxu0 %v122
  %v295 = vpop.f32.mrf.mxu0
  %v296 = vadd.f32 %v60, %v295
  %v297 = vpop.f32.mrf.mxu0
  %v298 = vpop.f32.mrf.mxu0
  %v299 = vadd.f32 %v60, %v298
  %v300 = vpop.f32.mrf.mxu0
  %301 = vmatprep.mubr.bf16.mxu0 %v211
  %302 = vmatmul.mubr.bf16.gmra.mxu0 %v124
  %v303 = vpop.f32.mrf.mxu0
  %v304 = vadd.f32 %v60, %v303
  %v305 = vpop.f32.mrf.mxu0
  %v306 = vpop.f32.mrf.mxu0
  %v307 = vadd.f32 %v60, %v306
  %v308 = vpop.f32.mrf.mxu0
  %309 = vdwg.mxu0
  %v310 = vmax.f32 %v248, 0.0
  %v311 = vmax.f32 %v251, 0.0
  %v312 = vmax.f32 %v256, 0.0
  %v313 = vmax.f32 %v259, 0.0
  %v314 = vmax.f32 %v264, 0.0
  %v315 = vmax.f32 %v267, 0.0
  %v316 = vmax.f32 %v272, 0.0
  %v317 = vmax.f32 %v275, 0.0
  %v318 = vmax.f32 %v280, 0.0
  %v319 = vmax.f32 %v283, 0.0
  %v320 = vmax.f32 %v288, 0.0
  %v321 = vmax.f32 %v291, 0.0
  %v322 = vmax.f32 %v296, 0.0
  %v323 = vmax.f32 %v299, 0.0
  %v324 = vmax.f32 %v304, 0.0
  %v325 = vmax.f32 %v307, 0.0
  %v326 = vpack.c.bf16 %v311, %v310
  %v327 = vpack.c.bf16 %v313, %v312
  %v328 = vpack.c.bf16 %v315, %v314
  %v329 = vpack.c.bf16 %v317, %v316
  %v330 = vpack.c.bf16 %v319, %v318
  %v331 = vpack.c.bf16 %v321, %v320
  %v332 = vpack.c.bf16 %v323, %v322
  %v333 = vpack.c.bf16 %v325, %v324
  %v334 = vld [vmem:[%s3] sm:$0xf]
  %v335 = vld [vmem:[%s3 + $0x4] sm:$0xf]
  %v336 = vld [vmem:[%s3 + $0x8] sm:$0xf]
  %v337 = vld [vmem:[%s3 + $0xc] sm:$0xf]
  %v338 = vld [vmem:[%s4] sm:$0x1]
  %v340 = vlaneseq
  %v341 = vshrl.u32 %v340, 7
  %v342 = vsub.s32 0, %v341
  %v343 = vrot.slane %v338, %v342
  %v349 = vunpack.c.l.b16 %v334
  %v350 = vunpack.c.l.b16 %v335
  %v351 = vunpack.c.l.b16 %v336
  %v352 = vunpack.c.l.b16 %v337
  %v353 = vpack.c.b16 %v350, %v349
  %v354 = vpack.c.b16 %v352, %v351
  %vm357 = vcmask 261120
  %v359 = vsel %vm357, %v326, 0
  %v362 = vsel %vm357, %v327, 0
  %v365 = vsel %vm357, %v328, 0
  %v368 = vsel %vm357, %v329, 0
  %v371 = vsel %vm357, %v330, 0
  %v374 = vsel %vm357, %v331, 0
  %v377 = vsel %vm357, %v332, 0
  %v380 = vsel %vm357, %v333, 0
  %382 = vmatprep.subr.bf16.mxu0 0
  %383 = vmatpush1.bf16.msra.mxu0 0
  %384 = vmatprep.subr.bf16.mxu0 0
  %385 = vmatpush1.bf16.msra.mxu0 0
  %386 = vmatprep.subr.bf16.mxu0 0
  %387 = vmatpush1.bf16.msra.mxu0 0
  %388 = vmatprep.subr.bf16.mxu0 0
  %389 = vmatpush1.bf16.msra.mxu0 0
  %390 = vmatprep.subr.bf16.mxu0 0
  %391 = vmatpush1.bf16.msra.mxu0 0
  %392 = vmatprep.subr.bf16.mxu0 0
  %393 = vmatpush1.bf16.msra.mxu0 0
  %394 = vmatprep.subr.bf16.mxu0 0
  %395 = vmatpush1.bf16.msra.mxu0 %v354
  %396 = vmatprep.subr.bf16.mxu0 0
  %397 = vmatpush1.bf16.msra.mxu0 %v353
  %398 = vmatprep.subr.bf16.mxu0 0
  %399 = vmatpush2.bf16.msra.mxu0 0
  %400 = vmatprep.subr.bf16.mxu0 0
  %401 = vmatpush2.bf16.msra.mxu0 0
  %402 = vmatprep.subr.bf16.mxu0 0
  %403 = vmatpush2.bf16.msra.mxu0 0
  %404 = vmatprep.subr.bf16.mxu0 0
  %405 = vmatpush2.bf16.msra.mxu0 0
  %406 = vmatprep.subr.bf16.mxu0 0
  %407 = vmatpush2.bf16.msra.mxu0 0
  %408 = vmatprep.subr.bf16.mxu0 0
  %409 = vmatpush2.bf16.msra.mxu0 0
  %410 = vmatprep.subr.bf16.mxu0 0
  %411 = vmatpush2.bf16.msra.mxu0 0
  %412 = vmatprep.subr.bf16.mxu0 0
  %413 = vmatpush2.bf16.msra.mxu0 0
  %414 = vmatprep.mubr.bf16.mxu0 0
  %415 = vmatmul.mubr.bf16.gmra.mxu0 %v359
  %v416 = vpop.f32.mrf.mxu0
  %v417 = vadd.f32 %v343, %v416
  %v418 = vpop.f32.mrf.mxu0
  %v419 = vpop.f32.mrf.mxu0
  %v420 = vadd.f32 %v343, %v419
  %v421 = vpop.f32.mrf.mxu0
  %422 = vmatprep.mubr.bf16.mxu0 0
  %423 = vmatmul.mubr.bf16.gmra.mxu0 %v362
  %v424 = vpop.f32.mrf.mxu0
  %v425 = vadd.f32 %v343, %v424
  %v426 = vpop.f32.mrf.mxu0
  %v427 = vpop.f32.mrf.mxu0
  %v428 = vadd.f32 %v343, %v427
  %v429 = vpop.f32.mrf.mxu0
  %430 = vmatprep.mubr.bf16.mxu0 0
  %431 = vmatmul.mubr.bf16.gmra.mxu0 %v365
  %v432 = vpop.f32.mrf.mxu0
  %v433 = vadd.f32 %v343, %v432
  %v434 = vpop.f32.mrf.mxu0
  %v435 = vpop.f32.mrf.mxu0
  %v436 = vadd.f32 %v343, %v435
  %v437 = vpop.f32.mrf.mxu0
  %438 = vmatprep.mubr.bf16.mxu0 0
  %439 = vmatmul.mubr.bf16.gmra.mxu0 %v368
  %v440 = vpop.f32.mrf.mxu0
  %v441 = vadd.f32 %v343, %v440
  %v442 = vpop.f32.mrf.mxu0
  %v443 = vpop.f32.mrf.mxu0
  %v444 = vadd.f32 %v343, %v443
  %v445 = vpop.f32.mrf.mxu0
  %446 = vmatprep.mubr.bf16.mxu0 0
  %447 = vmatmul.mubr.bf16.gmra.mxu0 %v371
  %v448 = vpop.f32.mrf.mxu0
  %v449 = vadd.f32 %v343, %v448
  %v450 = vpop.f32.mrf.mxu0
  %v451 = vpop.f32.mrf.mxu0
  %v452 = vadd.f32 %v343, %v451
  %v453 = vpop.f32.mrf.mxu0
  %454 = vmatprep.mubr.bf16.mxu0 0
  %455 = vmatmul.mubr.bf16.gmra.mxu0 %v374
  %v456 = vpop.f32.mrf.mxu0
  %v457 = vadd.f32 %v343, %v456
  %v458 = vpop.f32.mrf.mxu0
  %v459 = vpop.f32.mrf.mxu0
  %v460 = vadd.f32 %v343, %v459
  %v461 = vpop.f32.mrf.mxu0
  %462 = vmatprep.mubr.bf16.mxu0 0
  %463 = vmatmul.mubr.bf16.gmra.mxu0 %v377
  %v464 = vpop.f32.mrf.mxu0
  %v465 = vadd.f32 %v343, %v464
  %v466 = vpop.f32.mrf.mxu0
  %v467 = vpop.f32.mrf.mxu0
  %v468 = vadd.f32 %v343, %v467
  %v469 = vpop.f32.mrf.mxu0
  %470 = vmatprep.mubr.bf16.mxu0 0
  %471 = vmatmul.mubr.bf16.gmra.mxu0 %v380
  %v472 = vpop.f32.mrf.mxu0
  %v473 = vadd.f32 %v343, %v472
  %v474 = vpop.f32.mrf.mxu0
  %v475 = vpop.f32.mrf.mxu0
  %v476 = vadd.f32 %v343, %v475
  %v477 = vpop.f32.mrf.mxu0
  %478 = vdwg.mxu0
  %v479 = vpack.c.bf16 %v420, %v417
  %v480 = vpack.c.bf16 %v428, %v425
  %v481 = vpack.c.bf16 %v436, %v433
  %v482 = vpack.c.bf16 %v444, %v441
  %v483 = vpack.c.bf16 %v452, %v449
  %v484 = vpack.c.bf16 %v460, %v457
  %v485 = vpack.c.bf16 %v468, %v465
  %v486 = vpack.c.bf16 %v476, %v473
  %v495 = vunpack.c.l.b16 %v479
  %v496 = vunpack.c.h.b16 %v479
  %v497 = vunpack.c.l.b16 %v480
  %v498 = vunpack.c.h.b16 %v480
  %v499 = vunpack.c.l.b16 %v481
  %v500 = vunpack.c.h.b16 %v481
  %v501 = vunpack.c.l.b16 %v482
  %v502 = vunpack.c.h.b16 %v482
  %v503 = vunpack.c.l.b16 %v483
  %v504 = vunpack.c.h.b16 %v483
  %v505 = vunpack.c.l.b16 %v484
  %v506 = vunpack.c.h.b16 %v484
  %v507 = vunpack.c.l.b16 %v485
  %v508 = vunpack.c.h.b16 %v485
  %v509 = vunpack.c.l.b16 %v486
  %v510 = vunpack.c.h.b16 %v486
  %v511 = vpack.c.b16 %v495, %v495
  %v512 = vpack.c.b16 %v496, %v496
  %v513 = vpack.c.b16 %v497, %v497
  %v514 = vpack.c.b16 %v498, %v498
  %v515 = vpack.c.b16 %v499, %v499
  %v516 = vpack.c.b16 %v500, %v500
  %v517 = vpack.c.b16 %v501, %v501
  %v518 = vpack.c.b16 %v502, %v502
  %v519 = vpack.c.b16 %v503, %v503
  %v520 = vpack.c.b16 %v504, %v504
  %v521 = vpack.c.b16 %v505, %v505
  %v522 = vpack.c.b16 %v506, %v506
  %v523 = vpack.c.b16 %v507, %v507
  %v524 = vpack.c.b16 %v508, %v508
  %v525 = vpack.c.b16 %v509, %v509
  %v526 = vpack.c.b16 %v510, %v510
  %vm543 = vcmask 257024
  %544 = vst.msk [vmem:[%s5] sm:$0xf] %vm543, %v511
  %545 = vst.msk [vmem:[%s5 + $0x4] sm:$0xf] %vm543, %v512
  %546 = vst.msk [vmem:[%s5 + $0x8] sm:$0xf] %vm543, %v513
  %547 = vst.msk [vmem:[%s5 + $0xc] sm:$0xf] %vm543, %v514
  %548 = vst.msk [vmem:[%s5 + $0x10] sm:$0xf] %vm543, %v515
  %549 = vst.msk [vmem:[%s5 + $0x14] sm:$0xf] %vm543, %v516
  %550 = vst.msk [vmem:[%s5 + $0x18] sm:$0xf] %vm543, %v517
  %551 = vst.msk [vmem:[%s5 + $0x1c] sm:$0xf] %vm543, %v518
  %552 = vst.msk [vmem:[%s5 + $0x20] sm:$0xf] %vm543, %v519
  %553 = vst.msk [vmem:[%s5 + $0x24] sm:$0xf] %vm543, %v520
  %554 = vst.msk [vmem:[%s5 + $0x28] sm:$0xf] %vm543, %v521
  %555 = vst.msk [vmem:[%s5 + $0x2c] sm:$0xf] %vm543, %v522
  %556 = vst.msk [vmem:[%s5 + $0x30] sm:$0xf] %vm543, %v523
  %557 = vst.msk [vmem:[%s5 + $0x34] sm:$0xf] %vm543, %v524
  %558 = vst.msk [vmem:[%s5 + $0x38] sm:$0xf] %vm543, %v525
  %559 = vst.msk [vmem:[%s5 + $0x3c] sm:$0xf] %vm543, %v526
  // Predicated region
  $region22: #{smoothtext_forward.4} parent=0 // pred_check
    _
  $region23: #{smoothtext_forward.4} parent=0 // pred_check_branch
    %561 = sbr.rel (0) target = $region25
  $region24: #{smoothtext_forward.4} parent=0 // pred_region
    _
  $region25: #{smoothtext_forward.4} parent=0 // pred_fallthru
    _
  // Predicated region
  $region26: #{smoothtext_forward.4} parent=0 // pred_check
    _
  $region27: #{smoothtext_forward.4} parent=0 // pred_check_branch
    %563 = sbr.rel (0) target = $region29
  $region28: #{smoothtext_forward.4} parent=0 // pred_region
    _
  $region29: #{smoothtext_forward.4} parent=0 // pred_fallthru
    _

// kernel: smoothtext_forward.5
$region0: #{smoothtext_forward.5}
  #allocation0 [shape = 'u32[]', space=smem, size = 0x4, offset = 0x4, fixed_abs, tag = 'smem constant byte address 0x4 - core index']
  #allocation1 [shape = 'u32[144,128]{1,0:T(1,128)}', space=vmem, size = 0x12000, scoped, tag = 'internal scratch']
  %s0 = inlined_call_operand.vmem [shape: bf16[512,288], index: 0, kind: input, shape index: {}]
  %s1 = inlined_call_operand.vmem [shape: bf16[288,12], index: 1, kind: input, shape index: {}]
  %s2 = inlined_call_operand.vmem [shape: f32[1,12], index: 2, kind: input, shape index: {}]
  %s3 = inlined_call_operand.vmem [shape: f32[512,12], index: 3, kind: output, shape index: {}]
  %s4 = sld [smem:[#allocation0]]
  $region22: #{smoothtext_forward.5} parent=0
    _
  %s6 = ssub.s32 1, %s4
  %s7 = scalar_select 0, %s6, %s4
  // Predicated region
  $region2: #{smoothtext_forward.5} parent=0 // pred_check
    _
  $region3: #{smoothtext_forward.5} parent=0 // pred_check_branch
    %9 = sbr.rel (0) target = $region5
  $region4: #{smoothtext_forward.5} parent=0 // pred_region
    _
  $region5: #{smoothtext_forward.5} parent=0 // pred_fallthru
    _
  // Predicated region
  $region6: #{smoothtext_forward.5} parent=0 // pred_check
    _
  $region7: #{smoothtext_forward.5} parent=0 // pred_check_branch
    %11 = sbr.rel (0) target = $region9
  $region8: #{smoothtext_forward.5} parent=0 // pred_region
    _
  $region9: #{smoothtext_forward.5} parent=0 // pred_fallthru
    _
  // Predicated region
  $region10: #{smoothtext_forward.5} parent=0 // pred_check
    _
  $region11: #{smoothtext_forward.5} parent=0 // pred_check_branch
    %13 = sbr.rel (0) target = $region13
  $region12: #{smoothtext_forward.5} parent=0 // pred_region
    _
  $region13: #{smoothtext_forward.5} parent=0 // pred_fallthru
    _
  %v15 = vld [vmem:[%s0] sm:$0xff]
  %v16 = vld [vmem:[%s0 + $0x8] sm:$0xf]
  %v17 = vld [vmem:[%s0 + $0xc] sm:$0xff]
  %v18 = vld [vmem:[%s0 + $0x14] sm:$0xf]
  %v19 = vld [vmem:[%s0 + $0x18] sm:$0xff]
  %v20 = vld [vmem:[%s0 + $0x20] sm:$0xf]
  %v21 = vld [vmem:[%s0 + $0x24] sm:$0xff]
  %v22 = vld [vmem:[%s0 + $0x2c] sm:$0xf]
  %v23 = vld [vmem:[%s0 + $0x30] sm:$0xff]
  %v24 = vld [vmem:[%s0 + $0x38] sm:$0xf]
  %v25 = vld [vmem:[%s0 + $0x3c] sm:$0xff]
  %v26 = vld [vmem:[%s0 + $0x44] sm:$0xf]
  %v27 = vld [vmem:[%s0 + $0x48] sm:$0xff]
  %v28 = vld [vmem:[%s0 + $0x50] sm:$0xf]
  %v29 = vld [vmem:[%s0 + $0x54] sm:$0xff]
  %v30 = vld [vmem:[%s0 + $0x5c] sm:$0xf]
  %v31 = vld [vmem:[%s0 + $0x60] sm:$0xff]
  %v32 = vld [vmem:[%s0 + $0x68] sm:$0xf]
  %v33 = vld [vmem:[%s0 + $0x6c] sm:$0xff]
  %v34 = vld [vmem:[%s0 + $0x74] sm:$0xf]
  %v35 = vld [vmem:[%s0 + $0x78] sm:$0xff]
  %v36 = vld [vmem:[%s0 + $0x80] sm:$0xf]
  %v37 = vld [vmem:[%s0 + $0x84] sm:$0xff]
  %v38 = vld [vmem:[%s0 + $0x8c] sm:$0xf]
  %v39 = vld [vmem:[%s0 + $0x90] sm:$0xff]
  %v40 = vld [vmem:[%s0 + $0x98] sm:$0xf]
  %v41 = vld [vmem:[%s0 + $0x9c] sm:$0xff]
  %v42 = vld [vmem:[%s0 + $0xa4] sm:$0xf]
  %v43 = vld [vmem:[%s0 + $0xa8] sm:$0xff]
  %v44 = vld [vmem:[%s0 + $0xb0] sm:$0xf]
  %v45 = vld [vmem:[%s0 + $0xb4] sm:$0xff]
  %v46 = vld [vmem:[%s0 + $0xbc] sm:$0xf]
  %v47 = vld [vmem:[%s0 + $0xc0] sm:$0xff]
  %v48 = vld [vmem:[%s0 + $0xc8] sm:$0xf]
  %v49 = vld [vmem:[%s0 + $0xcc] sm:$0xff]
  %v50 = vld [vmem:[%s0 + $0xd4] sm:$0xf]
  %v51 = vld [vmem:[%s0 + $0xd8] sm:$0xff]
  %v52 = vld [vmem:[%s0 + $0xe0] sm:$0xf]
  %v53 = vld [vmem:[%s0 + $0xe4] sm:$0xff]
  %v54 = vld [vmem:[%s0 + $0xec] sm:$0xf]
  %v55 = vld [vmem:[%s0 + $0xf0] sm:$0xff]
  %v56 = vld [vmem:[%s0 + $0xf8] sm:$0xf]
  %v57 = vld [vmem:[%s0 + $0xfc] sm:$0xff]
  %v58 = vld [vmem:[%s0 + $0x104] sm:$0xf]
  %v59 = vld [vmem:[%s0 + $0x108] sm:$0xff]
  %v60 = vld [vmem:[%s0 + $0x110] sm:$0xf]
  %v61 = vld [vmem:[%s0 + $0x114] sm:$0xff]
  %v62 = vld [vmem:[%s0 + $0x11c] sm:$0xf]
  %v63 = vld [vmem:[%s0 + $0x120] sm:$0xff]
  %v64 = vld [vmem:[%s0 + $0x128] sm:$0xf]
  %v65 = vld [vmem:[%s0 + $0x12c] sm:$0xff]
  %v66 = vld [vmem:[%s0 + $0x134] sm:$0xf]
  %v67 = vld [vmem:[%s0 + $0x138] sm:$0xff]
  %v68 = vld [vmem:[%s0 + $0x140] sm:$0xf]
  %v69 = vld [vmem:[%s0 + $0x144] sm:$0xff]
  %v70 = vld [vmem:[%s0 + $0x14c] sm:$0xf]
  %v71 = vld [vmem:[%s0 + $0x150] sm:$0xff]
  %v72 = vld [vmem:[%s0 + $0x158] sm:$0xf]
  %v73 = vld [vmem:[%s0 + $0x15c] sm:$0xff]
  %v74 = vld [vmem:[%s0 + $0x164] sm:$0xf]
  %v75 = vld [vmem:[%s0 + $0x168] sm:$0xff]
  %v76 = vld [vmem:[%s0 + $0x170] sm:$0xf]
  %v77 = vld [vmem:[%s0 + $0x174] sm:$0xff]
  %v78 = vld [vmem:[%s0 + $0x17c] sm:$0xf]
  %v79 = vld [vmem:[%s0 + $0x180] sm:$0xff]
  %v80 = vld [vmem:[%s0 + $0x188] sm:$0xf]
  %v81 = vld [vmem:[%s0 + $0x18c] sm:$0xff]
  %v82 = vld [vmem:[%s0 + $0x194] sm:$0xf]
  %v83 = vld [vmem:[%s0 + $0x198] sm:$0xff]
  %v84 = vld [vmem:[%s0 + $0x1a0] sm:$0xf]
  %v85 = vld [vmem:[%s0 + $0x1a4] sm:$0xff]
  %v86 = vld [vmem:[%s0 + $0x1ac] sm:$0xf]
  %v87 = vld [vmem:[%s0 + $0x1b0] sm:$0xff]
  %v88 = vld [vmem:[%s0 + $0x1b8] sm:$0xf]
  %v89 = vld [vmem:[%s0 + $0x1bc] sm:$0xff]
  %v90 = vld [vmem:[%s0 + $0x1c4] sm:$0xf]
  %v91 = vld [vmem:[%s0 + $0x1c8] sm:$0xff]
  %v92 = vld [vmem:[%s0 + $0x1d0] sm:$0xf]
  %v93 = vld [vmem:[%s0 + $0x1d4] sm:$0xff]
  %v94 = vld [vmem:[%s0 + $0x1dc] sm:$0xf]
  %v95 = vld [vmem:[%s0 + $0x1e0] sm:$0xff]
  %v96 = vld [vmem:[%s0 + $0x1e8] sm:$0xf]
  %v97 = vld [vmem:[%s0 + $0x1ec] sm:$0xff]
  %v98 = vld [vmem:[%s0 + $0x1f4] sm:$0xf]
  %v99 = vld [vmem:[%s0 + $0x1f8] sm:$0xff]
  %v100 = vld [vmem:[%s0 + $0x200] sm:$0xf]
  %v101 = vld [vmem:[%s0 + $0x204] sm:$0xff]
  %v102 = vld [vmem:[%s0 + $0x20c] sm:$0xf]
  %v103 = vld [vmem:[%s0 + $0x210] sm:$0xff]
  %v104 = vld [vmem:[%s0 + $0x218] sm:$0xf]
  %v105 = vld [vmem:[%s0 + $0x21c] sm:$0xff]
  %v106 = vld [vmem:[%s0 + $0x224] sm:$0xf]
  %v107 = vld [vmem:[%s0 + $0x228] sm:$0xff]
  %v108 = vld [vmem:[%s0 + $0x230] sm:$0xf]
  %v109 = vld [vmem:[%s0 + $0x234] sm:$0xff]
  %v110 = vld [vmem:[%s0 + $0x23c] sm:$0xf]
  %v111 = vld [vmem:[%s0 + $0x240] sm:$0xff]
  %v112 = vld [vmem:[%s0 + $0x248] sm:$0xf]
  %v113 = vld [vmem:[%s0 + $0x24c] sm:$0xff]
  %v114 = vld [vmem:[%s0 + $0x254] sm:$0xf]
  %v115 = vld [vmem:[%s0 + $0x258] sm:$0xff]
  %v116 = vld [vmem:[%s0 + $0x260] sm:$0xf]
  %v117 = vld [vmem:[%s0 + $0x264] sm:$0xff]
  %v118 = vld [vmem:[%s0 + $0x26c] sm:$0xf]
  %v119 = vld [vmem:[%s0 + $0x270] sm:$0xff]
  %v120 = vld [vmem:[%s0 + $0x278] sm:$0xf]
  %v121 = vld [vmem:[%s0 + $0x27c] sm:$0xff]
  %v122 = vld [vmem:[%s0 + $0x284] sm:$0xf]
  %v123 = vld [vmem:[%s0 + $0x288] sm:$0xff]
  %v124 = vld [vmem:[%s0 + $0x290] sm:$0xf]
  %v125 = vld [vmem:[%s0 + $0x294] sm:$0xff]
  %v126 = vld [vmem:[%s0 + $0x29c] sm:$0xf]
  %v127 = vld [vmem:[%s0 + $0x2a0] sm:$0xff]
  %v128 = vld [vmem:[%s0 + $0x2a8] sm:$0xf]
  %v129 = vld [vmem:[%s0 + $0x2ac] sm:$0xff]
  %v130 = vld [vmem:[%s0 + $0x2b4] sm:$0xf]
  %v131 = vld [vmem:[%s0 + $0x2b8] sm:$0xff]
  %v132 = vld [vmem:[%s0 + $0x2c0] sm:$0xf]
  %v133 = vld [vmem:[%s0 + $0x2c4] sm:$0xff]
  %v134 = vld [vmem:[%s0 + $0x2cc] sm:$0xf]
  %v135 = vld [vmem:[%s0 + $0x2d0] sm:$0xff]
  %v136 = vld [vmem:[%s0 + $0x2d8] sm:$0xf]
  %v137 = vld [vmem:[%s0 + $0x2dc] sm:$0xff]
  %v138 = vld [vmem:[%s0 + $0x2e4] sm:$0xf]
  %v139 = vld [vmem:[%s0 + $0x2e8] sm:$0xff]
  %v140 = vld [vmem:[%s0 + $0x2f0] sm:$0xf]
  %v141 = vld [vmem:[%s0 + $0x2f4] sm:$0xff]
  %v142 = vld [vmem:[%s0 + $0x2fc] sm:$0xf]
  %v143 = vld [vmem:[%s1] sm:$0xf]
  %v144 = vld [vmem:[%s1 + $0x4] sm:$0xf]
  %v145 = vld [vmem:[%s1 + $0x8] sm:$0xf]
  %v146 = vld [vmem:[%s1 + $0xc] sm:$0xf]
  %v147 = vld [vmem:[%s1 + $0x10] sm:$0xf]
  %v148 = vld [vmem:[%s1 + $0x14] sm:$0xf]
  %v149 = vld [vmem:[%s1 + $0x18] sm:$0xf]
  %v150 = vld [vmem:[%s1 + $0x1c] sm:$0xf]
  %v151 = vld [vmem:[%s1 + $0x20] sm:$0xf]
  %v152 = vld [vmem:[%s1 + $0x24] sm:$0xf]
  %v153 = vld [vmem:[%s1 + $0x28] sm:$0xf]
  %v154 = vld [vmem:[%s1 + $0x2c] sm:$0xf]
  %v155 = vld [vmem:[%s1 + $0x30] sm:$0xf]
  %v156 = vld [vmem:[%s1 + $0x34] sm:$0xf]
  %v157 = vld [vmem:[%s1 + $0x38] sm:$0xf]
  %v158 = vld [vmem:[%s1 + $0x3c] sm:$0xf]
  %v159 = vld [vmem:[%s1 + $0x40] sm:$0xf]
  %v160 = vld [vmem:[%s1 + $0x44] sm:$0xf]
  %v161 = vld [vmem:[%s1 + $0x48] sm:$0xf]
  %v162 = vld [vmem:[%s1 + $0x4c] sm:$0xf]
  %v163 = vld [vmem:[%s1 + $0x50] sm:$0xf]
  %v164 = vld [vmem:[%s1 + $0x54] sm:$0xf]
  %v165 = vld [vmem:[%s1 + $0x58] sm:$0xf]
  %v166 = vld [vmem:[%s1 + $0x5c] sm:$0xf]
  %v167 = vld [vmem:[%s1 + $0x60] sm:$0xf]
  %v168 = vld [vmem:[%s1 + $0x64] sm:$0xf]
  %v169 = vld [vmem:[%s1 + $0x68] sm:$0xf]
  %v170 = vld [vmem:[%s1 + $0x6c] sm:$0xf]
  %v171 = vld [vmem:[%s1 + $0x70] sm:$0xf]
  %v172 = vld [vmem:[%s1 + $0x74] sm:$0xf]
  %v173 = vld [vmem:[%s1 + $0x78] sm:$0xf]
  %v174 = vld [vmem:[%s1 + $0x7c] sm:$0xf]
  %v175 = vld [vmem:[%s1 + $0x80] sm:$0xf]
  %v176 = vld [vmem:[%s1 + $0x84] sm:$0xf]
  %v177 = vld [vmem:[%s1 + $0x88] sm:$0xf]
  %v178 = vld [vmem:[%s1 + $0x8c] sm:$0xf]
  %v179 = vld [vmem:[%s2] sm:$0x1]
  %v181 = vlaneseq
  %v182 = vshrl.u32 %v181, 7
  %v183 = vsub.s32 0, %v182
  %v184 = vrot.slane %v179, %v183
  %v314 = vunpack.c.l.b16 %v15
  %v315 = vunpack.c.h.b16 %v15
  %v316 = vunpack.c.l.b16 %v16
  %v317 = vunpack.c.l.b16 %v17
  %v318 = vunpack.c.h.b16 %v17
  %v319 = vunpack.c.l.b16 %v18
  %v320 = vunpack.c.l.b16 %v19
  %v321 = vunpack.c.h.b16 %v19
  %v322 = vunpack.c.l.b16 %v20
  %v323 = vunpack.c.l.b16 %v21
  %v324 = vunpack.c.h.b16 %v21
  %v325 = vunpack.c.l.b16 %v22
  %v326 = vunpack.c.l.b16 %v23
  %v327 = vunpack.c.h.b16 %v23
  %v328 = vunpack.c.l.b16 %v24
  %v329 = vunpack.c.l.b16 %v25
  %v330 = vunpack.c.h.b16 %v25
  %v331 = vunpack.c.l.b16 %v26
  %v332 = vunpack.c.l.b16 %v27
  %v333 = vunpack.c.h.b16 %v27
  %v334 = vunpack.c.l.b16 %v28
  %v335 = vunpack.c.l.b16 %v29
  %v336 = vunpack.c.h.b16 %v29
  %v337 = vunpack.c.l.b16 %v30
  %v338 = vunpack.c.l.b16 %v31
  %v339 = vunpack.c.h.b16 %v31
  %v340 = vunpack.c.l.b16 %v32
  %v341 = vunpack.c.l.b16 %v33
  %v342 = vunpack.c.h.b16 %v33
  %v343 = vunpack.c.l.b16 %v34
  %v344 = vunpack.c.l.b16 %v35
  %v345 = vunpack.c.h.b16 %v35
  %v346 = vunpack.c.l.b16 %v36
  %v347 = vunpack.c.l.b16 %v37
  %v348 = vunpack.c.h.b16 %v37
  %v349 = vunpack.c.l.b16 %v38
  %v350 = vunpack.c.l.b16 %v39
  %v351 = vunpack.c.h.b16 %v39
  %v352 = vunpack.c.l.b16 %v40
  %v353 = vunpack.c.l.b16 %v41
  %v354 = vunpack.c.h.b16 %v41
  %v355 = vunpack.c.l.b16 %v42
  %v356 = vunpack.c.l.b16 %v43
  %v357 = vunpack.c.h.b16 %v43
  %v358 = vunpack.c.l.b16 %v44
  %v359 = vunpack.c.l.b16 %v45
  %v360 = vunpack.c.h.b16 %v45
  %v361 = vunpack.c.l.b16 %v46
  %v362 = vunpack.c.l.b16 %v47
  %v363 = vunpack.c.h.b16 %v47
  %v364 = vunpack.c.l.b16 %v48
  %v365 = vunpack.c.l.b16 %v49
  %v366 = vunpack.c.h.b16 %v49
  %v367 = vunpack.c.l.b16 %v50
  %v368 = vunpack.c.l.b16 %v51
  %v369 = vunpack.c.h.b16 %v51
  %v370 = vunpack.c.l.b16 %v52
  %v371 = vunpack.c.l.b16 %v53
  %v372 = vunpack.c.h.b16 %v53
  %v373 = vunpack.c.l.b16 %v54
  %v374 = vunpack.c.l.b16 %v55
  %v375 = vunpack.c.h.b16 %v55
  %v376 = vunpack.c.l.b16 %v56
  %v377 = vunpack.c.l.b16 %v57
  %v378 = vunpack.c.h.b16 %v57
  %v379 = vunpack.c.l.b16 %v58
  %v380 = vunpack.c.l.b16 %v59
  %v381 = vunpack.c.h.b16 %v59
  %v382 = vunpack.c.l.b16 %v60
  %v383 = vunpack.c.l.b16 %v61
  %v384 = vunpack.c.h.b16 %v61
  %v385 = vunpack.c.l.b16 %v62
  %v386 = vunpack.c.l.b16 %v63
  %v387 = vunpack.c.h.b16 %v63
  %v388 = vunpack.c.l.b16 %v64
  %v389 = vunpack.c.l.b16 %v65
  %v390 = vunpack.c.h.b16 %v65
  %v391 = vunpack.c.l.b16 %v66
  %v392 = vunpack.c.l.b16 %v67
  %v393 = vunpack.c.h.b16 %v67
  %v394 = vunpack.c.l.b16 %v68
  %v395 = vunpack.c.l.b16 %v69
  %v396 = vunpack.c.h.b16 %v69
  %v397 = vunpack.c.l.b16 %v70
  %v398 = vunpack.c.l.b16 %v71
  %v399 = vunpack.c.h.b16 %v71
  %v400 = vunpack.c.l.b16 %v72
  %v401 = vunpack.c.l.b16 %v73
  %v402 = vunpack.c.h.b16 %v73
  %v403 = vunpack.c.l.b16 %v74
  %v404 = vunpack.c.l.b16 %v75
  %v405 = vunpack.c.h.b16 %v75
  %v406 = vunpack.c.l.b16 %v76
  %v407 = vunpack.c.l.b16 %v77
  %v408 = vunpack.c.h.b16 %v77
  %v409 = vunpack.c.l.b16 %v78
  %v410 = vunpack.c.l.b16 %v79
  %v411 = vunpack.c.h.b16 %v79
  %v412 = vunpack.c.l.b16 %v80
  %v413 = vunpack.c.l.b16 %v81
  %v414 = vunpack.c.h.b16 %v81
  %v415 = vunpack.c.l.b16 %v82
  %v416 = vunpack.c.l.b16 %v83
  %v417 = vunpack.c.h.b16 %v83
  %v418 = vunpack.c.l.b16 %v84
  %v419 = vunpack.c.l.b16 %v85
  %v420 = vunpack.c.h.b16 %v85
  %v421 = vunpack.c.l.b16 %v86
  %v422 = vunpack.c.l.b16 %v87
  %v423 = vunpack.c.h.b16 %v87
  %v424 = vunpack.c.l.b16 %v88
  %v425 = vunpack.c.l.b16 %v89
  %v426 = vunpack.c.h.b16 %v89
  %v427 = vunpack.c.l.b16 %v90
  %v428 = vunpack.c.l.b16 %v91
  %v429 = vunpack.c.h.b16 %v91
  %v430 = vunpack.c.l.b16 %v92
  %v431 = vunpack.c.l.b16 %v93
  %v432 = vunpack.c.h.b16 %v93
  %v433 = vunpack.c.l.b16 %v94
  %v434 = vunpack.c.l.b16 %v95
  %v435 = vunpack.c.h.b16 %v95
  %v436 = vunpack.c.l.b16 %v96
  %v437 = vunpack.c.l.b16 %v97
  %v438 = vunpack.c.h.b16 %v97
  %v439 = vunpack.c.l.b16 %v98
  %v440 = vunpack.c.l.b16 %v99
  %v441 = vunpack.c.h.b16 %v99
  %v442 = vunpack.c.l.b16 %v100
  %v443 = vunpack.c.l.b16 %v101
  %v444 = vunpack.c.h.b16 %v101
  %v445 = vunpack.c.l.b16 %v102
  %v446 = vunpack.c.l.b16 %v103
  %v447 = vunpack.c.h.b16 %v103
  %v448 = vunpack.c.l.b16 %v104
  %v449 = vunpack.c.l.b16 %v105
  %v450 = vunpack.c.h.b16 %v105
  %v451 = vunpack.c.l.b16 %v106
  %v452 = vunpack.c.l.b16 %v107
  %v453 = vunpack.c.h.b16 %v107
  %v454 = vunpack.c.l.b16 %v108
  %v455 = vunpack.c.l.b16 %v109
  %v456 = vunpack.c.h.b16 %v109
  %v457 = vunpack.c.l.b16 %v110
  %v458 = vunpack.c.l.b16 %v111
  %v459 = vunpack.c.h.b16 %v111
  %v460 = vunpack.c.l.b16 %v112
  %v461 = vunpack.c.l.b16 %v113
  %v462 = vunpack.c.h.b16 %v113
  %v463 = vunpack.c.l.b16 %v114
  %v464 = vunpack.c.l.b16 %v115
  %v465 = vunpack.c.h.b16 %v115
  %v466 = vunpack.c.l.b16 %v116
  %v467 = vunpack.c.l.b16 %v117
  %v468 = vunpack.c.h.b16 %v117
  %v469 = vunpack.c.l.b16 %v118
  %v470 = vunpack.c.l.b16 %v119
  %v471 = vunpack.c.h.b16 %v119
  %v472 = vunpack.c.l.b16 %v120
  %v473 = vunpack.c.l.b16 %v121
  %v474 = vunpack.c.h.b16 %v121
  %v475 = vunpack.c.l.b16 %v122
  %v476 = vunpack.c.l.b16 %v123
  %v477 = vunpack.c.h.b16 %v123
  %v478 = vunpack.c.l.b16 %v124
  %v479 = vunpack.c.l.b16 %v125
  %v480 = vunpack.c.h.b16 %v125
  %v481 = vunpack.c.l.b16 %v126
  %v482 = vunpack.c.l.b16 %v127
  %v483 = vunpack.c.h.b16 %v127
  %v484 = vunpack.c.l.b16 %v128
  %v485 = vunpack.c.l.b16 %v129
  %v486 = vunpack.c.h.b16 %v129
  %v487 = vunpack.c.l.b16 %v130
  %v488 = vunpack.c.l.b16 %v131
  %v489 = vunpack.c.h.b16 %v131
  %v490 = vunpack.c.l.b16 %v132
  %v491 = vunpack.c.l.b16 %v133
  %v492 = vunpack.c.h.b16 %v133
  %v493 = vunpack.c.l.b16 %v134
  %v494 = vunpack.c.l.b16 %v135
  %v495 = vunpack.c.h.b16 %v135
  %v496 = vunpack.c.l.b16 %v136
  %v497 = vunpack.c.l.b16 %v137
  %v498 = vunpack.c.h.b16 %v137
  %v499 = vunpack.c.l.b16 %v138
  %v500 = vunpack.c.l.b16 %v139
  %v501 = vunpack.c.h.b16 %v139
  %v502 = vunpack.c.l.b16 %v140
  %v503 = vunpack.c.l.b16 %v141
  %v504 = vunpack.c.h.b16 %v141
  %v505 = vunpack.c.l.b16 %v142
  %v506 = vpack.c.b16 %v317, %v314
  %v507 = vpack.c.b16 %v318, %v315
  %v508 = vpack.c.b16 %v319, %v316
  %v509 = vpack.c.b16 %v323, %v320
  %v510 = vpack.c.b16 %v324, %v321
  %v511 = vpack.c.b16 %v325, %v322
  %v512 = vpack.c.b16 %v329, %v326
  %v513 = vpack.c.b16 %v330, %v327
  %v514 = vpack.c.b16 %v331, %v328
  %v515 = vpack.c.b16 %v335, %v332
  %v516 = vpack.c.b16 %v336, %v333
  %v517 = vpack.c.b16 %v337, %v334
  %v518 = vpack.c.b16 %v341, %v338
  %v519 = vpack.c.b16 %v342, %v339
  %v520 = vpack.c.b16 %v343, %v340
  %v521 = vpack.c.b16 %v347, %v344
  %v522 = vpack.c.b16 %v348, %v345
  %v523 = vpack.c.b16 %v349, %v346
  %v524 = vpack.c.b16 %v353, %v350
  %v525 = vpack.c.b16 %v354, %v351
  %v526 = vpack.c.b16 %v355, %v352
  %v527 = vpack.c.b16 %v359, %v356
  %v528 = vpack.c.b16 %v360, %v357
  %v529 = vpack.c.b16 %v361, %v358
  %v530 = vpack.c.b16 %v365, %v362
  %v531 = vpack.c.b16 %v366, %v363
  %v532 = vpack.c.b16 %v367, %v364
  %v533 = vpack.c.b16 %v371, %v368
  %v534 = vpack.c.b16 %v372, %v369
  %v535 = vpack.c.b16 %v373, %v370
  %v536 = vpack.c.b16 %v377, %v374
  %v537 = vpack.c.b16 %v378, %v375
  %v538 = vpack.c.b16 %v379, %v376
  %v539 = vpack.c.b16 %v383, %v380
  %v540 = vpack.c.b16 %v384, %v381
  %v541 = vpack.c.b16 %v385, %v382
  %v542 = vpack.c.b16 %v389, %v386
  %v543 = vpack.c.b16 %v390, %v387
  %v544 = vpack.c.b16 %v391, %v388
  %v545 = vpack.c.b16 %v395, %v392
  %v546 = vpack.c.b16 %v396, %v393
  %v547 = vpack.c.b16 %v397, %v394
  %v548 = vpack.c.b16 %v401, %v398
  %v549 = vpack.c.b16 %v402, %v399
  %v550 = vpack.c.b16 %v403, %v400
  %v551 = vpack.c.b16 %v407, %v404
  %v552 = vpack.c.b16 %v408, %v405
  %v553 = vpack.c.b16 %v409, %v406
  %v554 = vpack.c.b16 %v413, %v410
  %v555 = vpack.c.b16 %v414, %v411
  %v556 = vpack.c.b16 %v415, %v412
  %v557 = vpack.c.b16 %v419, %v416
  %v558 = vpack.c.b16 %v420, %v417
  %v559 = vpack.c.b16 %v421, %v418
  %v560 = vpack.c.b16 %v425, %v422
  %v561 = vpack.c.b16 %v426, %v423
  %v562 = vpack.c.b16 %v427, %v424
  %v563 = vpack.c.b16 %v431, %v428
  %v564 = vpack.c.b16 %v432, %v429
  %v565 = vpack.c.b16 %v433, %v430
  %v566 = vpack.c.b16 %v437, %v434
  %v567 = vpack.c.b16 %v438, %v435
  %v568 = vpack.c.b16 %v439, %v436
  %v569 = vpack.c.b16 %v443, %v440
  %v570 = vpack.c.b16 %v444, %v441
  %v571 = vpack.c.b16 %v445, %v442
  %v572 = vpack.c.b16 %v449, %v446
  %v573 = vpack.c.b16 %v450, %v447
  %v574 = vpack.c.b16 %v451, %v448
  %v575 = vpack.c.b16 %v455, %v452
  %v576 = vpack.c.b16 %v456, %v453
  %v577 = vpack.c.b16 %v457, %v454
  %v578 = vpack.c.b16 %v461, %v458
  %v579 = vpack.c.b16 %v462, %v459
  %v580 = vpack.c.b16 %v463, %v460
  %v581 = vpack.c.b16 %v467, %v464
  %v582 = vpack.c.b16 %v468, %v465
  %v583 = vpack.c.b16 %v469, %v466
  %v584 = vpack.c.b16 %v473, %v470
  %v585 = vpack.c.b16 %v474, %v471
  %v586 = vpack.c.b16 %v475, %v472
  %v587 = vpack.c.b16 %v479, %v476
  %v588 = vpack.c.b16 %v480, %v477
  %v589 = vpack.c.b16 %v481, %v478
  %v590 = vpack.c.b16 %v485, %v482
  %v591 = vpack.c.b16 %v486, %v483
  %v592 = vpack.c.b16 %v487, %v484
  %v593 = vpack.c.b16 %v491, %v488
  %v594 = vpack.c.b16 %v492, %v489
  %v595 = vpack.c.b16 %v493, %v490
  %v596 = vpack.c.b16 %v497, %v494
  %v597 = vpack.c.b16 %v498, %v495
  %v598 = vpack.c.b16 %v499, %v496
  %v599 = vpack.c.b16 %v503, %v500
  %v600 = vpack.c.b16 %v504, %v501
  %v601 = vpack.c.b16 %v505, %v502
  %v702 = vunpack.c.l.b16 %v143
  %v703 = vunpack.c.l.b16 %v144
  %v704 = vunpack.c.l.b16 %v145
  %v705 = vunpack.c.l.b16 %v146
  %v706 = vunpack.c.l.b16 %v147
  %v707 = vunpack.c.l.b16 %v148
  %v708 = vunpack.c.l.b16 %v149
  %v709 = vunpack.c.l.b16 %v150
  %v710 = vunpack.c.l.b16 %v151
  %v711 = vunpack.c.l.b16 %v152
  %v712 = vunpack.c.l.b16 %v153
  %v713 = vunpack.c.l.b16 %v154
  %v714 = vunpack.c.l.b16 %v155
  %v715 = vunpack.c.l.b16 %v156
  %v716 = vunpack.c.l.b16 %v157
  %v717 = vunpack.c.l.b16 %v158
  %v718 = vunpack.c.l.b16 %v159
  %v719 = vunpack.c.l.b16 %v160
  %v720 = vunpack.c.l.b16 %v161
  %v721 = vunpack.c.l.b16 %v162
  %v722 = vunpack.c.l.b16 %v163
  %v723 = vunpack.c.l.b16 %v164
  %v724 = vunpack.c.l.b16 %v165
  %v725 = vunpack.c.l.b16 %v166
  %v726 = vunpack.c.l.b16 %v167
  %v727 = vunpack.c.l.b16 %v168
  %v728 = vunpack.c.l.b16 %v169
  %v729 = vunpack.c.l.b16 %v170
  %v730 = vunpack.c.l.b16 %v171
  %v731 = vunpack.c.l.b16 %v172
  %v732 = vunpack.c.l.b16 %v173
  %v733 = vunpack.c.l.b16 %v174
  %v734 = vunpack.c.l.b16 %v175
  %v735 = vunpack.c.l.b16 %v176
  %v736 = vunpack.c.l.b16 %v177
  %v737 = vunpack.c.l.b16 %v178
  %v738 = vpack.c.b16 %v703, %v702
  %v739 = vpack.c.b16 %v705, %v704
  %v740 = vpack.c.b16 %v707, %v706
  %v741 = vpack.c.b16 %v709, %v708
  %v742 = vpack.c.b16 %v711, %v710
  %v743 = vpack.c.b16 %v713, %v712
  %v744 = vpack.c.b16 %v715, %v714
  %v745 = vpack.c.b16 %v717, %v716
  %v746 = vpack.c.b16 %v719, %v718
  %v747 = vpack.c.b16 %v721, %v720
  %v748 = vpack.c.b16 %v723, %v722
  %v749 = vpack.c.b16 %v725, %v724
  %v750 = vpack.c.b16 %v727, %v726
  %v751 = vpack.c.b16 %v729, %v728
  %v752 = vpack.c.b16 %v731, %v730
  %v753 = vpack.c.b16 %v733, %v732
  %v754 = vpack.c.b16 %v735, %v734
  %v755 = vpack.c.b16 %v737, %v736
  %vm774 = vcmask 261120
  %v776 = vsel %vm774, %v508, 0
  %v779 = vsel %vm774, %v511, 0
  %v782 = vsel %vm774, %v514, 0
  %v785 = vsel %vm774, %v517, 0
  %v788 = vsel %vm774, %v520, 0
  %v791 = vsel %vm774, %v523, 0
  %v794 = vsel %vm774, %v526, 0
  %v797 = vsel %vm774, %v529, 0
  %v800 = vsel %vm774, %v532, 0
  %v803 = vsel %vm774, %v535, 0
  %v806 = vsel %vm774, %v538, 0
  %v809 = vsel %vm774, %v541, 0
  %v812 = vsel %vm774, %v544, 0
  %v815 = vsel %vm774, %v547, 0
  %v818 = vsel %vm774, %v550, 0
  %v821 = vsel %vm774, %v553, 0
  %v824 = vsel %vm774, %v556, 0
  %v827 = vsel %vm774, %v559, 0
  %v830 = vsel %vm774, %v562, 0
  %v833 = vsel %vm774, %v565, 0
  %v836 = vsel %vm774, %v568, 0
  %v839 = vsel %vm774, %v571, 0
  %v842 = vsel %vm774, %v574, 0
  %v845 = vsel %vm774, %v577, 0
  %v848 = vsel %vm774, %v580, 0
  %v851 = vsel %vm774, %v583, 0
  %v854 = vsel %vm774, %v586, 0
  %v857 = vsel %vm774, %v589, 0
  %v860 = vsel %vm774, %v592, 0
  %v863 = vsel %vm774, %v595, 0
  %v866 = vsel %vm774, %v598, 0
  %v869 = vsel %vm774, %v601, 0
  %871 = vmatprep.subr.bf16.mxu0 0
  %872 = vmatpush1.bf16.msra.mxu0 %v745
  %873 = vmatprep.subr.bf16.mxu0 0
  %874 = vmatpush1.bf16.msra.mxu0 %v744
  %875 = vmatprep.subr.bf16.mxu0 0
  %876 = vmatpush1.bf16.msra.mxu0 %v743
  %877 = vmatprep.subr.bf16.mxu0 0
  %878 = vmatpush1.bf16.msra.mxu0 %v742
  %879 = vmatprep.subr.bf16.mxu0 0
  %880 = vmatpush1.bf16.msra.mxu0 %v741
  %881 = vmatprep.subr.bf16.mxu0 0
  %882 = vmatpush1.bf16.msra.mxu0 %v740
  %883 = vmatprep.subr.bf16.mxu0 0
  %884 = vmatpush1.bf16.msra.mxu0 %v739
  %885 = vmatprep.subr.bf16.mxu0 0
  %886 = vmatpush1.bf16.msra.mxu0 %v738
  %887 = vmatprep.subr.bf16.mxu0 0
  %888 = vmatpush2.bf16.msra.mxu0 %v753
  %889 = vmatprep.subr.bf16.mxu0 0
  %890 = vmatpush2.bf16.msra.mxu0 %v752
  %891 = vmatprep.subr.bf16.mxu0 0
  %892 = vmatpush2.bf16.msra.mxu0 %v751
  %893 = vmatprep.subr.bf16.mxu0 0
  %894 = vmatpush2.bf16.msra.mxu0 %v750
  %895 = vmatprep.subr.bf16.mxu0 0
  %896 = vmatpush2.bf16.msra.mxu0 %v749
  %897 = vmatprep.subr.bf16.mxu0 0
  %898 = vmatpush2.bf16.msra.mxu0 %v748
  %899 = vmatprep.subr.bf16.mxu0 0
  %900 = vmatpush2.bf16.msra.mxu0 %v747
  %901 = vmatprep.subr.bf16.mxu0 0
  %902 = vmatpush2.bf16.msra.mxu0 %v746
  %903 = vmatprep.mubr.bf16.mxu0 %v507
  %904 = vmatmul.mubr.bf16.gmra.mxu0 %v506
  %v905 = vpop.f32.mrf.mxu0
  %v906 = vadd.f32 %v184, %v905
  %v907 = vpop.f32.mrf.mxu0
  %v908 = vpop.f32.mrf.mxu0
  %v909 = vadd.f32 %v184, %v908
  %v910 = vpop.f32.mrf.mxu0
  %911 = vmatprep.mubr.bf16.mxu0 %v510
  %912 = vmatmul.mubr.bf16.gmra.mxu0 %v509
  %v913 = vpop.f32.mrf.mxu0
  %v914 = vadd.f32 %v184, %v913
  %v915 = vpop.f32.mrf.mxu0
  %v916 = vpop.f32.mrf.mxu0
  %v917 = vadd.f32 %v184, %v916
  %v918 = vpop.f32.mrf.mxu0
  %919 = vmatprep.mubr.bf16.mxu0 %v513
  %920 = vmatmul.mubr.bf16.gmra.mxu0 %v512
  %v921 = vpop.f32.mrf.mxu0
  %v922 = vadd.f32 %v184, %v921
  %v923 = vpop.f32.mrf.mxu0
  %v924 = vpop.f32.mrf.mxu0
  %v925 = vadd.f32 %v184, %v924
  %v926 = vpop.f32.mrf.mxu0
  %927 = vmatprep.mubr.bf16.mxu0 %v516
  %928 = vmatmul.mubr.bf16.gmra.mxu0 %v515
  %v929 = vpop.f32.mrf.mxu0
  %v930 = vadd.f32 %v184, %v929
  %v931 = vpop.f32.mrf.mxu0
  %v932 = vpop.f32.mrf.mxu0
  %v933 = vadd.f32 %v184, %v932
  %v934 = vpop.f32.mrf.mxu0
  %935 = vmatprep.mubr.bf16.mxu0 %v519
  %936 = vmatmul.mubr.bf16.gmra.mxu0 %v518
  %v937 = vpop.f32.mrf.mxu0
  %v938 = vadd.f32 %v184, %v937
  %v939 = vpop.f32.mrf.mxu0
  %v940 = vpop.f32.mrf.mxu0
  %v941 = vadd.f32 %v184, %v940
  %v942 = vpop.f32.mrf.mxu0
  %943 = vmatprep.mubr.bf16.mxu0 %v522
  %944 = vmatmul.mubr.bf16.gmra.mxu0 %v521
  %v945 = vpop.f32.mrf.mxu0
  %v946 = vadd.f32 %v184, %v945
  %v947 = vpop.f32.mrf.mxu0
  %v948 = vpop.f32.mrf.mxu0
  %v949 = vadd.f32 %v184, %v948
  %v950 = vpop.f32.mrf.mxu0
  %951 = vmatprep.mubr.bf16.mxu0 %v525
  %952 = vmatmul.mubr.bf16.gmra.mxu0 %v524
  %v953 = vpop.f32.mrf.mxu0
  %v954 = vadd.f32 %v184, %v953
  %v955 = vpop.f32.mrf.mxu0
  %v956 = vpop.f32.mrf.mxu0
  %v957 = vadd.f32 %v184, %v956
  %v958 = vpop.f32.mrf.mxu0
  %959 = vmatprep.mubr.bf16.mxu0 %v528
  %960 = vmatmul.mubr.bf16.gmra.mxu0 %v527
  %v961 = vpop.f32.mrf.mxu0
  %v962 = vadd.f32 %v184, %v961
  %v963 = vpop.f32.mrf.mxu0
  %v964 = vpop.f32.mrf.mxu0
  %v965 = vadd.f32 %v184, %v964
  %v966 = vpop.f32.mrf.mxu0
  %967 = vmatprep.mubr.bf16.mxu0 %v531
  %968 = vmatmul.mubr.bf16.gmra.mxu0 %v530
  %v969 = vpop.f32.mrf.mxu0
  %v970 = vadd.f32 %v184, %v969
  %v971 = vpop.f32.mrf.mxu0
  %v972 = vpop.f32.mrf.mxu0
  %v973 = vadd.f32 %v184, %v972
  %v974 = vpop.f32.mrf.mxu0
  %975 = vmatprep.mubr.bf16.mxu0 %v534
  %976 = vmatmul.mubr.bf16.gmra.mxu0 %v533
  %v977 = vpop.f32.mrf.mxu0
  %v978 = vadd.f32 %v184, %v977
  %v979 = vpop.f32.mrf.mxu0
  %v980 = vpop.f32.mrf.mxu0
  %v981 = vadd.f32 %v184, %v980
  %v982 = vpop.f32.mrf.mxu0
  %983 = vmatprep.mubr.bf16.mxu0 %v537
  %984 = vmatmul.mubr.bf16.gmra.mxu0 %v536
  %v985 = vpop.f32.mrf.mxu0
  %v986 = vadd.f32 %v184, %v985
  %v987 = vpop.f32.mrf.mxu0
  %v988 = vpop.f32.mrf.mxu0
  %v989 = vadd.f32 %v184, %v988
  %v990 = vpop.f32.mrf.mxu0
  %991 = vmatprep.mubr.bf16.mxu0 %v540
  %992 = vmatmul.mubr.bf16.gmra.mxu0 %v539
  %v993 = vpop.f32.mrf.mxu0
  %v994 = vadd.f32 %v184, %v993
  %v995 = vpop.f32.mrf.mxu0
  %v996 = vpop.f32.mrf.mxu0
  %v997 = vadd.f32 %v184, %v996
  %v998 = vpop.f32.mrf.mxu0
  %999 = vmatprep.mubr.bf16.mxu0 %v543
  %1000 = vmatmul.mubr.bf16.gmra.mxu0 %v542
  %v1001 = vpop.f32.mrf.mxu0
  %v1002 = vadd.f32 %v184, %v1001
  %v1003 = vpop.f32.mrf.mxu0
  %v1004 = vpop.f32.mrf.mxu0
  %v1005 = vadd.f32 %v184, %v1004
  %v1006 = vpop.f32.mrf.mxu0
  %1007 = vmatprep.mubr.bf16.mxu0 %v546
  %1008 = vmatmul.mubr.bf16.gmra.mxu0 %v545
  %v1009 = vpop.f32.mrf.mxu0
  %v1010 = vadd.f32 %v184, %v1009
  %v1011 = vpop.f32.mrf.mxu0
  %v1012 = vpop.f32.mrf.mxu0
  %v1013 = vadd.f32 %v184, %v1012
  %v1014 = vpop.f32.mrf.mxu0
  %1015 = vmatprep.mubr.bf16.mxu0 %v549
  %1016 = vmatmul.mubr.bf16.gmra.mxu0 %v548
  %v1017 = vpop.f32.mrf.mxu0
  %v1018 = vadd.f32 %v184, %v1017
  %v1019 = vpop.f32.mrf.mxu0
  %v1020 = vpop.f32.mrf.mxu0
  %v1021 = vadd.f32 %v184, %v1020
  %v1022 = vpop.f32.mrf.mxu0
  %1023 = vmatprep.mubr.bf16.mxu0 %v552
  %1024 = vmatmul.mubr.bf16.gmra.mxu0 %v551
  %v1025 = vpop.f32.mrf.mxu0
  %v1026 = vadd.f32 %v184, %v1025
  %v1027 = vpop.f32.mrf.mxu0
  %v1028 = vpop.f32.mrf.mxu0
  %v1029 = vadd.f32 %v184, %v1028
  %v1030 = vpop.f32.mrf.mxu0
  %1031 = vmatprep.mubr.bf16.mxu0 %v555
  %1032 = vmatmul.mubr.bf16.gmra.mxu0 %v554
  %v1033 = vpop.f32.mrf.mxu0
  %v1034 = vadd.f32 %v184, %v1033
  %v1035 = vpop.f32.mrf.mxu0
  %v1036 = vpop.f32.mrf.mxu0
  %v1037 = vadd.f32 %v184, %v1036
  %v1038 = vpop.f32.mrf.mxu0
  %1039 = vmatprep.mubr.bf16.mxu0 %v558
  %1040 = vmatmul.mubr.bf16.gmra.mxu0 %v557
  %v1041 = vpop.f32.mrf.mxu0
  %v1042 = vadd.f32 %v184, %v1041
  %v1043 = vpop.f32.mrf.mxu0
  %v1044 = vpop.f32.mrf.mxu0
  %v1045 = vadd.f32 %v184, %v1044
  %v1046 = vpop.f32.mrf.mxu0
  %1047 = vmatprep.mubr.bf16.mxu0 %v561
  %1048 = vmatmul.mubr.bf16.gmra.mxu0 %v560
  %v1049 = vpop.f32.mrf.mxu0
  %v1050 = vadd.f32 %v184, %v1049
  %v1051 = vpop.f32.mrf.mxu0
  %v1052 = vpop.f32.mrf.mxu0
  %v1053 = vadd.f32 %v184, %v1052
  %v1054 = vpop.f32.mrf.mxu0
  %1055 = vmatprep.mubr.bf16.mxu0 %v564
  %1056 = vmatmul.mubr.bf16.gmra.mxu0 %v563
  %v1057 = vpop.f32.mrf.mxu0
  %v1058 = vadd.f32 %v184, %v1057
  %v1059 = vpop.f32.mrf.mxu0
  %v1060 = vpop.f32.mrf.mxu0
  %v1061 = vadd.f32 %v184, %v1060
  %v1062 = vpop.f32.mrf.mxu0
  %1063 = vmatprep.mubr.bf16.mxu0 %v567
  %1064 = vmatmul.mubr.bf16.gmra.mxu0 %v566
  %v1065 = vpop.f32.mrf.mxu0
  %v1066 = vadd.f32 %v184, %v1065
  %v1067 = vpop.f32.mrf.mxu0
  %v1068 = vpop.f32.mrf.mxu0
  %v1069 = vadd.f32 %v184, %v1068
  %v1070 = vpop.f32.mrf.mxu0
  %1071 = vmatprep.mubr.bf16.mxu0 %v570
  %1072 = vmatmul.mubr.bf16.gmra.mxu0 %v569
  %v1073 = vpop.f32.mrf.mxu0
  %v1074 = vadd.f32 %v184, %v1073
  %v1075 = vpop.f32.mrf.mxu0
  %v1076 = vpop.f32.mrf.mxu0
  %v1077 = vadd.f32 %v184, %v1076
  %v1078 = vpop.f32.mrf.mxu0
  %1079 = vmatprep.mubr.bf16.mxu0 %v573
  %1080 = vmatmul.mubr.bf16.gmra.mxu0 %v572
  %v1081 = vpop.f32.mrf.mxu0
  %v1082 = vadd.f32 %v184, %v1081
  %v1083 = vpop.f32.mrf.mxu0
  %v1084 = vpop.f32.mrf.mxu0
  %v1085 = vadd.f32 %v184, %v1084
  %v1086 = vpop.f32.mrf.mxu0
  %1087 = vmatprep.mubr.bf16.mxu0 %v576
  %1088 = vmatmul.mubr.bf16.gmra.mxu0 %v575
  %v1089 = vpop.f32.mrf.mxu0
  %v1090 = vadd.f32 %v184, %v1089
  %v1091 = vpop.f32.mrf.mxu0
  %v1092 = vpop.f32.mrf.mxu0
  %v1093 = vadd.f32 %v184, %v1092
  %v1094 = vpop.f32.mrf.mxu0
  %1095 = vmatprep.mubr.bf16.mxu0 %v579
  %1096 = vmatmul.mubr.bf16.gmra.mxu0 %v578
  %v1097 = vpop.f32.mrf.mxu0
  %v1098 = vadd.f32 %v184, %v1097
  %v1099 = vpop.f32.mrf.mxu0
  %v1100 = vpop.f32.mrf.mxu0
  %v1101 = vadd.f32 %v184, %v1100
  %v1102 = vpop.f32.mrf.mxu0
  %1103 = vmatprep.mubr.bf16.mxu0 %v582
  %1104 = vmatmul.mubr.bf16.gmra.mxu0 %v581
  %v1105 = vpop.f32.mrf.mxu0
  %v1106 = vadd.f32 %v184, %v1105
  %v1107 = vpop.f32.mrf.mxu0
  %v1108 = vpop.f32.mrf.mxu0
  %v1109 = vadd.f32 %v184, %v1108
  %v1110 = vpop.f32.mrf.mxu0
  %1111 = vmatprep.mubr.bf16.mxu0 %v585
  %1112 = vmatmul.mubr.bf16.gmra.mxu0 %v584
  %v1113 = vpop.f32.mrf.mxu0
  %v1114 = vadd.f32 %v184, %v1113
  %v1115 = vpop.f32.mrf.mxu0
  %v1116 = vpop.f32.mrf.mxu0
  %v1117 = vadd.f32 %v184, %v1116
  %v1118 = vpop.f32.mrf.mxu0
  %1119 = vmatprep.mubr.bf16.mxu0 %v588
  %1120 = vmatmul.mubr.bf16.gmra.mxu0 %v587
  %v1121 = vpop.f32.mrf.mxu0
  %v1122 = vadd.f32 %v184, %v1121
  %v1123 = vpop.f32.mrf.mxu0
  %v1124 = vpop.f32.mrf.mxu0
  %v1125 = vadd.f32 %v184, %v1124
  %v1126 = vpop.f32.mrf.mxu0
  %1127 = vmatprep.mubr.bf16.mxu0 %v591
  %1128 = vmatmul.mubr.bf16.gmra.mxu0 %v590
  %v1129 = vpop.f32.mrf.mxu0
  %v1130 = vadd.f32 %v184, %v1129
  %v1131 = vpop.f32.mrf.mxu0
  %v1132 = vpop.f32.mrf.mxu0
  %v1133 = vadd.f32 %v184, %v1132
  %v1134 = vpop.f32.mrf.mxu0
  %1135 = vmatprep.mubr.bf16.mxu0 %v594
  %1136 = vmatmul.mubr.bf16.gmra.mxu0 %v593
  %v1137 = vpop.f32.mrf.mxu0
  %v1138 = vadd.f32 %v184, %v1137
  %v1139 = vpop.f32.mrf.mxu0
  %v1140 = vpop.f32.mrf.mxu0
  %v1141 = vadd.f32 %v184, %v1140
  %v1142 = vpop.f32.mrf.mxu0
  %1143 = vmatprep.mubr.bf16.mxu0 %v597
  %1144 = vmatmul.mubr.bf16.gmra.mxu0 %v596
  %v1145 = vpop.f32.mrf.mxu0
  %v1146 = vadd.f32 %v184, %v1145
  %v1147 = vpop.f32.mrf.mxu0
  %v1148 = vpop.f32.mrf.mxu0
  %v1149 = vadd.f32 %v184, %v1148
  %v1150 = vpop.f32.mrf.mxu0
  %1151 = vmatprep.mubr.bf16.mxu0 %v600
  %1152 = vmatmul.mubr.bf16.gmra.mxu0 %v599
  %v1153 = vpop.f32.mrf.mxu0
  %v1154 = vadd.f32 %v184, %v1153
  %v1155 = vpop.f32.mrf.mxu0
  %v1156 = vpop.f32.mrf.mxu0
  %v1157 = vadd.f32 %v184, %v1156
  %v1158 = vpop.f32.mrf.mxu0
  %1159 = vdwg.mxu0
  %1160 = vmatprep.subr.bf16.mxu0 0
  %1161 = vmatpush1.bf16.msra.mxu0 0
  %1162 = vmatprep.subr.bf16.mxu0 0
  %1163 = vmatpush1.bf16.msra.mxu0 0
  %1164 = vmatprep.subr.bf16.mxu0 0
  %1165 = vmatpush1.bf16.msra.mxu0 0
  %1166 = vmatprep.subr.bf16.mxu0 0
  %1167 = vmatpush1.bf16.msra.mxu0 0
  %1168 = vmatprep.subr.bf16.mxu0 0
  %1169 = vmatpush1.bf16.msra.mxu0 0
  %1170 = vmatprep.subr.bf16.mxu0 0
  %1171 = vmatpush1.bf16.msra.mxu0 0
  %1172 = vmatprep.subr.bf16.mxu0 0
  %1173 = vmatpush1.bf16.msra.mxu0 %v755
  %1174 = vmatprep.subr.bf16.mxu0 0
  %1175 = vmatpush1.bf16.msra.mxu0 %v754
  %1176 = vmatprep.subr.bf16.mxu0 0
  %1177 = vmatpush2.bf16.msra.mxu0 0
  %1178 = vmatprep.subr.bf16.mxu0 0
  %1179 = vmatpush2.bf16.msra.mxu0 0
  %1180 = vmatprep.subr.bf16.mxu0 0
  %1181 = vmatpush2.bf16.msra.mxu0 0
  %1182 = vmatprep.subr.bf16.mxu0 0
  %1183 = vmatpush2.bf16.msra.mxu0 0
  %1184 = vmatprep.subr.bf16.mxu0 0
  %1185 = vmatpush2.bf16.msra.mxu0 0
  %1186 = vmatprep.subr.bf16.mxu0 0
  %1187 = vmatpush2.bf16.msra.mxu0 0
  %1188 = vmatprep.subr.bf16.mxu0 0
  %1189 = vmatpush2.bf16.msra.mxu0 0
  %1190 = vmatprep.subr.bf16.mxu0 0
  %1191 = vmatpush2.bf16.msra.mxu0 0
  %1192 = vmatprep.mubr.bf16.mxu0 0
  %1193 = vmatmul.mubr.bf16.gmra.mxu0 %v776
  %v1194 = vpop.f32.mrf.mxu0
  %v1195 = vadd.f32 %v906, %v1194
  %v1196 = vpop.f32.mrf.mxu0
  %v1197 = vpop.f32.mrf.mxu0
  %v1198 = vadd.f32 %v909, %v1197
  %v1199 = vpop.f32.mrf.mxu0
  %1200 = vmatprep.mubr.bf16.mxu0 0
  %1201 = vmatmul.mubr.bf16.gmra.mxu0 %v779
  %v1202 = vpop.f32.mrf.mxu0
  %v1203 = vadd.f32 %v914, %v1202
  %v1204 = vpop.f32.mrf.mxu0
  %v1205 = vpop.f32.mrf.mxu0
  %v1206 = vadd.f32 %v917, %v1205
  %v1207 = vpop.f32.mrf.mxu0
  %1208 = vmatprep.mubr.bf16.mxu0 0
  %1209 = vmatmul.mubr.bf16.gmra.mxu0 %v782
  %v1210 = vpop.f32.mrf.mxu0
  %v1211 = vadd.f32 %v922, %v1210
  %v1212 = vpop.f32.mrf.mxu0
  %v1213 = vpop.f32.mrf.mxu0
  %v1214 = vadd.f32 %v925, %v1213
  %v1215 = vpop.f32.mrf.mxu0
  %1216 = vmatprep.mubr.bf16.mxu0 0
  %1217 = vmatmul.mubr.bf16.gmra.mxu0 %v785
  %v1218 = vpop.f32.mrf.mxu0
  %v1219 = vadd.f32 %v930, %v1218
  %v1220 = vpop.f32.mrf.mxu0
  %v1221 = vpop.f32.mrf.mxu0
  %v1222 = vadd.f32 %v933, %v1221
  %v1223 = vpop.f32.mrf.mxu0
  %1224 = vmatprep.mubr.bf16.mxu0 0
  %1225 = vmatmul.mubr.bf16.gmra.mxu0 %v788
  %v1226 = vpop.f32.mrf.mxu0
  %v1227 = vadd.f32 %v938, %v1226
  %v1228 = vpop.f32.mrf.mxu0
  %v1229 = vpop.f32.mrf.mxu0
  %v1230 = vadd.f32 %v941, %v1229
  %v1231 = vpop.f32.mrf.mxu0
  %1232 = vmatprep.mubr.bf16.mxu0 0
  %1233 = vmatmul.mubr.bf16.gmra.mxu0 %v791
  %v1234 = vpop.f32.mrf.mxu0
  %v1235 = vadd.f32 %v946, %v1234
  %v1236 = vpop.f32.mrf.mxu0
  %v1237 = vpop.f32.mrf.mxu0
  %v1238 = vadd.f32 %v949, %v1237
  %v1239 = vpop.f32.mrf.mxu0
  %1240 = vmatprep.mubr.bf16.mxu0 0
  %1241 = vmatmul.mubr.bf16.gmra.mxu0 %v794
  %v1242 = vpop.f32.mrf.mxu0
  %v1243 = vadd.f32 %v954, %v1242
  %v1244 = vpop.f32.mrf.mxu0
  %v1245 = vpop.f32.mrf.mxu0
  %v1246 = vadd.f32 %v957, %v1245
  %v1247 = vpop.f32.mrf.mxu0
  %1248 = vmatprep.mubr.bf16.mxu0 0
  %1249 = vmatmul.mubr.bf16.gmra.mxu0 %v797
  %v1250 = vpop.f32.mrf.mxu0
  %v1251 = vadd.f32 %v962, %v1250
  %v1252 = vpop.f32.mrf.mxu0
  %v1253 = vpop.f32.mrf.mxu0
  %v1254 = vadd.f32 %v965, %v1253
  %v1255 = vpop.f32.mrf.mxu0
  %1256 = vmatprep.mubr.bf16.mxu0 0
  %1257 = vmatmul.mubr.bf16.gmra.mxu0 %v800
  %v1258 = vpop.f32.mrf.mxu0
  %v1259 = vadd.f32 %v970, %v1258
  %v1260 = vpop.f32.mrf.mxu0
  %v1261 = vpop.f32.mrf.mxu0
  %v1262 = vadd.f32 %v973, %v1261
  %v1263 = vpop.f32.mrf.mxu0
  %1264 = vmatprep.mubr.bf16.mxu0 0
  %1265 = vmatmul.mubr.bf16.gmra.mxu0 %v803
  %v1266 = vpop.f32.mrf.mxu0
  %v1267 = vadd.f32 %v978, %v1266
  %v1268 = vpop.f32.mrf.mxu0
  %v1269 = vpop.f32.mrf.mxu0
  %v1270 = vadd.f32 %v981, %v1269
  %v1271 = vpop.f32.mrf.mxu0
  %1272 = vmatprep.mubr.bf16.mxu0 0
  %1273 = vmatmul.mubr.bf16.gmra.mxu0 %v806
  %v1274 = vpop.f32.mrf.mxu0
  %v1275 = vadd.f32 %v986, %v1274
  %v1276 = vpop.f32.mrf.mxu0
  %v1277 = vpop.f32.mrf.mxu0
  %v1278 = vadd.f32 %v989, %v1277
  %v1279 = vpop.f32.mrf.mxu0
  %1280 = vmatprep.mubr.bf16.mxu0 0
  %1281 = vmatmul.mubr.bf16.gmra.mxu0 %v809
  %v1282 = vpop.f32.mrf.mxu0
  %v1283 = vadd.f32 %v994, %v1282
  %v1284 = vpop.f32.mrf.mxu0
  %v1285 = vpop.f32.mrf.mxu0
  %v1286 = vadd.f32 %v997, %v1285
  %v1287 = vpop.f32.mrf.mxu0
  %1288 = vmatprep.mubr.bf16.mxu0 0
  %1289 = vmatmul.mubr.bf16.gmra.mxu0 %v812
  %v1290 = vpop.f32.mrf.mxu0
  %v1291 = vadd.f32 %v1002, %v1290
  %v1292 = vpop.f32.mrf.mxu0
  %v1293 = vpop.f32.mrf.mxu0
  %v1294 = vadd.f32 %v1005, %v1293
  %v1295 = vpop.f32.mrf.mxu0
  %1296 = vmatprep.mubr.bf16.mxu0 0
  %1297 = vmatmul.mubr.bf16.gmra.mxu0 %v815
  %v1298 = vpop.f32.mrf.mxu0
  %v1299 = vadd.f32 %v1010, %v1298
  %v1300 = vpop.f32.mrf.mxu0
  %v1301 = vpop.f32.mrf.mxu0
  %v1302 = vadd.f32 %v1013, %v1301
  %v1303 = vpop.f32.mrf.mxu0
  %1304 = vmatprep.mubr.bf16.mxu0 0
  %1305 = vmatmul.mubr.bf16.gmra.mxu0 %v818
  %v1306 = vpop.f32.mrf.mxu0
  %v1307 = vadd.f32 %v1018, %v1306
  %v1308 = vpop.f32.mrf.mxu0
  %v1309 = vpop.f32.mrf.mxu0
  %v1310 = vadd.f32 %v1021, %v1309
  %v1311 = vpop.f32.mrf.mxu0
  %1312 = vmatprep.mubr.bf16.mxu0 0
  %1313 = vmatmul.mubr.bf16.gmra.mxu0 %v821
  %v1314 = vpop.f32.mrf.mxu0
  %v1315 = vadd.f32 %v1026, %v1314
  %v1316 = vpop.f32.mrf.mxu0
  %v1317 = vpop.f32.mrf.mxu0
  %v1318 = vadd.f32 %v1029, %v1317
  %v1319 = vpop.f32.mrf.mxu0
  %1320 = vmatprep.mubr.bf16.mxu0 0
  %1321 = vmatmul.mubr.bf16.gmra.mxu0 %v824
  %v1322 = vpop.f32.mrf.mxu0
  %v1323 = vadd.f32 %v1034, %v1322
  %v1324 = vpop.f32.mrf.mxu0
  %v1325 = vpop.f32.mrf.mxu0
  %v1326 = vadd.f32 %v1037, %v1325
  %v1327 = vpop.f32.mrf.mxu0
  %1328 = vmatprep.mubr.bf16.mxu0 0
  %1329 = vmatmul.mubr.bf16.gmra.mxu0 %v827
  %v1330 = vpop.f32.mrf.mxu0
  %v1331 = vadd.f32 %v1042, %v1330
  %v1332 = vpop.f32.mrf.mxu0
  %v1333 = vpop.f32.mrf.mxu0
  %v1334 = vadd.f32 %v1045, %v1333
  %v1335 = vpop.f32.mrf.mxu0
  %1336 = vmatprep.mubr.bf16.mxu0 0
  %1337 = vmatmul.mubr.bf16.gmra.mxu0 %v830
  %v1338 = vpop.f32.mrf.mxu0
  %v1339 = vadd.f32 %v1050, %v1338
  %v1340 = vpop.f32.mrf.mxu0
  %v1341 = vpop.f32.mrf.mxu0
  %v1342 = vadd.f32 %v1053, %v1341
  %v1343 = vpop.f32.mrf.mxu0
  %1344 = vmatprep.mubr.bf16.mxu0 0
  %1345 = vmatmul.mubr.bf16.gmra.mxu0 %v833
  %v1346 = vpop.f32.mrf.mxu0
  %v1347 = vadd.f32 %v1058, %v1346
  %v1348 = vpop.f32.mrf.mxu0
  %v1349 = vpop.f32.mrf.mxu0
  %v1350 = vadd.f32 %v1061, %v1349
  %v1351 = vpop.f32.mrf.mxu0
  %1352 = vmatprep.mubr.bf16.mxu0 0
  %1353 = vmatmul.mubr.bf16.gmra.mxu0 %v836
  %v1354 = vpop.f32.mrf.mxu0
  %v1355 = vadd.f32 %v1066, %v1354
  %v1356 = vpop.f32.mrf.mxu0
  %v1357 = vpop.f32.mrf.mxu0
  %v1358 = vadd.f32 %v1069, %v1357
  %v1359 = vpop.f32.mrf.mxu0
  %1360 = vmatprep.mubr.bf16.mxu0 0
  %1361 = vmatmul.mubr.bf16.gmra.mxu0 %v839
  %v1362 = vpop.f32.mrf.mxu0
  %v1363 = vadd.f32 %v1074, %v1362
  %v1364 = vpop.f32.mrf.mxu0
  %v1365 = vpop.f32.mrf.mxu0
  %v1366 = vadd.f32 %v1077, %v1365
  %v1367 = vpop.f32.mrf.mxu0
  %1368 = vmatprep.mubr.bf16.mxu0 0
  %1369 = vmatmul.mubr.bf16.gmra.mxu0 %v842
  %v1370 = vpop.f32.mrf.mxu0
  %v1371 = vadd.f32 %v1082, %v1370
  %v1372 = vpop.f32.mrf.mxu0
  %v1373 = vpop.f32.mrf.mxu0
  %v1374 = vadd.f32 %v1085, %v1373
  %v1375 = vpop.f32.mrf.mxu0
  %1376 = vmatprep.mubr.bf16.mxu0 0
  %1377 = vmatmul.mubr.bf16.gmra.mxu0 %v845
  %v1378 = vpop.f32.mrf.mxu0
  %v1379 = vadd.f32 %v1090, %v1378
  %v1380 = vpop.f32.mrf.mxu0
  %v1381 = vpop.f32.mrf.mxu0
  %v1382 = vadd.f32 %v1093, %v1381
  %v1383 = vpop.f32.mrf.mxu0
  %1384 = vmatprep.mubr.bf16.mxu0 0
  %1385 = vmatmul.mubr.bf16.gmra.mxu0 %v848
  %v1386 = vpop.f32.mrf.mxu0
  %v1387 = vadd.f32 %v1098, %v1386
  %v1388 = vpop.f32.mrf.mxu0
  %v1389 = vpop.f32.mrf.mxu0
  %v1390 = vadd.f32 %v1101, %v1389
  %v1391 = vpop.f32.mrf.mxu0
  %1392 = vmatprep.mubr.bf16.mxu0 0
  %1393 = vmatmul.mubr.bf16.gmra.mxu0 %v851
  %v1394 = vpop.f32.mrf.mxu0
  %v1395 = vadd.f32 %v1106, %v1394
  %v1396 = vpop.f32.mrf.mxu0
  %v1397 = vpop.f32.mrf.mxu0
  %v1398 = vadd.f32 %v1109, %v1397
  %v1399 = vpop.f32.mrf.mxu0
  %1400 = vmatprep.mubr.bf16.mxu0 0
  %1401 = vmatmul.mubr.bf16.gmra.mxu0 %v854
  %v1402 = vpop.f32.mrf.mxu0
  %v1403 = vadd.f32 %v1114, %v1402
  %v1404 = vpop.f32.mrf.mxu0
  %v1405 = vpop.f32.mrf.mxu0
  %v1406 = vadd.f32 %v1117, %v1405
  %v1407 = vpop.f32.mrf.mxu0
  %1408 = vmatprep.mubr.bf16.mxu0 0
  %1409 = vmatmul.mubr.bf16.gmra.mxu0 %v857
  %v1410 = vpop.f32.mrf.mxu0
  %v1411 = vadd.f32 %v1122, %v1410
  %v1412 = vpop.f32.mrf.mxu0
  %v1413 = vpop.f32.mrf.mxu0
  %v1414 = vadd.f32 %v1125, %v1413
  %v1415 = vpop.f32.mrf.mxu0
  %1416 = vmatprep.mubr.bf16.mxu0 0
  %1417 = vmatmul.mubr.bf16.gmra.mxu0 %v860
  %v1418 = vpop.f32.mrf.mxu0
  %v1419 = vadd.f32 %v1130, %v1418
  %v1420 = vpop.f32.mrf.mxu0
  %v1421 = vpop.f32.mrf.mxu0
  %v1422 = vadd.f32 %v1133, %v1421
  %v1423 = vpop.f32.mrf.mxu0
  %1424 = vmatprep.mubr.bf16.mxu0 0
  %1425 = vmatmul.mubr.bf16.gmra.mxu0 %v863
  %v1426 = vpop.f32.mrf.mxu0
  %v1427 = vadd.f32 %v1138, %v1426
  %v1428 = vpop.f32.mrf.mxu0
  %v1429 = vpop.f32.mrf.mxu0
  %v1430 = vadd.f32 %v1141, %v1429
  %v1431 = vpop.f32.mrf.mxu0
  %1432 = vmatprep.mubr.bf16.mxu0 0
  %1433 = vmatmul.mubr.bf16.gmra.mxu0 %v866
  %v1434 = vpop.f32.mrf.mxu0
  %v1435 = vadd.f32 %v1146, %v1434
  %v1436 = vpop.f32.mrf.mxu0
  %v1437 = vpop.f32.mrf.mxu0
  %v1438 = vadd.f32 %v1149, %v1437
  %v1439 = vpop.f32.mrf.mxu0
  %1440 = vmatprep.mubr.bf16.mxu0 0
  %1441 = vmatmul.mubr.bf16.gmra.mxu0 %v869
  %v1442 = vpop.f32.mrf.mxu0
  %v1443 = vadd.f32 %v1154, %v1442
  %v1444 = vpop.f32.mrf.mxu0
  %v1445 = vpop.f32.mrf.mxu0
  %v1446 = vadd.f32 %v1157, %v1445
  %v1447 = vpop.f32.mrf.mxu0
  %1448 = vdwg.mxu0
  %vm1449 = vcmask 97280
  %1450 = vst.msk [vmem:[%s3] sm:$0xff] %vm1449, %v1195
  %1451 = vst.msk [vmem:[%s3 + $0x8] sm:$0xff] %vm1449, %v1198
  %1452 = vst.msk [vmem:[%s3 + $0x10] sm:$0xff] %vm1449, %v1203
  %1453 = vst.msk [vmem:[%s3 + $0x18] sm:$0xff] %vm1449, %v1206
  %1454 = vst.msk [vmem:[%s3 + $0x20] sm:$0xff] %vm1449, %v1211
  %1455 = vst.msk [vmem:[%s3 + $0x28] sm:$0xff] %vm1449, %v1214
  %1456 = vst.msk [vmem:[%s3 + $0x30] sm:$0xff] %vm1449, %v1219
  %1457 = vst.msk [vmem:[%s3 + $0x38] sm:$0xff] %vm1449, %v1222
  %1458 = vst.msk [vmem:[%s3 + $0x40] sm:$0xff] %vm1449, %v1227
  %1459 = vst.msk [vmem:[%s3 + $0x48] sm:$0xff] %vm1449, %v1230
  %1460 = vst.msk [vmem:[%s3 + $0x50] sm:$0xff] %vm1449, %v1235
  %1461 = vst.msk [vmem:[%s3 + $0x58] sm:$0xff] %vm1449, %v1238
  %1462 = vst.msk [vmem:[%s3 + $0x60] sm:$0xff] %vm1449, %v1243
  %1463 = vst.msk [vmem:[%s3 + $0x68] sm:$0xff] %vm1449, %v1246
  %1464 = vst.msk [vmem:[%s3 + $0x70] sm:$0xff] %vm1449, %v1251
  %1465 = vst.msk [vmem:[%s3 + $0x78] sm:$0xff] %vm1449, %v1254
  %1466 = vst.msk [vmem:[%s3 + $0x80] sm:$0xff] %vm1449, %v1259
  %1467 = vst.msk [vmem:[%s3 + $0x88] sm:$0xff] %vm1449, %v1262
  %1468 = vst.msk [vmem:[%s3 + $0x90] sm:$0xff] %vm1449, %v1267
  %1469 = vst.msk [vmem:[%s3 + $0x98] sm:$0xff] %vm1449, %v1270
  %1470 = vst.msk [vmem:[%s3 + $0xa0] sm:$0xff] %vm1449, %v1275
  %1471 = vst.msk [vmem:[%s3 + $0xa8] sm:$0xff] %vm1449, %v1278
  %1472 = vst.msk [vmem:[%s3 + $0xb0] sm:$0xff] %vm1449, %v1283
  %1473 = vst.msk [vmem:[%s3 + $0xb8] sm:$0xff] %vm1449, %v1286
  %1474 = vst.msk [vmem:[%s3 + $0xc0] sm:$0xff] %vm1449, %v1291
  %1475 = vst.msk [vmem:[%s3 + $0xc8] sm:$0xff] %vm1449, %v1294
  %1476 = vst.msk [vmem:[%s3 + $0xd0] sm:$0xff] %vm1449, %v1299
  %1477 = vst.msk [vmem:[%s3 + $0xd8] sm:$0xff] %vm1449, %v1302
  %1478 = vst.msk [vmem:[%s3 + $0xe0] sm:$0xff] %vm1449, %v1307
  %1479 = vst.msk [vmem:[%s3 + $0xe8] sm:$0xff] %vm1449, %v1310
  %1480 = vst.msk [vmem:[%s3 + $0xf0] sm:$0xff] %vm1449, %v1315
  %1481 = vst.msk [vmem:[%s3 + $0xf8] sm:$0xff] %vm1449, %v1318
  %1482 = vst.msk [vmem:[%s3 + $0x100] sm:$0xff] %vm1449, %v1323
  %1483 = vst.msk [vmem:[%s3 + $0x108] sm:$0xff] %vm1449, %v1326
  %1484 = vst.msk [vmem:[%s3 + $0x110] sm:$0xff] %vm1449, %v1331
  %1485 = vst.msk [vmem:[%s3 + $0x118] sm:$0xff] %vm1449, %v1334
  %1486 = vst.msk [vmem:[%s3 + $0x120] sm:$0xff] %vm1449, %v1339
  %1487 = vst.msk [vmem:[%s3 + $0x128] sm:$0xff] %vm1449, %v1342
  %1488 = vst.msk [vmem:[%s3 + $0x130] sm:$0xff] %vm1449, %v1347
  %1489 = vst.msk [vmem:[%s3 + $0x138] sm:$0xff] %vm1449, %v1350
  %1490 = vst.msk [vmem:[%s3 + $0x140] sm:$0xff] %vm1449, %v1355
  %1491 = vst.msk [vmem:[%s3 + $0x148] sm:$0xff] %vm1449, %v1358
  %1492 = vst.msk [vmem:[%s3 + $0x150] sm:$0xff] %vm1449, %v1363
  %1493 = vst.msk [vmem:[%s3 + $0x158] sm:$0xff] %vm1449, %v1366
  %1494 = vst.msk [vmem:[%s3 + $0x160] sm:$0xff] %vm1449, %v1371
  %1495 = vst.msk [vmem:[%s3 + $0x168] sm:$0xff] %vm1449, %v1374
  %1496 = vst.msk [vmem:[%s3 + $0x170] sm:$0xff] %vm1449, %v1379
  %1497 = vst.msk [vmem:[%s3 + $0x178] sm:$0xff] %vm1449, %v1382
  %1498 = vst.msk [vmem:[%s3 + $0x180] sm:$0xff] %vm1449, %v1387
  %1499 = vst.msk [vmem:[%s3 + $0x188] sm:$0xff] %vm1449, %v1390
  %1500 = vst.msk [vmem:[%s3 + $0x190] sm:$0xff] %vm1449, %v1395
  %1501 = vst.msk [vmem:[%s3 + $0x198] sm:$0xff] %vm1449, %v1398
  %1502 = vst.msk [vmem:[%s3 + $0x1a0] sm:$0xff] %vm1449, %v1403
  %1503 = vst.msk [vmem:[%s3 + $0x1a8] sm:$0xff] %vm1449, %v1406
  %1504 = vst.msk [vmem:[%s3 + $0x1b0] sm:$0xff] %vm1449, %v1411
  %1505 = vst.msk [vmem:[%s3 + $0x1b8] sm:$0xff] %vm1449, %v1414
  %1506 = vst.msk [vmem:[%s3 + $0x1c0] sm:$0xff] %vm1449, %v1419
  %1507 = vst.msk [vmem:[%s3 + $0x1c8] sm:$0xff] %vm1449, %v1422
  %1508 = vst.msk [vmem:[%s3 + $0x1d0] sm:$0xff] %vm1449, %v1427
  %1509 = vst.msk [vmem:[%s3 + $0x1d8] sm:$0xff] %vm1449, %v1430
  %1510 = vst.msk [vmem:[%s3 + $0x1e0] sm:$0xff] %vm1449, %v1435
  %1511 = vst.msk [vmem:[%s3 + $0x1e8] sm:$0xff] %vm1449, %v1438
  %1512 = vst.msk [vmem:[%s3 + $0x1f0] sm:$0xff] %vm1449, %v1443
  %1513 = vst.msk [vmem:[%s3 + $0x1f8] sm:$0xff] %vm1449, %v1446
  // Predicated region
  $region14: #{smoothtext_forward.5} parent=0 // pred_check
    _
  $region15: #{smoothtext_forward.5} parent=0 // pred_check_branch
    %1515 = sbr.rel (0) target = $region17
  $region16: #{smoothtext_forward.5} parent=0 // pred_region
    _
  $region17: #{smoothtext_forward.5} parent=0 // pred_fallthru
    _
  // Predicated region
  $region18: #{smoothtext_forward.5} parent=0 // pred_check
    _
  $region19: #{smoothtext_forward.5} parent=0 // pred_check_branch
    %1517 = sbr.rel (0) target = $region21
  $region20: #{smoothtext_forward.5} parent=0 // pred_region
    _
  $region21: #{smoothtext_forward.5} parent=0 // pred_fallthru
    _

</llo_original>
